<compile_context>
chip_gen: v5e
topology: v5e:2x2
jax: 0.10.0
libtpu: 0.0.40
codegen_flags: <defaults>
</compile_context>

<pallas_src>
import numpy as np
import jax
import jax.numpy as jnp
from jax import lax
from jax.experimental import pallas as pl
from jax.experimental.pallas import tpu as pltpu

# ----------------------------- configuration ------------------------------
B, C, H_IN, W_IN = 2, 3, 16, 16        # NCHW at the wrapper boundary (RGB images)
DINO_SIZE = 32                         # TODO(synk): real DINOLoss resizes to (224, 224)
PATCH = 8
EMBED_DIM = 128                        # lane-dense stand-in (real dino_vits8: 384)
DEPTH = 2
HEADS = 2
HEAD_DIM = EMBED_DIM // HEADS          # 64, matches real dino_vits8 head_dim
MLP_DIM = 4 * EMBED_DIM
EPS = 1e-6

N_PATCH = (DINO_SIZE // PATCH) ** 2    # 16
N_TOK = N_PATCH + 1                    # 17 (CLS + patches)
T_PAD = ((N_TOK + 7) // 8) * 8         # 24: pad token axis to a sublane multiple
T2 = 2 * T_PAD                         # 48: both branches stacked along sublanes

IMAGENET_MEAN = jnp.array([0.485, 0.456, 0.406], jnp.float32)
IMAGENET_STD = jnp.array([0.229, 0.224, 0.225], jnp.float32)


# ============================ the fused kernel ==============================
def _dino_trunk_kernel(tok_ref, add_ref,
                       qkvw_ref, qkvb_ref, projw_ref, projb_ref,
                       fc1w_ref, fc1b_ref, fc2w_ref, fc2b_ref,
                       o_ref):
    D = EMBED_DIM

    # token embeddings (frontend matmul done by the caller) + CLS/pos/bias table
    x = tok_ref[...] + add_ref[...]                                   # (48, 128) f32

    # block-diagonal attention bias, built once: queries only see the valid (non-padded)
    # keys of their OWN branch, so the two stacked sequences never mix.
    row = lax.broadcasted_iota(jnp.int32, (T2, T2), 0)
    col = lax.broadcasted_iota(jnp.int32, (T2, T2), 1)
    q_b0 = row < T_PAD
    k_ok_b0 = col < N_TOK
    k_ok_b1 = (col >= T_PAD) & (col < T_PAD + N_TOK)
    attn_bias = jnp.where((q_b0 & k_ok_b0) | ((~q_b0) & k_ok_b1), 0.0, -1e30)

    for li in range(DEPTH):                                           # unrolled (DEPTH=2)
        # ---- attention sub-block: LN1 (affine folded into W) -> QKV -> MHA -> proj ----
        mu = jnp.mean(x, axis=-1, keepdims=True)
        var = jnp.mean(jnp.square(x - mu), axis=-1, keepdims=True)
        h = (x - mu) * lax.rsqrt(var + EPS)
        qkv = jnp.dot(h.astype(jnp.bfloat16), qkvw_ref[li],
                      preferred_element_type=jnp.float32) + qkvb_ref[li]   # (48, 384)
        head_outs = []
        for hd in range(HEADS):                                       # unrolled (HEADS=2)
            lo = hd * HEAD_DIM
            q_h = qkv[:, lo:lo + HEAD_DIM]
            k_h = qkv[:, D + lo:D + lo + HEAD_DIM]
            v_h = qkv[:, 2 * D + lo:2 * D + lo + HEAD_DIM]
            # 1/sqrt(head_dim) is pre-folded into the q weights/bias.
            s = lax.dot_general(q_h.astype(jnp.bfloat16), k_h.astype(jnp.bfloat16),
                                (((1,), (1,)), ((), ())),
                                preferred_element_type=jnp.float32)        # (48, 48)
            s = s + attn_bias
            s = s - jnp.max(s, axis=-1, keepdims=True)
            p = jnp.exp(s)
            p = p * pl.reciprocal(jnp.sum(p, axis=-1, keepdims=True), approx=True)
            head_outs.append(jnp.dot(p.astype(jnp.bfloat16), v_h.astype(jnp.bfloat16),
                                     preferred_element_type=jnp.float32))  # (48, 64)
        # hoisted projection: one full 128-lane contraction instead of two K=64 dots
        o_heads = jnp.concatenate(head_outs, axis=-1)                 # (48, 128)
        x = x + jnp.dot(o_heads.astype(jnp.bfloat16), projw_ref[li],
                        preferred_element_type=jnp.float32) + projb_ref[li]

        # ---- MLP sub-block: LN2 (affine folded) -> FC1 + GELU -> FC2 -> residual ----
        mu = jnp.mean(x, axis=-1, keepdims=True)
        var = jnp.mean(jnp.square(x - mu), axis=-1, keepdims=True)
        h = (x - mu) * lax.rsqrt(var + EPS)
        h1 = jnp.dot(h.astype(jnp.bfloat16), fc1w_ref[li],
                     preferred_element_type=jnp.float32) + fc1b_ref[li]
        # TODO(synk): PyTorch nn.GELU default is exact erf; tanh approximation used here.
        h1 = jax.nn.gelu(h1, approximate=True)
        x = x + jnp.dot(h1.astype(jnp.bfloat16), fc2w_ref[li],
                        preferred_element_type=jnp.float32) + fc2b_ref[li]

    # only the two CLS rows (one per branch) feed the loss: lane-dense (2, 128) writeback
    o_ref[...] = jnp.concatenate([x[0:1, :], x[T_PAD:T_PAD + 1, :]], axis=0)


def vit_trunk_fused(tok48, p):
    D = EMBED_DIM
    full = lambda shape: pl.BlockSpec(shape, lambda *_: (0,) * len(shape))
    return pl.pallas_call(
        _dino_trunk_kernel,
        out_shape=jax.ShapeDtypeStruct((2, D), jnp.float32),
        grid=(1,),
        in_specs=[full((T2, D)), full((T2, D)),
                  full((DEPTH, D, 3 * D)), full((DEPTH, 1, 3 * D)),
                  full((DEPTH, D, D)), full((DEPTH, 1, D)),
                  full((DEPTH, D, MLP_DIM)), full((DEPTH, 1, MLP_DIM)),
                  full((DEPTH, MLP_DIM, D)), full((DEPTH, 1, D))],
        out_specs=full((2, D)),
        compiler_params=pltpu.CompilerParams(dimension_semantics=("arbitrary",)),
    )(tok48, p["embed_add2"], p["qkv_w"], p["qkv_b"], p["proj_w"], p["proj_b"],
      p["fc1_w"], p["fc1_b"], p["fc2_w"], p["fc2_b"])


# ============================ parameters & folds ============================
def _bilinear_matrix(n_in, n_out):
    """Row-interpolation matrix matching F.interpolate(bilinear, align_corners=False)."""
    A = np.zeros((n_out, n_in), dtype=np.float32)
    scale = n_in / n_out
    for i in range(n_out):
        src = (i + 0.5) * scale - 0.5
        src = max(src, 0.0)
        i0 = min(int(np.floor(src)), n_in - 1)
        i1 = min(i0 + 1, n_in - 1)
        w = src - i0
        A[i, i0] += 1.0 - w
        A[i, i1] += w
    assert np.allclose(A.sum(axis=1), 1.0)
    return jnp.asarray(A)


def init_params(key):
    def w(k, shape, scale=0.02):
        return scale * jax.random.normal(k, shape, jnp.float32)

    keys = iter(jax.random.split(key, 3 + DEPTH * 4))
    params = {
        "patch_w": w(next(keys), (C * PATCH * PATCH, EMBED_DIM)),
        "patch_b": jnp.zeros((EMBED_DIM,), jnp.float32),
        "cls_token": w(next(keys), (1, 1, EMBED_DIM)),
        "pos_embed": w(next(keys), (1, N_TOK, EMBED_DIM)),
        "blocks": [],
    }
    for _ in range(DEPTH):
        params["blocks"].append({
            "ln1_g": jnp.ones((EMBED_DIM,), jnp.float32),
            "ln1_b": jnp.zeros((EMBED_DIM,), jnp.float32),
            "qkv_w": w(next(keys), (EMBED_DIM, 3 * EMBED_DIM)),
            "qkv_b": jnp.zeros((3 * EMBED_DIM,), jnp.float32),
            "proj_w": w(next(keys), (EMBED_DIM, EMBED_DIM)),
            "proj_b": jnp.zeros((EMBED_DIM,), jnp.float32),
            "ln2_g": jnp.ones((EMBED_DIM,), jnp.float32),
            "ln2_b": jnp.zeros((EMBED_DIM,), jnp.float32),
            "fc1_w": w(next(keys), (EMBED_DIM, MLP_DIM)),
            "fc1_b": jnp.zeros((MLP_DIM,), jnp.float32),
            "fc2_w": w(next(keys), (MLP_DIM, EMBED_DIM)),
            "fc2_b": jnp.zeros((EMBED_DIM,), jnp.float32),
        })
    return params


def prepare_params(params):
    """Offline, exact folds:
       * resize ∘ MeanShift ∘ patchify ∘ patch-embed  ->  one matrix `w_front`
         (shift term + CLS token + pos_embed -> one additive table),
       * LayerNorm affine into the following matmul weights/biases,
       * 1/sqrt(head_dim) into the q columns of the fused QKV weights,
       and per-block params stacked along a DEPTH axis (bf16 for MXU operands)."""
    D = EMBED_DIM
    inv_std = 1.0 / IMAGENET_STD
    shift = -IMAGENET_MEAN / IMAGENET_STD
    Wp = params["patch_w"]                                       # (C*P*P, D)

    # --- frontend fold (exact: everything upstream of the first LN is linear) ---
    Ah = _bilinear_matrix(H_IN, DINO_SIZE)                       # (32, 16)
    Aw = _bilinear_matrix(W_IN, DINO_SIZE)                       # (32, 16)
    G = DINO_SIZE // PATCH                                       # 4
    Wp4 = Wp.reshape(C, PATCH, PATCH, D)
    AhP = Ah.reshape(G, PATCH, H_IN)                             # (gi, pi, i)
    AwP = Aw.reshape(G, PATCH, W_IN)                             # (gj, pj, j)
    wf = jnp.einsum("api,bqj,cpqd->cijabd", AhP, AwP, Wp4)
    wf = wf * inv_std[:, None, None, None, None, None]
    wf = wf.reshape(C * H_IN * W_IN, N_PATCH * D)                # (768, 2048)
    w_front = jnp.zeros((C * H_IN * W_IN, T_PAD * D), jnp.float32)
    w_front = w_front.at[:, D:(1 + N_PATCH) * D].set(wf)         # slot 0 = CLS, 17.. = pad

    # additive table: folded MeanShift shift (through patch embed) + CLS + pos_embed
    patch_b_folded = params["patch_b"] + jnp.repeat(shift, PATCH * PATCH) @ Wp
    pos = params["pos_embed"][0]                                 # (N_TOK, D)
    add = jnp.zeros((T_PAD, D), jnp.float32)
    add = add.at[0].set(params["cls_token"][0, 0] + pos[0])
    add = add.at[1:N_TOK].set(patch_b_folded[None, :] + pos[1:])
    add2 = jnp.concatenate([add, add], axis=0)                   # both branches stacked

    stack = lambda name: jnp.stack([blk[name] for blk in params["blocks"]])

    att_scale = 1.0 / float(np.sqrt(HEAD_DIM))
    qkv_w = stack("qkv_w") * stack("ln1_g")[:, :, None]
    qkv_b = stack("qkv_b") + jnp.einsum("dk,dkn->dn", stack("ln1_b"), stack("qkv_w"))
    qkv_w = qkv_w.at[:, :, :D].multiply(att_scale)
    qkv_b = qkv_b.at[:, :D].multiply(att_scale)
    fc1_w = stack("fc1_w") * stack("ln2_g")[:, :, None]
    fc1_b = stack("fc1_b") + jnp.einsum("dk,dkn->dn", stack("ln2_b"), stack("fc1_w"))

    return {
        "w_front": w_front.astype(jnp.bfloat16),
        "embed_add2": add2,
        "qkv_w": qkv_w.astype(jnp.bfloat16),
        "qkv_b": qkv_b.reshape(DEPTH, 1, 3 * D),
        "proj_w": stack("proj_w").astype(jnp.bfloat16),
        "proj_b": stack("proj_b").reshape(DEPTH, 1, D),
        "fc1_w": fc1_w.astype(jnp.bfloat16),
        "fc1_b": fc1_b.reshape(DEPTH, 1, MLP_DIM),
        "fc2_w": stack("fc2_w").astype(jnp.bfloat16),
        "fc2_b": stack("fc2_b").reshape(DEPTH, 1, D),
    }


# ============================ DINOLoss.forward ==============================
def dino_loss(output_nchw, target_nchw, prepared):
    # Only batch element 0 feeds the loss (the reference indexes `...[-1][0, 0, :]`);
    # the rest of the batch would be computed and thrown away, so it is skipped.
    x2 = jnp.stack([output_nchw[0].reshape(-1),
                    target_nchw[0].reshape(-1)]).astype(jnp.float32)        # (2, 768)
    # Frontend (resize -> MeanShift -> patchify -> patch embed) as ONE tiny matmul
    # against the offline-folded matrix; XLA fuses the flatten/matmul/reshape.
    tok = jnp.dot(x2.astype(jnp.bfloat16), prepared["w_front"],
                  preferred_element_type=jnp.float32)                       # (2, T_PAD*D)
    tok48 = tok.reshape(T2, EMBED_DIM)                                      # (48, 128)

    cls = vit_trunk_fused(tok48, prepared)                                  # (2, 128)
    out_cls = cls[0]
    tgt_cls = lax.stop_gradient(cls[1])                                     # torch.no_grad()
    d = out_cls - tgt_cls
    # 128-element MSE: plain JAX — a dedicated kernel here is pure launch overhead.
    return jnp.mean(d * d)


if __name__ == "__main__":
    key = jax.random.PRNGKey(0)
    k1, k2, k3 = jax.random.split(key, 3)
    params = init_params(k3)
    prepared = prepare_params(params)
    output = jax.random.uniform(k1, (B, C, H_IN, W_IN), jnp.float32)
    target = jax.random.uniform(k2, (B, C, H_IN, W_IN), jnp.float32)

    loss = jax.jit(dino_loss)(output, target, prepared)
    jax.block_until_ready(loss)
    print("KERNEL_OK")
</pallas_src>

<mosaic_0001>
module attributes {stable_mosaic.version = 11 : i64} {
  func.func @_dino_trunk_kernel(%arg0: i32, %arg1: memref<48x128xf32, #tpu.memory_space<vmem>>, %arg2: memref<48x128xf32, #tpu.memory_space<vmem>>, %arg3: memref<2x128x384xbf16, #tpu.memory_space<vmem>>, %arg4: memref<2x1x384xf32, #tpu.memory_space<vmem>>, %arg5: memref<2x128x128xbf16, #tpu.memory_space<vmem>>, %arg6: memref<2x1x128xf32, #tpu.memory_space<vmem>>, %arg7: memref<2x128x512xbf16, #tpu.memory_space<vmem>>, %arg8: memref<2x1x512xf32, #tpu.memory_space<vmem>>, %arg9: memref<2x512x128xbf16, #tpu.memory_space<vmem>>, %arg10: memref<2x1x128xf32, #tpu.memory_space<vmem>>, %arg11: memref<2x128xf32, #tpu.memory_space<vmem>>) attributes {dimension_semantics = [#tpu.dimension_semantics<arbitrary>], iteration_bounds = array<i64: 1>, scalar_prefetch = 0 : i64, scratch_operands = 0 : i64, tpu.core_type = #tpu.core_type<tc>, window_params = [{pipeline_mode = #tpu.pipeline_mode<synchronous>, transform_indices = @transform_0, window_bounds = array<i64: 48, 128>}, {pipeline_mode = #tpu.pipeline_mode<synchronous>, transform_indices = @transform_1, window_bounds = array<i64: 48, 128>}, {pipeline_mode = #tpu.pipeline_mode<synchronous>, transform_indices = @transform_2, window_bounds = array<i64: 2, 128, 384>}, {pipeline_mode = #tpu.pipeline_mode<synchronous>, transform_indices = @transform_3, window_bounds = array<i64: 2, 1, 384>}, {pipeline_mode = #tpu.pipeline_mode<synchronous>, transform_indices = @transform_4, window_bounds = array<i64: 2, 128, 128>}, {pipeline_mode = #tpu.pipeline_mode<synchronous>, transform_indices = @transform_5, window_bounds = array<i64: 2, 1, 128>}, {pipeline_mode = #tpu.pipeline_mode<synchronous>, transform_indices = @transform_6, window_bounds = array<i64: 2, 128, 512>}, {pipeline_mode = #tpu.pipeline_mode<synchronous>, transform_indices = @transform_7, window_bounds = array<i64: 2, 1, 512>}, {pipeline_mode = #tpu.pipeline_mode<synchronous>, transform_indices = @transform_8, window_bounds = array<i64: 2, 512, 128>}, {pipeline_mode = #tpu.pipeline_mode<synchronous>, transform_indices = @transform_9, window_bounds = array<i64: 2, 1, 128>}, {pipeline_mode = #tpu.pipeline_mode<synchronous>, transform_indices = @transform_10, window_bounds = array<i64: 2, 128>}]} {
    %c0 = arith.constant 0 : index
    %c0_0 = arith.constant 0 : index
    %0 = vector.load %arg1[%c0, %c0_0] : memref<48x128xf32, #tpu.memory_space<vmem>>, vector<48x128xf32>
    %c0_1 = arith.constant 0 : index
    %c0_2 = arith.constant 0 : index
    %1 = vector.load %arg2[%c0_1, %c0_2] : memref<48x128xf32, #tpu.memory_space<vmem>>, vector<48x128xf32>
    %2 = arith.addf %0, %1 : vector<48x128xf32>
    %3 = tpu.iota {dimensions = array<i32: 0>} : vector<48x48xi32>
    %4 = tpu.iota {dimensions = array<i32: 1>} : vector<48x48xi32>
    %c24_i32 = arith.constant 24 : i32
    %5 = vector.broadcast %c24_i32 : i32 to vector<48x48xi32>
    %6 = arith.cmpi slt, %3, %5 : vector<48x48xi32>
    %c17_i32 = arith.constant 17 : i32
    %7 = vector.broadcast %c17_i32 : i32 to vector<48x48xi32>
    %8 = arith.cmpi slt, %4, %7 : vector<48x48xi32>
    %c24_i32_3 = arith.constant 24 : i32
    %9 = vector.broadcast %c24_i32_3 : i32 to vector<48x48xi32>
    %10 = arith.cmpi sge, %4, %9 : vector<48x48xi32>
    %c41_i32 = arith.constant 41 : i32
    %11 = vector.broadcast %c41_i32 : i32 to vector<48x48xi32>
    %12 = arith.cmpi slt, %4, %11 : vector<48x48xi32>
    %13 = arith.andi %10, %12 : vector<48x48xi1>
    %14 = arith.andi %6, %8 : vector<48x48xi1>
    %cst = arith.constant dense<true> : vector<48x48xi1>
    %15 = arith.xori %6, %cst : vector<48x48xi1>
    %16 = arith.andi %15, %13 : vector<48x48xi1>
    %17 = arith.ori %14, %16 : vector<48x48xi1>
    %cst_4 = arith.constant 0.000000e+00 : f32
    %cst_5 = arith.constant -1.000000e+30 : f32
    %18 = vector.broadcast %cst_4 : f32 to vector<48x48xf32>
    %19 = vector.broadcast %cst_5 : f32 to vector<48x48xf32>
    %20 = arith.select %17, %18, %19 : vector<48x48xi1>, vector<48x48xf32>
    %cst_6 = arith.constant dense<0.000000e+00> : vector<48xf32>
    %21 = vector.multi_reduction <add>, %2, %cst_6 [1] : vector<48x128xf32> to vector<48xf32>
    %22 = vector.shape_cast %21 : vector<48xf32> to vector<48x1xf32>
    %cst_7 = arith.constant 1.280000e+02 : f32
    %23 = vector.broadcast %cst_7 : f32 to vector<48x1xf32>
    %24 = arith.divf %22, %23 : vector<48x1xf32>
    %25 = vector.broadcast %24 : vector<48x1xf32> to vector<48x128xf32>
    %26 = arith.subf %2, %25 : vector<48x128xf32>
    %27 = arith.mulf %26, %26 : vector<48x128xf32>
    %cst_8 = arith.constant dense<0.000000e+00> : vector<48xf32>
    %28 = vector.multi_reduction <add>, %27, %cst_8 [1] : vector<48x128xf32> to vector<48xf32>
    %29 = vector.shape_cast %28 : vector<48xf32> to vector<48x1xf32>
    %cst_9 = arith.constant 1.280000e+02 : f32
    %30 = vector.broadcast %cst_9 : f32 to vector<48x1xf32>
    %31 = arith.divf %29, %30 : vector<48x1xf32>
    %32 = vector.broadcast %24 : vector<48x1xf32> to vector<48x128xf32>
    %33 = arith.subf %2, %32 : vector<48x128xf32>
    %cst_10 = arith.constant 9.99999997E-7 : f32
    %34 = vector.broadcast %cst_10 : f32 to vector<48x1xf32>
    %35 = arith.addf %31, %34 : vector<48x1xf32>
    %36 = math.rsqrt %35 : vector<48x1xf32>
    %37 = vector.broadcast %36 : vector<48x1xf32> to vector<48x128xf32>
    %38 = arith.mulf %33, %37 : vector<48x128xf32>
    %39 = arith.truncf %38 : vector<48x128xf32> to vector<48x128xbf16>
    %c0_11 = arith.constant 0 : index
    %c0_12 = arith.constant 0 : index
    %c0_13 = arith.constant 0 : index
    %40 = vector.load %arg3[%c0_11, %c0_12, %c0_13] : memref<2x128x384xbf16, #tpu.memory_space<vmem>>, vector<1x128x384xbf16>
    %41 = vector.shape_cast %40 : vector<1x128x384xbf16> to vector<128x384xbf16>
    %cst_14 = arith.constant dense<0.000000e+00> : vector<48x384xf32>
    %42 = tpu.matmul %39, %41, %cst_14 {dimension_numbers = #tpu.dot_dimension_numbers<[1], [0], [0], [1], [0, 0, 1, 1], [], []>} : vector<48x128xbf16>, vector<128x384xbf16>, vector<48x384xf32> -> vector<48x384xf32>
    %c0_15 = arith.constant 0 : index
    %c0_16 = arith.constant 0 : index
    %c0_17 = arith.constant 0 : index
    %43 = vector.load %arg4[%c0_15, %c0_16, %c0_17] : memref<2x1x384xf32, #tpu.memory_space<vmem>>, vector<1x1x384xf32>
    %44 = vector.shape_cast %43 : vector<1x1x384xf32> to vector<1x384xf32>
    %45 = vector.broadcast %44 : vector<1x384xf32> to vector<48x384xf32>
    %46 = arith.addf %42, %45 : vector<48x384xf32>
    %47 = vector.extract_strided_slice %46 {offsets = [0, 0], sizes = [48, 64], strides = [1, 1]} : vector<48x384xf32> to vector<48x64xf32>
    %48 = vector.extract_strided_slice %46 {offsets = [0, 128], sizes = [48, 64], strides = [1, 1]} : vector<48x384xf32> to vector<48x64xf32>
    %49 = vector.extract_strided_slice %46 {offsets = [0, 256], sizes = [48, 64], strides = [1, 1]} : vector<48x384xf32> to vector<48x64xf32>
    %50 = arith.truncf %47 : vector<48x64xf32> to vector<48x64xbf16>
    %51 = arith.truncf %48 : vector<48x64xf32> to vector<48x64xbf16>
    %cst_18 = arith.constant dense<0.000000e+00> : vector<48x48xf32>
    %52 = tpu.matmul %50, %51, %cst_18 {dimension_numbers = #tpu.dot_dimension_numbers<[1], [1], [0], [0], [0, 0, 1, 0], [], []>} : vector<48x64xbf16>, vector<48x64xbf16>, vector<48x48xf32> -> vector<48x48xf32>
    %53 = arith.addf %52, %20 : vector<48x48xf32>
    %cst_19 = arith.constant dense<0xFF800000> : vector<48xf32>
    %54 = vector.multi_reduction <maximumf>, %53, %cst_19 [1] : vector<48x48xf32> to vector<48xf32>
    %55 = vector.shape_cast %54 : vector<48xf32> to vector<48x1xf32>
    %56 = vector.broadcast %55 : vector<48x1xf32> to vector<48x48xf32>
    %57 = arith.subf %53, %56 : vector<48x48xf32>
    %58 = math.exp %57 : vector<48x48xf32>
    %cst_20 = arith.constant dense<0.000000e+00> : vector<48xf32>
    %59 = vector.multi_reduction <add>, %58, %cst_20 [1] : vector<48x48xf32> to vector<48xf32>
    %60 = vector.shape_cast %59 : vector<48xf32> to vector<48x1xf32>
    %61 = tpu.reciprocal %60 {approx = true} : vector<48x1xf32> -> vector<48x1xf32>
    %62 = vector.broadcast %61 : vector<48x1xf32> to vector<48x48xf32>
    %63 = arith.mulf %58, %62 : vector<48x48xf32>
    %64 = arith.truncf %63 : vector<48x48xf32> to vector<48x48xbf16>
    %65 = arith.truncf %49 : vector<48x64xf32> to vector<48x64xbf16>
    %cst_21 = arith.constant dense<0.000000e+00> : vector<48x64xf32>
    %66 = tpu.matmul %64, %65, %cst_21 {dimension_numbers = #tpu.dot_dimension_numbers<[1], [0], [0], [1], [0, 0, 1, 1], [], []>} : vector<48x48xbf16>, vector<48x64xbf16>, vector<48x64xf32> -> vector<48x64xf32>
    %67 = vector.extract_strided_slice %46 {offsets = [0, 64], sizes = [48, 64], strides = [1, 1]} : vector<48x384xf32> to vector<48x64xf32>
    %68 = vector.extract_strided_slice %46 {offsets = [0, 192], sizes = [48, 64], strides = [1, 1]} : vector<48x384xf32> to vector<48x64xf32>
    %69 = vector.extract_strided_slice %46 {offsets = [0, 320], sizes = [48, 64], strides = [1, 1]} : vector<48x384xf32> to vector<48x64xf32>
    %70 = arith.truncf %67 : vector<48x64xf32> to vector<48x64xbf16>
    %71 = arith.truncf %68 : vector<48x64xf32> to vector<48x64xbf16>
    %cst_22 = arith.constant dense<0.000000e+00> : vector<48x48xf32>
    %72 = tpu.matmul %70, %71, %cst_22 {dimension_numbers = #tpu.dot_dimension_numbers<[1], [1], [0], [0], [0, 0, 1, 0], [], []>} : vector<48x64xbf16>, vector<48x64xbf16>, vector<48x48xf32> -> vector<48x48xf32>
    %73 = arith.addf %72, %20 : vector<48x48xf32>
    %cst_23 = arith.constant dense<0xFF800000> : vector<48xf32>
    %74 = vector.multi_reduction <maximumf>, %73, %cst_23 [1] : vector<48x48xf32> to vector<48xf32>
    %75 = vector.shape_cast %74 : vector<48xf32> to vector<48x1xf32>
    %76 = vector.broadcast %75 : vector<48x1xf32> to vector<48x48xf32>
    %77 = arith.subf %73, %76 : vector<48x48xf32>
    %78 = math.exp %77 : vector<48x48xf32>
    %cst_24 = arith.constant dense<0.000000e+00> : vector<48xf32>
    %79 = vector.multi_reduction <add>, %78, %cst_24 [1] : vector<48x48xf32> to vector<48xf32>
    %80 = vector.shape_cast %79 : vector<48xf32> to vector<48x1xf32>
    %81 = tpu.reciprocal %80 {approx = true} : vector<48x1xf32> -> vector<48x1xf32>
    %82 = vector.broadcast %81 : vector<48x1xf32> to vector<48x48xf32>
    %83 = arith.mulf %78, %82 : vector<48x48xf32>
    %84 = arith.truncf %83 : vector<48x48xf32> to vector<48x48xbf16>
    %85 = arith.truncf %69 : vector<48x64xf32> to vector<48x64xbf16>
    %cst_25 = arith.constant dense<0.000000e+00> : vector<48x64xf32>
    %86 = tpu.matmul %84, %85, %cst_25 {dimension_numbers = #tpu.dot_dimension_numbers<[1], [0], [0], [1], [0, 0, 1, 1], [], []>} : vector<48x48xbf16>, vector<48x64xbf16>, vector<48x64xf32> -> vector<48x64xf32>
    %87 = tpu.concatenate %66, %86 in 1 : vector<48x64xf32>, vector<48x64xf32> -> vector<48x128xf32>
    %88 = arith.truncf %87 : vector<48x128xf32> to vector<48x128xbf16>
    %c0_26 = arith.constant 0 : index
    %c0_27 = arith.constant 0 : index
    %c0_28 = arith.constant 0 : index
    %89 = vector.load %arg5[%c0_26, %c0_27, %c0_28] : memref<2x128x128xbf16, #tpu.memory_space<vmem>>, vector<1x128x128xbf16>
    %90 = vector.shape_cast %89 : vector<1x128x128xbf16> to vector<128x128xbf16>
    %cst_29 = arith.constant dense<0.000000e+00> : vector<48x128xf32>
    %91 = tpu.matmul %88, %90, %cst_29 {dimension_numbers = #tpu.dot_dimension_numbers<[1], [0], [0], [1], [0, 0, 1, 1], [], []>} : vector<48x128xbf16>, vector<128x128xbf16>, vector<48x128xf32> -> vector<48x128xf32>
    %92 = arith.addf %2, %91 : vector<48x128xf32>
    %c0_30 = arith.constant 0 : index
    %c0_31 = arith.constant 0 : index
    %c0_32 = arith.constant 0 : index
    %93 = vector.load %arg6[%c0_30, %c0_31, %c0_32] : memref<2x1x128xf32, #tpu.memory_space<vmem>>, vector<1x1x128xf32>
    %94 = vector.shape_cast %93 : vector<1x1x128xf32> to vector<1x128xf32>
    %95 = vector.broadcast %94 : vector<1x128xf32> to vector<48x128xf32>
    %96 = arith.addf %92, %95 : vector<48x128xf32>
    %cst_33 = arith.constant dense<0.000000e+00> : vector<48xf32>
    %97 = vector.multi_reduction <add>, %96, %cst_33 [1] : vector<48x128xf32> to vector<48xf32>
    %98 = vector.shape_cast %97 : vector<48xf32> to vector<48x1xf32>
    %cst_34 = arith.constant 1.280000e+02 : f32
    %99 = vector.broadcast %cst_34 : f32 to vector<48x1xf32>
    %100 = arith.divf %98, %99 : vector<48x1xf32>
    %101 = vector.broadcast %100 : vector<48x1xf32> to vector<48x128xf32>
    %102 = arith.subf %96, %101 : vector<48x128xf32>
    %103 = arith.mulf %102, %102 : vector<48x128xf32>
    %cst_35 = arith.constant dense<0.000000e+00> : vector<48xf32>
    %104 = vector.multi_reduction <add>, %103, %cst_35 [1] : vector<48x128xf32> to vector<48xf32>
    %105 = vector.shape_cast %104 : vector<48xf32> to vector<48x1xf32>
    %cst_36 = arith.constant 1.280000e+02 : f32
    %106 = vector.broadcast %cst_36 : f32 to vector<48x1xf32>
    %107 = arith.divf %105, %106 : vector<48x1xf32>
    %108 = vector.broadcast %100 : vector<48x1xf32> to vector<48x128xf32>
    %109 = arith.subf %96, %108 : vector<48x128xf32>
    %cst_37 = arith.constant 9.99999997E-7 : f32
    %110 = vector.broadcast %cst_37 : f32 to vector<48x1xf32>
    %111 = arith.addf %107, %110 : vector<48x1xf32>
    %112 = math.rsqrt %111 : vector<48x1xf32>
    %113 = vector.broadcast %112 : vector<48x1xf32> to vector<48x128xf32>
    %114 = arith.mulf %109, %113 : vector<48x128xf32>
    %115 = arith.truncf %114 : vector<48x128xf32> to vector<48x128xbf16>
    %c0_38 = arith.constant 0 : index
    %c0_39 = arith.constant 0 : index
    %c0_40 = arith.constant 0 : index
    %116 = vector.load %arg7[%c0_38, %c0_39, %c0_40] : memref<2x128x512xbf16, #tpu.memory_space<vmem>>, vector<1x128x512xbf16>
    %117 = vector.shape_cast %116 : vector<1x128x512xbf16> to vector<128x512xbf16>
    %cst_41 = arith.constant dense<0.000000e+00> : vector<48x512xf32>
    %118 = tpu.matmul %115, %117, %cst_41 {dimension_numbers = #tpu.dot_dimension_numbers<[1], [0], [0], [1], [0, 0, 1, 1], [], []>} : vector<48x128xbf16>, vector<128x512xbf16>, vector<48x512xf32> -> vector<48x512xf32>
    %c0_42 = arith.constant 0 : index
    %c0_43 = arith.constant 0 : index
    %c0_44 = arith.constant 0 : index
    %119 = vector.load %arg8[%c0_42, %c0_43, %c0_44] : memref<2x1x512xf32, #tpu.memory_space<vmem>>, vector<1x1x512xf32>
    %120 = vector.shape_cast %119 : vector<1x1x512xf32> to vector<1x512xf32>
    %121 = vector.broadcast %120 : vector<1x512xf32> to vector<48x512xf32>
    %122 = arith.addf %118, %121 : vector<48x512xf32>
    %123 = arith.mulf %122, %122 : vector<48x512xf32>
    %124 = arith.mulf %122, %123 : vector<48x512xf32>
    %cst_45 = arith.constant 4.471500e-02 : f32
    %125 = vector.broadcast %cst_45 : f32 to vector<48x512xf32>
    %126 = arith.mulf %125, %124 : vector<48x512xf32>
    %127 = arith.addf %122, %126 : vector<48x512xf32>
    %cst_46 = arith.constant 0.797884583 : f32
    %128 = vector.broadcast %cst_46 : f32 to vector<48x512xf32>
    %129 = arith.mulf %128, %127 : vector<48x512xf32>
    %130 = math.tanh %129 : vector<48x512xf32>
    %cst_47 = arith.constant 1.000000e+00 : f32
    %131 = vector.broadcast %cst_47 : f32 to vector<48x512xf32>
    %132 = arith.addf %131, %130 : vector<48x512xf32>
    %cst_48 = arith.constant 5.000000e-01 : f32
    %133 = vector.broadcast %cst_48 : f32 to vector<48x512xf32>
    %134 = arith.mulf %133, %132 : vector<48x512xf32>
    %135 = arith.mulf %122, %134 : vector<48x512xf32>
    %136 = arith.truncf %135 : vector<48x512xf32> to vector<48x512xbf16>
    %c0_49 = arith.constant 0 : index
    %c0_50 = arith.constant 0 : index
    %c0_51 = arith.constant 0 : index
    %137 = vector.load %arg9[%c0_49, %c0_50, %c0_51] : memref<2x512x128xbf16, #tpu.memory_space<vmem>>, vector<1x512x128xbf16>
    %138 = vector.shape_cast %137 : vector<1x512x128xbf16> to vector<512x128xbf16>
    %cst_52 = arith.constant dense<0.000000e+00> : vector<48x128xf32>
    %139 = tpu.matmul %136, %138, %cst_52 {dimension_numbers = #tpu.dot_dimension_numbers<[1], [0], [0], [1], [0, 0, 1, 1], [], []>} : vector<48x512xbf16>, vector<512x128xbf16>, vector<48x128xf32> -> vector<48x128xf32>
    %140 = arith.addf %96, %139 : vector<48x128xf32>
    %c0_53 = arith.constant 0 : index
    %c0_54 = arith.constant 0 : index
    %c0_55 = arith.constant 0 : index
    %141 = vector.load %arg10[%c0_53, %c0_54, %c0_55] : memref<2x1x128xf32, #tpu.memory_space<vmem>>, vector<1x1x128xf32>
    %142 = vector.shape_cast %141 : vector<1x1x128xf32> to vector<1x128xf32>
    %143 = vector.broadcast %142 : vector<1x128xf32> to vector<48x128xf32>
    %144 = arith.addf %140, %143 : vector<48x128xf32>
    %cst_56 = arith.constant dense<0.000000e+00> : vector<48xf32>
    %145 = vector.multi_reduction <add>, %144, %cst_56 [1] : vector<48x128xf32> to vector<48xf32>
    %146 = vector.shape_cast %145 : vector<48xf32> to vector<48x1xf32>
    %cst_57 = arith.constant 1.280000e+02 : f32
    %147 = vector.broadcast %cst_57 : f32 to vector<48x1xf32>
    %148 = arith.divf %146, %147 : vector<48x1xf32>
    %149 = vector.broadcast %148 : vector<48x1xf32> to vector<48x128xf32>
    %150 = arith.subf %144, %149 : vector<48x128xf32>
    %151 = arith.mulf %150, %150 : vector<48x128xf32>
    %cst_58 = arith.constant dense<0.000000e+00> : vector<48xf32>
    %152 = vector.multi_reduction <add>, %151, %cst_58 [1] : vector<48x128xf32> to vector<48xf32>
    %153 = vector.shape_cast %152 : vector<48xf32> to vector<48x1xf32>
    %cst_59 = arith.constant 1.280000e+02 : f32
    %154 = vector.broadcast %cst_59 : f32 to vector<48x1xf32>
    %155 = arith.divf %153, %154 : vector<48x1xf32>
    %156 = vector.broadcast %148 : vector<48x1xf32> to vector<48x128xf32>
    %157 = arith.subf %144, %156 : vector<48x128xf32>
    %cst_60 = arith.constant 9.99999997E-7 : f32
    %158 = vector.broadcast %cst_60 : f32 to vector<48x1xf32>
    %159 = arith.addf %155, %158 : vector<48x1xf32>
    %160 = math.rsqrt %159 : vector<48x1xf32>
    %161 = vector.broadcast %160 : vector<48x1xf32> to vector<48x128xf32>
    %162 = arith.mulf %157, %161 : vector<48x128xf32>
    %163 = arith.truncf %162 : vector<48x128xf32> to vector<48x128xbf16>
    %c1 = arith.constant 1 : index
    %c0_61 = arith.constant 0 : index
    %c0_62 = arith.constant 0 : index
    %164 = vector.load %arg3[%c1, %c0_61, %c0_62] : memref<2x128x384xbf16, #tpu.memory_space<vmem>>, vector<1x128x384xbf16>
    %165 = vector.shape_cast %164 : vector<1x128x384xbf16> to vector<128x384xbf16>
    %cst_63 = arith.constant dense<0.000000e+00> : vector<48x384xf32>
    %166 = tpu.matmul %163, %165, %cst_63 {dimension_numbers = #tpu.dot_dimension_numbers<[1], [0], [0], [1], [0, 0, 1, 1], [], []>} : vector<48x128xbf16>, vector<128x384xbf16>, vector<48x384xf32> -> vector<48x384xf32>
    %c1_64 = arith.constant 1 : index
    %c0_65 = arith.constant 0 : index
    %c0_66 = arith.constant 0 : index
    %167 = vector.load %arg4[%c1_64, %c0_65, %c0_66] : memref<2x1x384xf32, #tpu.memory_space<vmem>>, vector<1x1x384xf32>
    %168 = vector.shape_cast %167 : vector<1x1x384xf32> to vector<1x384xf32>
    %169 = vector.broadcast %168 : vector<1x384xf32> to vector<48x384xf32>
    %170 = arith.addf %166, %169 : vector<48x384xf32>
    %171 = vector.extract_strided_slice %170 {offsets = [0, 0], sizes = [48, 64], strides = [1, 1]} : vector<48x384xf32> to vector<48x64xf32>
    %172 = vector.extract_strided_slice %170 {offsets = [0, 128], sizes = [48, 64], strides = [1, 1]} : vector<48x384xf32> to vector<48x64xf32>
    %173 = vector.extract_strided_slice %170 {offsets = [0, 256], sizes = [48, 64], strides = [1, 1]} : vector<48x384xf32> to vector<48x64xf32>
    %174 = arith.truncf %171 : vector<48x64xf32> to vector<48x64xbf16>
    %175 = arith.truncf %172 : vector<48x64xf32> to vector<48x64xbf16>
    %cst_67 = arith.constant dense<0.000000e+00> : vector<48x48xf32>
    %176 = tpu.matmul %174, %175, %cst_67 {dimension_numbers = #tpu.dot_dimension_numbers<[1], [1], [0], [0], [0, 0, 1, 0], [], []>} : vector<48x64xbf16>, vector<48x64xbf16>, vector<48x48xf32> -> vector<48x48xf32>
    %177 = arith.addf %176, %20 : vector<48x48xf32>
    %cst_68 = arith.constant dense<0xFF800000> : vector<48xf32>
    %178 = vector.multi_reduction <maximumf>, %177, %cst_68 [1] : vector<48x48xf32> to vector<48xf32>
    %179 = vector.shape_cast %178 : vector<48xf32> to vector<48x1xf32>
    %180 = vector.broadcast %179 : vector<48x1xf32> to vector<48x48xf32>
    %181 = arith.subf %177, %180 : vector<48x48xf32>
    %182 = math.exp %181 : vector<48x48xf32>
    %cst_69 = arith.constant dense<0.000000e+00> : vector<48xf32>
    %183 = vector.multi_reduction <add>, %182, %cst_69 [1] : vector<48x48xf32> to vector<48xf32>
    %184 = vector.shape_cast %183 : vector<48xf32> to vector<48x1xf32>
    %185 = tpu.reciprocal %184 {approx = true} : vector<48x1xf32> -> vector<48x1xf32>
    %186 = vector.broadcast %185 : vector<48x1xf32> to vector<48x48xf32>
    %187 = arith.mulf %182, %186 : vector<48x48xf32>
    %188 = arith.truncf %187 : vector<48x48xf32> to vector<48x48xbf16>
    %189 = arith.truncf %173 : vector<48x64xf32> to vector<48x64xbf16>
    %cst_70 = arith.constant dense<0.000000e+00> : vector<48x64xf32>
    %190 = tpu.matmul %188, %189, %cst_70 {dimension_numbers = #tpu.dot_dimension_numbers<[1], [0], [0], [1], [0, 0, 1, 1], [], []>} : vector<48x48xbf16>, vector<48x64xbf16>, vector<48x64xf32> -> vector<48x64xf32>
    %191 = vector.extract_strided_slice %170 {offsets = [0, 64], sizes = [48, 64], strides = [1, 1]} : vector<48x384xf32> to vector<48x64xf32>
    %192 = vector.extract_strided_slice %170 {offsets = [0, 192], sizes = [48, 64], strides = [1, 1]} : vector<48x384xf32> to vector<48x64xf32>
    %193 = vector.extract_strided_slice %170 {offsets = [0, 320], sizes = [48, 64], strides = [1, 1]} : vector<48x384xf32> to vector<48x64xf32>
    %194 = arith.truncf %191 : vector<48x64xf32> to vector<48x64xbf16>
    %195 = arith.truncf %192 : vector<48x64xf32> to vector<48x64xbf16>
    %cst_71 = arith.constant dense<0.000000e+00> : vector<48x48xf32>
    %196 = tpu.matmul %194, %195, %cst_71 {dimension_numbers = #tpu.dot_dimension_numbers<[1], [1], [0], [0], [0, 0, 1, 0], [], []>} : vector<48x64xbf16>, vector<48x64xbf16>, vector<48x48xf32> -> vector<48x48xf32>
    %197 = arith.addf %196, %20 : vector<48x48xf32>
    %cst_72 = arith.constant dense<0xFF800000> : vector<48xf32>
    %198 = vector.multi_reduction <maximumf>, %197, %cst_72 [1] : vector<48x48xf32> to vector<48xf32>
    %199 = vector.shape_cast %198 : vector<48xf32> to vector<48x1xf32>
    %200 = vector.broadcast %199 : vector<48x1xf32> to vector<48x48xf32>
    %201 = arith.subf %197, %200 : vector<48x48xf32>
    %202 = math.exp %201 : vector<48x48xf32>
    %cst_73 = arith.constant dense<0.000000e+00> : vector<48xf32>
    %203 = vector.multi_reduction <add>, %202, %cst_73 [1] : vector<48x48xf32> to vector<48xf32>
    %204 = vector.shape_cast %203 : vector<48xf32> to vector<48x1xf32>
    %205 = tpu.reciprocal %204 {approx = true} : vector<48x1xf32> -> vector<48x1xf32>
    %206 = vector.broadcast %205 : vector<48x1xf32> to vector<48x48xf32>
    %207 = arith.mulf %202, %206 : vector<48x48xf32>
    %208 = arith.truncf %207 : vector<48x48xf32> to vector<48x48xbf16>
    %209 = arith.truncf %193 : vector<48x64xf32> to vector<48x64xbf16>
    %cst_74 = arith.constant dense<0.000000e+00> : vector<48x64xf32>
    %210 = tpu.matmul %208, %209, %cst_74 {dimension_numbers = #tpu.dot_dimension_numbers<[1], [0], [0], [1], [0, 0, 1, 1], [], []>} : vector<48x48xbf16>, vector<48x64xbf16>, vector<48x64xf32> -> vector<48x64xf32>
    %211 = tpu.concatenate %190, %210 in 1 : vector<48x64xf32>, vector<48x64xf32> -> vector<48x128xf32>
    %212 = arith.truncf %211 : vector<48x128xf32> to vector<48x128xbf16>
    %c1_75 = arith.constant 1 : index
    %c0_76 = arith.constant 0 : index
    %c0_77 = arith.constant 0 : index
    %213 = vector.load %arg5[%c1_75, %c0_76, %c0_77] : memref<2x128x128xbf16, #tpu.memory_space<vmem>>, vector<1x128x128xbf16>
    %214 = vector.shape_cast %213 : vector<1x128x128xbf16> to vector<128x128xbf16>
    %cst_78 = arith.constant dense<0.000000e+00> : vector<48x128xf32>
    %215 = tpu.matmul %212, %214, %cst_78 {dimension_numbers = #tpu.dot_dimension_numbers<[1], [0], [0], [1], [0, 0, 1, 1], [], []>} : vector<48x128xbf16>, vector<128x128xbf16>, vector<48x128xf32> -> vector<48x128xf32>
    %216 = arith.addf %144, %215 : vector<48x128xf32>
    %c1_79 = arith.constant 1 : index
    %c0_80 = arith.constant 0 : index
    %c0_81 = arith.constant 0 : index
    %217 = vector.load %arg6[%c1_79, %c0_80, %c0_81] : memref<2x1x128xf32, #tpu.memory_space<vmem>>, vector<1x1x128xf32>
    %218 = vector.shape_cast %217 : vector<1x1x128xf32> to vector<1x128xf32>
    %219 = vector.broadcast %218 : vector<1x128xf32> to vector<48x128xf32>
    %220 = arith.addf %216, %219 : vector<48x128xf32>
    %cst_82 = arith.constant dense<0.000000e+00> : vector<48xf32>
    %221 = vector.multi_reduction <add>, %220, %cst_82 [1] : vector<48x128xf32> to vector<48xf32>
    %222 = vector.shape_cast %221 : vector<48xf32> to vector<48x1xf32>
    %cst_83 = arith.constant 1.280000e+02 : f32
    %223 = vector.broadcast %cst_83 : f32 to vector<48x1xf32>
    %224 = arith.divf %222, %223 : vector<48x1xf32>
    %225 = vector.broadcast %224 : vector<48x1xf32> to vector<48x128xf32>
    %226 = arith.subf %220, %225 : vector<48x128xf32>
    %227 = arith.mulf %226, %226 : vector<48x128xf32>
    %cst_84 = arith.constant dense<0.000000e+00> : vector<48xf32>
    %228 = vector.multi_reduction <add>, %227, %cst_84 [1] : vector<48x128xf32> to vector<48xf32>
    %229 = vector.shape_cast %228 : vector<48xf32> to vector<48x1xf32>
    %cst_85 = arith.constant 1.280000e+02 : f32
    %230 = vector.broadcast %cst_85 : f32 to vector<48x1xf32>
    %231 = arith.divf %229, %230 : vector<48x1xf32>
    %232 = vector.broadcast %224 : vector<48x1xf32> to vector<48x128xf32>
    %233 = arith.subf %220, %232 : vector<48x128xf32>
    %cst_86 = arith.constant 9.99999997E-7 : f32
    %234 = vector.broadcast %cst_86 : f32 to vector<48x1xf32>
    %235 = arith.addf %231, %234 : vector<48x1xf32>
    %236 = math.rsqrt %235 : vector<48x1xf32>
    %237 = vector.broadcast %236 : vector<48x1xf32> to vector<48x128xf32>
    %238 = arith.mulf %233, %237 : vector<48x128xf32>
    %239 = arith.truncf %238 : vector<48x128xf32> to vector<48x128xbf16>
    %c1_87 = arith.constant 1 : index
    %c0_88 = arith.constant 0 : index
    %c0_89 = arith.constant 0 : index
    %240 = vector.load %arg7[%c1_87, %c0_88, %c0_89] : memref<2x128x512xbf16, #tpu.memory_space<vmem>>, vector<1x128x512xbf16>
    %241 = vector.shape_cast %240 : vector<1x128x512xbf16> to vector<128x512xbf16>
    %cst_90 = arith.constant dense<0.000000e+00> : vector<48x512xf32>
    %242 = tpu.matmul %239, %241, %cst_90 {dimension_numbers = #tpu.dot_dimension_numbers<[1], [0], [0], [1], [0, 0, 1, 1], [], []>} : vector<48x128xbf16>, vector<128x512xbf16>, vector<48x512xf32> -> vector<48x512xf32>
    %c1_91 = arith.constant 1 : index
    %c0_92 = arith.constant 0 : index
    %c0_93 = arith.constant 0 : index
    %243 = vector.load %arg8[%c1_91, %c0_92, %c0_93] : memref<2x1x512xf32, #tpu.memory_space<vmem>>, vector<1x1x512xf32>
    %244 = vector.shape_cast %243 : vector<1x1x512xf32> to vector<1x512xf32>
    %245 = vector.broadcast %244 : vector<1x512xf32> to vector<48x512xf32>
    %246 = arith.addf %242, %245 : vector<48x512xf32>
    %247 = arith.mulf %246, %246 : vector<48x512xf32>
    %248 = arith.mulf %246, %247 : vector<48x512xf32>
    %cst_94 = arith.constant 4.471500e-02 : f32
    %249 = vector.broadcast %cst_94 : f32 to vector<48x512xf32>
    %250 = arith.mulf %249, %248 : vector<48x512xf32>
    %251 = arith.addf %246, %250 : vector<48x512xf32>
    %cst_95 = arith.constant 0.797884583 : f32
    %252 = vector.broadcast %cst_95 : f32 to vector<48x512xf32>
    %253 = arith.mulf %252, %251 : vector<48x512xf32>
    %254 = math.tanh %253 : vector<48x512xf32>
    %cst_96 = arith.constant 1.000000e+00 : f32
    %255 = vector.broadcast %cst_96 : f32 to vector<48x512xf32>
    %256 = arith.addf %255, %254 : vector<48x512xf32>
    %cst_97 = arith.constant 5.000000e-01 : f32
    %257 = vector.broadcast %cst_97 : f32 to vector<48x512xf32>
    %258 = arith.mulf %257, %256 : vector<48x512xf32>
    %259 = arith.mulf %246, %258 : vector<48x512xf32>
    %260 = arith.truncf %259 : vector<48x512xf32> to vector<48x512xbf16>
    %c1_98 = arith.constant 1 : index
    %c0_99 = arith.constant 0 : index
    %c0_100 = arith.constant 0 : index
    %261 = vector.load %arg9[%c1_98, %c0_99, %c0_100] : memref<2x512x128xbf16, #tpu.memory_space<vmem>>, vector<1x512x128xbf16>
    %262 = vector.shape_cast %261 : vector<1x512x128xbf16> to vector<512x128xbf16>
    %cst_101 = arith.constant dense<0.000000e+00> : vector<48x128xf32>
    %263 = tpu.matmul %260, %262, %cst_101 {dimension_numbers = #tpu.dot_dimension_numbers<[1], [0], [0], [1], [0, 0, 1, 1], [], []>} : vector<48x512xbf16>, vector<512x128xbf16>, vector<48x128xf32> -> vector<48x128xf32>
    %264 = arith.addf %220, %263 : vector<48x128xf32>
    %c1_102 = arith.constant 1 : index
    %c0_103 = arith.constant 0 : index
    %c0_104 = arith.constant 0 : index
    %265 = vector.load %arg10[%c1_102, %c0_103, %c0_104] : memref<2x1x128xf32, #tpu.memory_space<vmem>>, vector<1x1x128xf32>
    %266 = vector.shape_cast %265 : vector<1x1x128xf32> to vector<1x128xf32>
    %267 = vector.broadcast %266 : vector<1x128xf32> to vector<48x128xf32>
    %268 = arith.addf %264, %267 : vector<48x128xf32>
    %269 = vector.extract_strided_slice %268 {offsets = [0, 0], sizes = [1, 128], strides = [1, 1]} : vector<48x128xf32> to vector<1x128xf32>
    %270 = vector.extract_strided_slice %268 {offsets = [24, 0], sizes = [1, 128], strides = [1, 1]} : vector<48x128xf32> to vector<1x128xf32>
    %271 = tpu.concatenate %269, %270 in 0 : vector<1x128xf32>, vector<1x128xf32> -> vector<2x128xf32>
    %c0_105 = arith.constant 0 : index
    %c0_106 = arith.constant 0 : index
    %272 = vector.load %arg11[%c0_105, %c0_106] : memref<2x128xf32, #tpu.memory_space<vmem>>, vector<2x128xf32>
    tpu.vector_store %arg11[%c0_105, %c0_106], %271 {strides = array<i32>} : memref<2x128xf32, #tpu.memory_space<vmem>>, vector<2x128xf32>,
    return
  }
  func.func @transform_0(%arg0: i32) -> (i32, i32) {
    %c0_i32 = arith.constant 0 : i32
    %c0_i32_0 = arith.constant 0 : i32
    %c0_i32_1 = arith.constant 0 : i32
    return %c0_i32, %c0_i32_0 : i32, i32
  }
  func.func @transform_1(%arg0: i32) -> (i32, i32) {
    %c0_i32 = arith.constant 0 : i32
    %c0_i32_0 = arith.constant 0 : i32
    %c0_i32_1 = arith.constant 0 : i32
    return %c0_i32, %c0_i32_0 : i32, i32
  }
  func.func @transform_2(%arg0: i32) -> (i32, i32, i32) {
    %c0_i32 = arith.constant 0 : i32
    %c0_i32_0 = arith.constant 0 : i32
    %c0_i32_1 = arith.constant 0 : i32
    %c0_i32_2 = arith.constant 0 : i32
    return %c0_i32, %c0_i32_0, %c0_i32_1 : i32, i32, i32
  }
  func.func @transform_3(%arg0: i32) -> (i32, i32, i32) {
    %c0_i32 = arith.constant 0 : i32
    %c0_i32_0 = arith.constant 0 : i32
    %c0_i32_1 = arith.constant 0 : i32
    %c0_i32_2 = arith.constant 0 : i32
    return %c0_i32, %c0_i32_0, %c0_i32_1 : i32, i32, i32
  }
  func.func @transform_4(%arg0: i32) -> (i32, i32, i32) {
    %c0_i32 = arith.constant 0 : i32
    %c0_i32_0 = arith.constant 0 : i32
    %c0_i32_1 = arith.constant 0 : i32
    %c0_i32_2 = arith.constant 0 : i32
    return %c0_i32, %c0_i32_0, %c0_i32_1 : i32, i32, i32
  }
  func.func @transform_5(%arg0: i32) -> (i32, i32, i32) {
    %c0_i32 = arith.constant 0 : i32
    %c0_i32_0 = arith.constant 0 : i32
    %c0_i32_1 = arith.constant 0 : i32
    %c0_i32_2 = arith.constant 0 : i32
    return %c0_i32, %c0_i32_0, %c0_i32_1 : i32, i32, i32
  }
  func.func @transform_6(%arg0: i32) -> (i32, i32, i32) {
    %c0_i32 = arith.constant 0 : i32
    %c0_i32_0 = arith.constant 0 : i32
    %c0_i32_1 = arith.constant 0 : i32
    %c0_i32_2 = arith.constant 0 : i32
    return %c0_i32, %c0_i32_0, %c0_i32_1 : i32, i32, i32
  }
  func.func @transform_7(%arg0: i32) -> (i32, i32, i32) {
    %c0_i32 = arith.constant 0 : i32
    %c0_i32_0 = arith.constant 0 : i32
    %c0_i32_1 = arith.constant 0 : i32
    %c0_i32_2 = arith.constant 0 : i32
    return %c0_i32, %c0_i32_0, %c0_i32_1 : i32, i32, i32
  }
  func.func @transform_8(%arg0: i32) -> (i32, i32, i32) {
    %c0_i32 = arith.constant 0 : i32
    %c0_i32_0 = arith.constant 0 : i32
    %c0_i32_1 = arith.constant 0 : i32
    %c0_i32_2 = arith.constant 0 : i32
    return %c0_i32, %c0_i32_0, %c0_i32_1 : i32, i32, i32
  }
  func.func @transform_9(%arg0: i32) -> (i32, i32, i32) {
    %c0_i32 = arith.constant 0 : i32
    %c0_i32_0 = arith.constant 0 : i32
    %c0_i32_1 = arith.constant 0 : i32
    %c0_i32_2 = arith.constant 0 : i32
    return %c0_i32, %c0_i32_0, %c0_i32_1 : i32, i32, i32
  }
  func.func @transform_10(%arg0: i32) -> (i32, i32) {
    %c0_i32 = arith.constant 0 : i32
    %c0_i32_0 = arith.constant 0 : i32
    %c0_i32_1 = arith.constant 0 : i32
    return %c0_i32, %c0_i32_0 : i32, i32
  }
}

</mosaic_0001>

<llo_original>
// kernel: squeeze.1
$region0: #{squeeze.1}
  %s0 = inlined_call_operand.vmem [shape: bf16[1,3,16,16], index: 0, kind: input, shape index: {}]
  %s1 = inlined_call_operand.vmem [shape: bf16[1,768], index: 1, kind: output, shape index: {}]
  $region1: #{squeeze.1} parent=0
    #allocation0 [shape = 'u8[24576]{0}', space=vmem, size = 0x6000, scoped, tag = 'scoped mem for output reshape']
    #allocation1 [shape = 'u8[24576]{0}', space=vmem, size = 0x6000, scoped, tag = 'scoped mem for input reshape']
    %s3 = ssub.s32 256, 1
    %s4 = scalar_lea.vmem %s0, 20
    %s5 = sshrl.u32 %s3, 1
    %s6 = sor.u32 %s3, %s5
    %s7 = sand.u32 %s6, 85
    %s8 = sshrl.u32 %s7, 1
    %s9 = sor.u32 %s7, %s8
    %s10 = sand.u32 51, %s9
    %s11 = sshrl.u32 %s10, 2
    %s12 = sor.u32 %s10, %s11
    %s13 = sand.u32 15, %s12
    %v14 = vld [vmem:[%s4] sm:%s13]
    %v15 = vunpack.c.l.bf16 %v14
    %v16 = vunpack.c.h.bf16 %v14
    %s17 = scalar_lea.vmem [#allocation1], 40
    %18 = vst [vmem:[%s17] sm:%s3] %v15
    %s19 = scalar_lea.vmem %s0, 16
    %s20 = sshrl.u32 %s3, 1
    %s21 = sor.u32 %s3, %s20
    %s22 = sand.u32 %s21, 85
    %s23 = sshrl.u32 %s22, 1
    %s24 = sor.u32 %s22, %s23
    %s25 = sand.u32 51, %s24
    %s26 = sshrl.u32 %s25, 2
    %s27 = sor.u32 %s25, %s26
    %s28 = sand.u32 15, %s27
    %v29 = vld [vmem:[%s19] sm:%s28]
    %v30 = vunpack.c.l.bf16 %v29
    %v31 = vunpack.c.h.bf16 %v29
    %s32 = scalar_lea.vmem [#allocation1], 32
    %33 = vst [vmem:[%s32] sm:%s3] %v30
    %s34 = scalar_lea.vmem %s0, 12
    %s35 = sshrl.u32 %s3, 1
    %s36 = sor.u32 %s3, %s35
    %s37 = sand.u32 %s36, 85
    %s38 = sshrl.u32 %s37, 1
    %s39 = sor.u32 %s37, %s38
    %s40 = sand.u32 51, %s39
    %s41 = sshrl.u32 %s40, 2
    %s42 = sor.u32 %s40, %s41
    %s43 = sand.u32 15, %s42
    %v44 = vld [vmem:[%s34] sm:%s43]
    %v45 = vunpack.c.l.bf16 %v44
    %v46 = vunpack.c.h.bf16 %v44
    %s47 = scalar_lea.vmem [#allocation1], 24
    %48 = vst [vmem:[%s47] sm:%s3] %v45
    %s49 = scalar_lea.vmem %s0, 8
    %s50 = sshrl.u32 %s3, 1
    %s51 = sor.u32 %s3, %s50
    %s52 = sand.u32 %s51, 85
    %s53 = sshrl.u32 %s52, 1
    %s54 = sor.u32 %s52, %s53
    %s55 = sand.u32 51, %s54
    %s56 = sshrl.u32 %s55, 2
    %s57 = sor.u32 %s55, %s56
    %s58 = sand.u32 15, %s57
    %v59 = vld [vmem:[%s49] sm:%s58]
    %v60 = vunpack.c.l.bf16 %v59
    %v61 = vunpack.c.h.bf16 %v59
    %s62 = scalar_lea.vmem [#allocation1], 16
    %63 = vst [vmem:[%s62] sm:%s3] %v60
    %s64 = scalar_lea.vmem %s0, 4
    %s65 = sshrl.u32 %s3, 1
    %s66 = sor.u32 %s3, %s65
    %s67 = sand.u32 %s66, 85
    %s68 = sshrl.u32 %s67, 1
    %s69 = sor.u32 %s67, %s68
    %s70 = sand.u32 51, %s69
    %s71 = sshrl.u32 %s70, 2
    %s72 = sor.u32 %s70, %s71
    %s73 = sand.u32 15, %s72
    %v74 = vld [vmem:[%s64] sm:%s73]
    %v75 = vunpack.c.l.bf16 %v74
    %v76 = vunpack.c.h.bf16 %v74
    %s77 = scalar_lea.vmem [#allocation1], 8
    %78 = vst [vmem:[%s77] sm:%s3] %v75
    %s79 = sshrl.u32 %s3, 1
    %s80 = sor.u32 %s3, %s79
    %s81 = sand.u32 %s80, 85
    %s82 = sshrl.u32 %s81, 1
    %s83 = sor.u32 %s81, %s82
    %s84 = sand.u32 51, %s83
    %s85 = sshrl.u32 %s84, 2
    %s86 = sor.u32 %s84, %s85
    %s87 = sand.u32 15, %s86
    %v88 = vld [vmem:[%s0] sm:%s87]
    %v89 = vunpack.c.l.bf16 %v88
    %v90 = vunpack.c.h.bf16 %v88
    %91 = vst [vmem:[#allocation1] sm:%s3] %v89
    %v92 = vld [vmem:[#allocation1] ss:$8 sm:$0xf]
    %s93 = smov 48
    %v94 = vld [vmem:[#allocation1] ss:$8 sm:%s93]
    %vm95 = vcmask 1045508
    %v96 = vsel %vm95, %v94, %v92
    %vm97 = vcmask 130048
    %98 = vst.msk [vmem:[#allocation0] ss:$8 sm:$0xf] %vm97, %v96
    %99 = vst.msk [vmem:[#allocation0] ss:$8 sm:$0x30] %vm97, %v96
    %s100 = scalar_lea.vmem [#allocation1], 7
    %v101 = vld [vmem:[%s100] ss:$8 sm:$0xf]
    %s102 = scalar_lea.vmem [#allocation1], 7
    %s103 = smov 48
    %v104 = vld [vmem:[%s102] ss:$8 sm:%s103]
    %vm105 = vcmask 1045508
    %v106 = vsel %vm105, %v104, %v101
    %107 = vrot.lane.b32.xlu0 %v106, 112
    %v108 = vpop.permute.xlu0 %107
    %vm109 = vcmask 1048448
    %110 = vst.msk [vmem:[#allocation0] ss:$8 sm:$0xf] %vm109, %v108
    %111 = vst.msk [vmem:[#allocation0] ss:$8 sm:$0x30] %vm109, %v108
    %s112 = scalar_lea.vmem [#allocation1], 6
    %v113 = vld [vmem:[%s112] ss:$8 sm:$0xf]
    %s114 = scalar_lea.vmem [#allocation1], 6
    %s115 = smov 48
    %v116 = vld [vmem:[%s114] ss:$8 sm:%s115]
    %vm117 = vcmask 1045508
    %v118 = vsel %vm117, %v116, %v113
    %119 = vrot.lane.b32.xlu0 %v118, 96
    %v120 = vpop.permute.xlu0 %119
    %vm121 = vcmask 917248
    %122 = vst.msk [vmem:[#allocation0] ss:$8 sm:$0xf] %vm121, %v120
    %123 = vst.msk [vmem:[#allocation0] ss:$8 sm:$0x30] %vm121, %v120
    %s124 = scalar_lea.vmem [#allocation1], 5
    %v125 = vld [vmem:[%s124] ss:$8 sm:$0xf]
    %s126 = scalar_lea.vmem [#allocation1], 5
    %s127 = smov 48
    %v128 = vld [vmem:[%s126] ss:$8 sm:%s127]
    %vm129 = vcmask 1045508
    %v130 = vsel %vm129, %v128, %v125
    %131 = vrot.lane.b32.xlu0 %v130, 80
    %v132 = vpop.permute.xlu0 %131
    %vm133 = vcmask 786048
    %134 = vst.msk [vmem:[#allocation0] ss:$8 sm:$0xf] %vm133, %v132
    %135 = vst.msk [vmem:[#allocation0] ss:$8 sm:$0x30] %vm133, %v132
    %s136 = scalar_lea.vmem [#allocation1], 4
    %v137 = vld [vmem:[%s136] ss:$8 sm:$0xf]
    %s138 = scalar_lea.vmem [#allocation1], 4
    %s139 = smov 48
    %v140 = vld [vmem:[%s138] ss:$8 sm:%s139]
    %vm141 = vcmask 1045508
    %v142 = vsel %vm141, %v140, %v137
    %143 = vrot.lane.b32.xlu0 %v142, 64
    %v144 = vpop.permute.xlu0 %143
    %vm145 = vcmask 654848
    %146 = vst.msk [vmem:[#allocation0] ss:$8 sm:$0xf] %vm145, %v144
    %147 = vst.msk [vmem:[#allocation0] ss:$8 sm:$0x30] %vm145, %v144
    %s148 = scalar_lea.vmem [#allocation1], 3
    %v149 = vld [vmem:[%s148] ss:$8 sm:$0xf]
    %s150 = scalar_lea.vmem [#allocation1], 3
    %s151 = smov 48
    %v152 = vld [vmem:[%s150] ss:$8 sm:%s151]
    %vm153 = vcmask 1045508
    %v154 = vsel %vm153, %v152, %v149
    %155 = vrot.lane.b32.xlu0 %v154, 48
    %v156 = vpop.permute.xlu0 %155
    %vm157 = vcmask 523648
    %158 = vst.msk [vmem:[#allocation0] ss:$8 sm:$0xf] %vm157, %v156
    %159 = vst.msk [vmem:[#allocation0] ss:$8 sm:$0x30] %vm157, %v156
    %s160 = scalar_lea.vmem [#allocation1], 2
    %v161 = vld [vmem:[%s160] ss:$8 sm:$0xf]
    %s162 = scalar_lea.vmem [#allocation1], 2
    %s163 = smov 48
    %v164 = vld [vmem:[%s162] ss:$8 sm:%s163]
    %vm165 = vcmask 1045508
    %v166 = vsel %vm165, %v164, %v161
    %167 = vrot.lane.b32.xlu0 %v166, 32
    %v168 = vpop.permute.xlu0 %167
    %vm169 = vcmask 392448
    %170 = vst.msk [vmem:[#allocation0] ss:$8 sm:$0xf] %vm169, %v168
    %171 = vst.msk [vmem:[#allocation0] ss:$8 sm:$0x30] %vm169, %v168
    %s172 = scalar_lea.vmem [#allocation1], 1
    %v173 = vld [vmem:[%s172] ss:$8 sm:$0xf]
    %s174 = scalar_lea.vmem [#allocation1], 1
    %s175 = smov 48
    %v176 = vld [vmem:[%s174] ss:$8 sm:%s175]
    %vm177 = vcmask 1045508
    %v178 = vsel %vm177, %v176, %v173
    %179 = vrot.lane.b32.xlu0 %v178, 16
    %v180 = vpop.permute.xlu0 %179
    %vm181 = vcmask 261248
    %182 = vst.msk [vmem:[#allocation0] ss:$8 sm:$0xf] %vm181, %v180
    %183 = vst.msk [vmem:[#allocation0] ss:$8 sm:$0x30] %vm181, %v180
    %s185 = ssub.s32 4, 1
    %v186 = vld [vmem:[#allocation0] sm:%s185]
    %v187 = vpack.c.bf16 0.0, %v186
    %s189 = ssub.s32 2, 1
    %190 = vst [vmem:[%s1] sm:%s189] %v187
    %s191 = scalar_lea.vmem [#allocation0], 8
    %v192 = vld [vmem:[%s191] sm:%s185]
    %v193 = vpack.c.bf16 0.0, %v192
    %s195 = ssub.s32 2, 1
    %s196 = scalar_lea.vmem %s1, 1
    %197 = vst [vmem:[%s196] sm:%s195] %v193
    %s198 = scalar_lea.vmem [#allocation0], 16
    %v199 = vld [vmem:[%s198] sm:%s185]
    %v200 = vpack.c.bf16 0.0, %v199
    %s202 = ssub.s32 2, 1
    %s203 = scalar_lea.vmem %s1, 2
    %204 = vst [vmem:[%s203] sm:%s202] %v200
    %s205 = scalar_lea.vmem [#allocation0], 24
    %v206 = vld [vmem:[%s205] sm:%s185]
    %v207 = vpack.c.bf16 0.0, %v206
    %s209 = ssub.s32 2, 1
    %s210 = scalar_lea.vmem %s1, 3
    %211 = vst [vmem:[%s210] sm:%s209] %v207
    %s212 = scalar_lea.vmem [#allocation0], 32
    %v213 = vld [vmem:[%s212] sm:%s185]
    %v214 = vpack.c.bf16 0.0, %v213
    %s216 = ssub.s32 2, 1
    %s217 = scalar_lea.vmem %s1, 4
    %218 = vst [vmem:[%s217] sm:%s216] %v214
    %s219 = scalar_lea.vmem [#allocation0], 40
    %v220 = vld [vmem:[%s219] sm:%s185]
    %v221 = vpack.c.bf16 0.0, %v220
    %s223 = ssub.s32 2, 1
    %s224 = scalar_lea.vmem %s1, 5
    %225 = vst [vmem:[%s224] sm:%s223] %v221

// kernel: dino_loss.1
$region0: #{dino_loss.1}
  #allocation0 [shape = 'u32[]', space=smem, size = 0x4, offset = 0x4, fixed_abs, tag = 'smem constant byte address 0x4 - core index']
  #allocation1 [shape = 'u32[72,128]{1,0:T(1,128)}', space=vmem, size = 0x9000, scoped, tag = 'internal scratch']
  %s0 = inlined_call_operand.vmem [shape: f32[48,128], index: 0, kind: input, shape index: {}]
  %s1 = inlined_call_operand.vmem [shape: f32[48,128], index: 1, kind: input, shape index: {}]
  %s2 = inlined_call_operand.vmem [shape: bf16[2,128,384], index: 2, kind: input, shape index: {}]
  %s3 = inlined_call_operand.vmem [shape: f32[2,1,384], index: 3, kind: input, shape index: {}]
  %s4 = inlined_call_operand.vmem [shape: bf16[2,128,128], index: 4, kind: input, shape index: {}]
  %s5 = inlined_call_operand.vmem [shape: f32[2,1,128], index: 5, kind: input, shape index: {}]
  %s6 = inlined_call_operand.vmem [shape: bf16[2,128,512], index: 6, kind: input, shape index: {}]
  %s7 = inlined_call_operand.vmem [shape: f32[2,1,512], index: 7, kind: input, shape index: {}]
  %s8 = inlined_call_operand.vmem [shape: bf16[2,512,128], index: 8, kind: input, shape index: {}]
  %s9 = inlined_call_operand.vmem [shape: f32[2,1,128], index: 9, kind: input, shape index: {}]
  %s10 = inlined_call_operand.vmem [shape: f32[2,128], index: 10, kind: output, shape index: {}]
  %s11 = sld [smem:[#allocation0]]
  $region50: #{dino_loss.1} parent=0
    _
  %s13 = ssub.s32 1, %s11
  %s14 = scalar_select 0, %s13, %s11
  // Predicated region
  $region2: #{dino_loss.1} parent=0 // pred_check
    _
  $region3: #{dino_loss.1} parent=0 // pred_check_branch
    %16 = sbr.rel (0) target = $region5
  $region4: #{dino_loss.1} parent=0 // pred_region
    _
  $region5: #{dino_loss.1} parent=0 // pred_fallthru
    _
  // Predicated region
  $region6: #{dino_loss.1} parent=0 // pred_check
    _
  $region7: #{dino_loss.1} parent=0 // pred_check_branch
    %18 = sbr.rel (0) target = $region9
  $region8: #{dino_loss.1} parent=0 // pred_region
    _
  $region9: #{dino_loss.1} parent=0 // pred_fallthru
    _
  // Predicated region
  $region10: #{dino_loss.1} parent=0 // pred_check
    _
  $region11: #{dino_loss.1} parent=0 // pred_check_branch
    %20 = sbr.rel (0) target = $region13
  $region12: #{dino_loss.1} parent=0 // pred_region
    _
  $region13: #{dino_loss.1} parent=0 // pred_fallthru
    _
  // Predicated region
  $region14: #{dino_loss.1} parent=0 // pred_check
    _
  $region15: #{dino_loss.1} parent=0 // pred_check_branch
    %22 = sbr.rel (0) target = $region17
  $region16: #{dino_loss.1} parent=0 // pred_region
    _
  $region17: #{dino_loss.1} parent=0 // pred_fallthru
    _
  // Predicated region
  $region18: #{dino_loss.1} parent=0 // pred_check
    _
  $region19: #{dino_loss.1} parent=0 // pred_check_branch
    %24 = sbr.rel (0) target = $region21
  $region20: #{dino_loss.1} parent=0 // pred_region
    _
  $region21: #{dino_loss.1} parent=0 // pred_fallthru
    _
  // Predicated region
  $region22: #{dino_loss.1} parent=0 // pred_check
    _
  $region23: #{dino_loss.1} parent=0 // pred_check_branch
    %26 = sbr.rel (0) target = $region25
  $region24: #{dino_loss.1} parent=0 // pred_region
    _
  $region25: #{dino_loss.1} parent=0 // pred_fallthru
    _
  // Predicated region
  $region26: #{dino_loss.1} parent=0 // pred_check
    _
  $region27: #{dino_loss.1} parent=0 // pred_check_branch
    %28 = sbr.rel (0) target = $region29
  $region28: #{dino_loss.1} parent=0 // pred_region
    _
  $region29: #{dino_loss.1} parent=0 // pred_fallthru
    _
  // Predicated region
  $region30: #{dino_loss.1} parent=0 // pred_check
    _
  $region31: #{dino_loss.1} parent=0 // pred_check_branch
    %30 = sbr.rel (0) target = $region33
  $region32: #{dino_loss.1} parent=0 // pred_region
    _
  $region33: #{dino_loss.1} parent=0 // pred_fallthru
    _
  // Predicated region
  $region34: #{dino_loss.1} parent=0 // pred_check
    _
  $region35: #{dino_loss.1} parent=0 // pred_check_branch
    %32 = sbr.rel (0) target = $region37
  $region36: #{dino_loss.1} parent=0 // pred_region
    _
  $region37: #{dino_loss.1} parent=0 // pred_fallthru
    _
  // Predicated region
  $region38: #{dino_loss.1} parent=0 // pred_check
    _
  $region39: #{dino_loss.1} parent=0 // pred_check_branch
    %34 = sbr.rel (0) target = $region41
  $region40: #{dino_loss.1} parent=0 // pred_region
    _
  $region41: #{dino_loss.1} parent=0 // pred_fallthru
    _
  %v36 = vld [vmem:[%s0] sm:$0xff]
  %v37 = vld [vmem:[%s0 + $0x8] sm:$0xff]
  %v38 = vld [vmem:[%s0 + $0x10] sm:$0xff]
  %v39 = vld [vmem:[%s0 + $0x18] sm:$0xff]
  %v40 = vld [vmem:[%s0 + $0x20] sm:$0xff]
  %v41 = vld [vmem:[%s0 + $0x28] sm:$0xff]
  %v42 = vld [vmem:[%s1] sm:$0xff]
  %v43 = vld [vmem:[%s1 + $0x8] sm:$0xff]
  %v44 = vld [vmem:[%s1 + $0x10] sm:$0xff]
  %v45 = vld [vmem:[%s1 + $0x18] sm:$0xff]
  %v46 = vld [vmem:[%s1 + $0x20] sm:$0xff]
  %v47 = vld [vmem:[%s1 + $0x28] sm:$0xff]
  %v48 = vadd.f32 %v36, %v42
  %v49 = vadd.f32 %v37, %v43
  %v50 = vadd.f32 %v38, %v44
  %v51 = vadd.f32 %v39, %v45
  %v52 = vadd.f32 %v40, %v46
  %v53 = vadd.f32 %v41, %v47
  %v54 = vlaneseq
  %v55 = vshrl.u32 %v54, 7
  %v56 = vadd.s32 %v55, 8
  %v57 = vadd.s32 %v55, 16
  %v58 = vadd.s32 %v55, 24
  %v59 = vadd.s32 %v55, 32
  %v60 = vadd.s32 %v55, 40
  %v61 = vlaneseq
  %v62 = vand.u32 %v61, 127
  %vm63 = vcmp.lt.s32.totalorder %v55, 24
  %vm64 = vcmp.lt.s32.totalorder %v56, 24
  %vm65 = vcmp.lt.s32.totalorder %v57, 24
  %vm66 = vcmp.lt.s32.totalorder %v58, 24
  %vm67 = vcmp.lt.s32.totalorder %v59, 24
  %vm68 = vcmp.lt.s32.totalorder %v60, 24
  %vm69 = vcmp.lt.s32.totalorder %v62, 17
  %vm70 = vcmp.ge.s32.totalorder %v62, 24
  %vm71 = vcmp.lt.s32.totalorder %v62, 41
  %vm72 = vmand %vm70, %vm71
  %vm73 = vmand %vm63, %vm69
  %vm74 = vmand %vm64, %vm69
  %vm75 = vmand %vm65, %vm69
  %vm76 = vmand %vm66, %vm69
  %vm77 = vmand %vm67, %vm69
  %vm78 = vmand %vm68, %vm69
  %vm79 = vmxor %vm63, 1
  %vm80 = vmxor %vm64, 1
  %vm81 = vmxor %vm65, 1
  %vm82 = vmxor %vm66, 1
  %vm83 = vmxor %vm67, 1
  %vm84 = vmxor %vm68, 1
  %vm85 = vmand %vm79, %vm72
  %vm86 = vmand %vm80, %vm72
  %vm87 = vmand %vm81, %vm72
  %vm88 = vmand %vm82, %vm72
  %vm89 = vmand %vm83, %vm72
  %vm90 = vmand %vm84, %vm72
  %vm91 = vmor %vm73, %vm85
  %vm92 = vmor %vm74, %vm86
  %vm93 = vmor %vm75, %vm87
  %vm94 = vmor %vm76, %vm88
  %vm95 = vmor %vm77, %vm89
  %vm96 = vmor %vm78, %vm90
  %v97 = vsel %vm91, 0.0, -1e+30
  %v98 = vsel %vm92, 0.0, -1e+30
  %v99 = vsel %vm93, 0.0, -1e+30
  %v100 = vsel %vm94, 0.0, -1e+30
  %v101 = vsel %vm95, 0.0, -1e+30
  %v102 = vsel %vm96, 0.0, -1e+30
  %103 = vadd.xlane.f32.xlu0 %v48
  %v104 = vpop.xlane.xlu0 %103
  %105 = vadd.xlane.f32.xlu0 %v49
  %v106 = vpop.xlane.xlu0 %105
  %107 = vadd.xlane.f32.xlu0 %v50
  %v108 = vpop.xlane.xlu0 %107
  %109 = vadd.xlane.f32.xlu0 %v51
  %v110 = vpop.xlane.xlu0 %109
  %111 = vadd.xlane.f32.xlu0 %v52
  %v112 = vpop.xlane.xlu0 %111
  %113 = vadd.xlane.f32.xlu0 %v53
  %v114 = vpop.xlane.xlu0 %113
  %v115 = vrcp.pop 128.0
  %v116 = vmul.f32 128.0, %v115
  %v117 = vsub.f32 1.0, %v116
  %v118 = vmul.f32 %v115, %v117
  %v119 = vadd.f32 %v115, %v118
  %vm120 = vweird.f32 %v115
  %v121 = vsel %vm120, %v115, %v119
  %v122 = vmul.f32 %v104, %v121
  %v123 = vmul.f32 %v106, %v121
  %v124 = vmul.f32 %v108, %v121
  %v125 = vmul.f32 %v110, %v121
  %v126 = vmul.f32 %v112, %v121
  %v127 = vmul.f32 %v114, %v121
  %v128 = vsub.f32 %v48, %v122
  %v129 = vsub.f32 %v49, %v123
  %v130 = vsub.f32 %v50, %v124
  %v131 = vsub.f32 %v51, %v125
  %v132 = vsub.f32 %v52, %v126
  %v133 = vsub.f32 %v53, %v127
  %v134 = vmul.f32 %v128, %v128
  %v135 = vmul.f32 %v129, %v129
  %v136 = vmul.f32 %v130, %v130
  %v137 = vmul.f32 %v131, %v131
  %v138 = vmul.f32 %v132, %v132
  %v139 = vmul.f32 %v133, %v133
  %140 = vadd.xlane.f32.xlu0 %v134
  %v141 = vpop.xlane.xlu0 %140
  %142 = vadd.xlane.f32.xlu0 %v135
  %v143 = vpop.xlane.xlu0 %142
  %144 = vadd.xlane.f32.xlu0 %v136
  %v145 = vpop.xlane.xlu0 %144
  %146 = vadd.xlane.f32.xlu0 %v137
  %v147 = vpop.xlane.xlu0 %146
  %148 = vadd.xlane.f32.xlu0 %v138
  %v149 = vpop.xlane.xlu0 %148
  %150 = vadd.xlane.f32.xlu0 %v139
  %v151 = vpop.xlane.xlu0 %150
  %v152 = vmul.f32 %v141, %v121
  %v153 = vmul.f32 %v143, %v121
  %v154 = vmul.f32 %v145, %v121
  %v155 = vmul.f32 %v147, %v121
  %v156 = vmul.f32 %v149, %v121
  %v157 = vmul.f32 %v151, %v121
  %v158 = vadd.f32 %v152, 1e-06
  %v159 = vadd.f32 %v153, 1e-06
  %v160 = vadd.f32 %v154, 1e-06
  %v161 = vadd.f32 %v155, 1e-06
  %v162 = vadd.f32 %v156, 1e-06
  %v163 = vadd.f32 %v157, 1e-06
  %v164 = vrsqrt.pop %v158
  %v165 = vmul.f32 %v164, %v158
  %v166 = vmul.f32 %v165, %v164
  %v167 = vmul.f32 0.5, %v166
  %v168 = vsub.f32 1.5, %v167
  %v169 = vmul.f32 %v164, %v168
  %vm170 = vweird.f32 %v158
  %vm171 = vweird.f32 %v164
  %vm172 = vmor %vm170, %vm171
  %v173 = vsel %vm172, %v164, %v169
  %v174 = vrsqrt.pop %v159
  %v175 = vmul.f32 %v174, %v159
  %v176 = vmul.f32 %v175, %v174
  %v177 = vmul.f32 0.5, %v176
  %v178 = vsub.f32 1.5, %v177
  %v179 = vmul.f32 %v174, %v178
  %vm180 = vweird.f32 %v159
  %vm181 = vweird.f32 %v174
  %vm182 = vmor %vm180, %vm181
  %v183 = vsel %vm182, %v174, %v179
  %v184 = vrsqrt.pop %v160
  %v185 = vmul.f32 %v184, %v160
  %v186 = vmul.f32 %v185, %v184
  %v187 = vmul.f32 0.5, %v186
  %v188 = vsub.f32 1.5, %v187
  %v189 = vmul.f32 %v184, %v188
  %vm190 = vweird.f32 %v160
  %vm191 = vweird.f32 %v184
  %vm192 = vmor %vm190, %vm191
  %v193 = vsel %vm192, %v184, %v189
  %v194 = vrsqrt.pop %v161
  %v195 = vmul.f32 %v194, %v161
  %v196 = vmul.f32 %v195, %v194
  %v197 = vmul.f32 0.5, %v196
  %v198 = vsub.f32 1.5, %v197
  %v199 = vmul.f32 %v194, %v198
  %vm200 = vweird.f32 %v161
  %vm201 = vweird.f32 %v194
  %vm202 = vmor %vm200, %vm201
  %v203 = vsel %vm202, %v194, %v199
  %v204 = vrsqrt.pop %v162
  %v205 = vmul.f32 %v204, %v162
  %v206 = vmul.f32 %v205, %v204
  %v207 = vmul.f32 0.5, %v206
  %v208 = vsub.f32 1.5, %v207
  %v209 = vmul.f32 %v204, %v208
  %vm210 = vweird.f32 %v162
  %vm211 = vweird.f32 %v204
  %vm212 = vmor %vm210, %vm211
  %v213 = vsel %vm212, %v204, %v209
  %v214 = vrsqrt.pop %v163
  %v215 = vmul.f32 %v214, %v163
  %v216 = vmul.f32 %v215, %v214
  %v217 = vmul.f32 0.5, %v216
  %v218 = vsub.f32 1.5, %v217
  %v219 = vmul.f32 %v214, %v218
  %vm220 = vweird.f32 %v163
  %vm221 = vweird.f32 %v214
  %vm222 = vmor %vm220, %vm221
  %v223 = vsel %vm222, %v214, %v219
  %v224 = vmul.f32 %v128, %v173
  %v225 = vmul.f32 %v129, %v183
  %v226 = vmul.f32 %v130, %v193
  %v227 = vmul.f32 %v131, %v203
  %v228 = vmul.f32 %v132, %v213
  %v229 = vmul.f32 %v133, %v223
  %v230 = vpack.c.bf16 %v225, %v224
  %v231 = vpack.c.bf16 %v227, %v226
  %v232 = vpack.c.bf16 %v229, %v228
  %v233 = vld [vmem:[%s2] sm:$0xff]
  %v234 = vld [vmem:[%s2 + $0x8] sm:$0xf]
  %v235 = vld [vmem:[%s2 + $0xc] sm:$0xff]
  %v236 = vld [vmem:[%s2 + $0x14] sm:$0xf]
  %v237 = vld [vmem:[%s2 + $0x18] sm:$0xff]
  %v238 = vld [vmem:[%s2 + $0x20] sm:$0xf]
  %v239 = vld [vmem:[%s2 + $0x24] sm:$0xff]
  %v240 = vld [vmem:[%s2 + $0x2c] sm:$0xf]
  %v241 = vld [vmem:[%s2 + $0x30] sm:$0xff]
  %v242 = vld [vmem:[%s2 + $0x38] sm:$0xf]
  %v243 = vld [vmem:[%s2 + $0x3c] sm:$0xff]
  %v244 = vld [vmem:[%s2 + $0x44] sm:$0xf]
  %v245 = vld [vmem:[%s2 + $0x48] sm:$0xff]
  %v246 = vld [vmem:[%s2 + $0x50] sm:$0xf]
  %v247 = vld [vmem:[%s2 + $0x54] sm:$0xff]
  %v248 = vld [vmem:[%s2 + $0x5c] sm:$0xf]
  %v249 = vld [vmem:[%s2 + $0x60] sm:$0xff]
  %v250 = vld [vmem:[%s2 + $0x68] sm:$0xf]
  %v251 = vld [vmem:[%s2 + $0x6c] sm:$0xff]
  %v252 = vld [vmem:[%s2 + $0x74] sm:$0xf]
  %v253 = vld [vmem:[%s2 + $0x78] sm:$0xff]
  %v254 = vld [vmem:[%s2 + $0x80] sm:$0xf]
  %v255 = vld [vmem:[%s2 + $0x84] sm:$0xff]
  %v256 = vld [vmem:[%s2 + $0x8c] sm:$0xf]
  %v257 = vld [vmem:[%s2 + $0x90] sm:$0xff]
  %v258 = vld [vmem:[%s2 + $0x98] sm:$0xf]
  %v259 = vld [vmem:[%s2 + $0x9c] sm:$0xff]
  %v260 = vld [vmem:[%s2 + $0xa4] sm:$0xf]
  %v261 = vld [vmem:[%s2 + $0xa8] sm:$0xff]
  %v262 = vld [vmem:[%s2 + $0xb0] sm:$0xf]
  %v263 = vld [vmem:[%s2 + $0xb4] sm:$0xff]
  %v264 = vld [vmem:[%s2 + $0xbc] sm:$0xf]
  %v265 = vld [vmem:[%s3] sm:$0x7]
  %v267 = vperm.slane %v265, 0
  %v268 = vperm.slane %v265, 1
  %v269 = vperm.slane %v265, 2
  %v305 = vunpack.c.l.b16 %v233
  %v306 = vunpack.c.h.b16 %v233
  %v307 = vunpack.c.l.b16 %v234
  %v308 = vunpack.c.l.b16 %v235
  %v309 = vunpack.c.h.b16 %v235
  %v310 = vunpack.c.l.b16 %v236
  %v311 = vunpack.c.l.b16 %v237
  %v312 = vunpack.c.h.b16 %v237
  %v313 = vunpack.c.l.b16 %v238
  %v314 = vunpack.c.l.b16 %v239
  %v315 = vunpack.c.h.b16 %v239
  %v316 = vunpack.c.l.b16 %v240
  %v317 = vunpack.c.l.b16 %v241
  %v318 = vunpack.c.h.b16 %v241
  %v319 = vunpack.c.l.b16 %v242
  %v320 = vunpack.c.l.b16 %v243
  %v321 = vunpack.c.h.b16 %v243
  %v322 = vunpack.c.l.b16 %v244
  %v323 = vunpack.c.l.b16 %v245
  %v324 = vunpack.c.h.b16 %v245
  %v325 = vunpack.c.l.b16 %v246
  %v326 = vunpack.c.l.b16 %v247
  %v327 = vunpack.c.h.b16 %v247
  %v328 = vunpack.c.l.b16 %v248
  %v329 = vunpack.c.l.b16 %v249
  %v330 = vunpack.c.h.b16 %v249
  %v331 = vunpack.c.l.b16 %v250
  %v332 = vunpack.c.l.b16 %v251
  %v333 = vunpack.c.h.b16 %v251
  %v334 = vunpack.c.l.b16 %v252
  %v335 = vunpack.c.l.b16 %v253
  %v336 = vunpack.c.h.b16 %v253
  %v337 = vunpack.c.l.b16 %v254
  %v338 = vunpack.c.l.b16 %v255
  %v339 = vunpack.c.h.b16 %v255
  %v340 = vunpack.c.l.b16 %v256
  %v341 = vunpack.c.l.b16 %v257
  %v342 = vunpack.c.h.b16 %v257
  %v343 = vunpack.c.l.b16 %v258
  %v344 = vunpack.c.l.b16 %v259
  %v345 = vunpack.c.h.b16 %v259
  %v346 = vunpack.c.l.b16 %v260
  %v347 = vunpack.c.l.b16 %v261
  %v348 = vunpack.c.h.b16 %v261
  %v349 = vunpack.c.l.b16 %v262
  %v350 = vunpack.c.l.b16 %v263
  %v351 = vunpack.c.h.b16 %v263
  %v352 = vunpack.c.l.b16 %v264
  %v353 = vpack.c.b16 %v308, %v305
  %v354 = vpack.c.b16 %v309, %v306
  %v355 = vpack.c.b16 %v310, %v307
  %v356 = vpack.c.b16 %v314, %v311
  %v357 = vpack.c.b16 %v315, %v312
  %v358 = vpack.c.b16 %v316, %v313
  %v359 = vpack.c.b16 %v320, %v317
  %v360 = vpack.c.b16 %v321, %v318
  %v361 = vpack.c.b16 %v322, %v319
  %v362 = vpack.c.b16 %v326, %v323
  %v363 = vpack.c.b16 %v327, %v324
  %v364 = vpack.c.b16 %v328, %v325
  %v365 = vpack.c.b16 %v332, %v329
  %v366 = vpack.c.b16 %v333, %v330
  %v367 = vpack.c.b16 %v334, %v331
  %v368 = vpack.c.b16 %v338, %v335
  %v369 = vpack.c.b16 %v339, %v336
  %v370 = vpack.c.b16 %v340, %v337
  %v371 = vpack.c.b16 %v344, %v341
  %v372 = vpack.c.b16 %v345, %v342
  %v373 = vpack.c.b16 %v346, %v343
  %v374 = vpack.c.b16 %v350, %v347
  %v375 = vpack.c.b16 %v351, %v348
  %v376 = vpack.c.b16 %v352, %v349
  %401 = vmatpush.bf16.msra.mxu0 %v374
  %402 = vmatpush.bf16.msra.mxu0 %v371
  %403 = vmatpush.bf16.msra.mxu0 %v368
  %404 = vmatpush.bf16.msra.mxu0 %v365
  %405 = vmatpush.bf16.msra.mxu0 %v362
  %406 = vmatpush.bf16.msra.mxu0 %v359
  %407 = vmatpush.bf16.msra.mxu0 %v356
  %408 = vmatpush.bf16.msra.mxu0 %v353
  %409 = vmatmul.bf16.gmra.mxu0 %v230
  %v410 = vpop.f32.mrf.mxu0
  %v411 = vadd.f32 %v267, %v410
  %v412 = vpop.f32.mrf.mxu0
  %v413 = vadd.f32 %v267, %v412
  %414 = vmatmul.bf16.gmra.mxu0 %v231
  %v415 = vpop.f32.mrf.mxu0
  %v416 = vadd.f32 %v267, %v415
  %v417 = vpop.f32.mrf.mxu0
  %v418 = vadd.f32 %v267, %v417
  %419 = vmatmul.bf16.gmra.mxu0 %v232
  %v420 = vpop.f32.mrf.mxu0
  %v421 = vadd.f32 %v267, %v420
  %v422 = vpop.f32.mrf.mxu0
  %v423 = vadd.f32 %v267, %v422
  %424 = vdwg.mxu0
  %425 = vmatpush.bf16.msra.mxu0 %v375
  %426 = vmatpush.bf16.msra.mxu0 %v372
  %427 = vmatpush.bf16.msra.mxu0 %v369
  %428 = vmatpush.bf16.msra.mxu0 %v366
  %429 = vmatpush.bf16.msra.mxu0 %v363
  %430 = vmatpush.bf16.msra.mxu0 %v360
  %431 = vmatpush.bf16.msra.mxu0 %v357
  %432 = vmatpush.bf16.msra.mxu0 %v354
  %433 = vmatmul.bf16.gmra.mxu0 %v230
  %v434 = vpop.f32.mrf.mxu0
  %v435 = vadd.f32 %v268, %v434
  %v436 = vpop.f32.mrf.mxu0
  %v437 = vadd.f32 %v268, %v436
  %438 = vmatmul.bf16.gmra.mxu0 %v231
  %v439 = vpop.f32.mrf.mxu0
  %v440 = vadd.f32 %v268, %v439
  %v441 = vpop.f32.mrf.mxu0
  %v442 = vadd.f32 %v268, %v441
  %443 = vmatmul.bf16.gmra.mxu0 %v232
  %v444 = vpop.f32.mrf.mxu0
  %v445 = vadd.f32 %v268, %v444
  %v446 = vpop.f32.mrf.mxu0
  %v447 = vadd.f32 %v268, %v446
  %448 = vdwg.mxu0
  %449 = vmatpush.bf16.msra.mxu0 %v376
  %450 = vmatpush.bf16.msra.mxu0 %v373
  %451 = vmatpush.bf16.msra.mxu0 %v370
  %452 = vmatpush.bf16.msra.mxu0 %v367
  %453 = vmatpush.bf16.msra.mxu0 %v364
  %454 = vmatpush.bf16.msra.mxu0 %v361
  %455 = vmatpush.bf16.msra.mxu0 %v358
  %456 = vmatpush.bf16.msra.mxu0 %v355
  %457 = vmatmul.bf16.gmra.mxu0 %v230
  %v458 = vpop.f32.mrf.mxu0
  %v459 = vadd.f32 %v269, %v458
  %v460 = vpop.f32.mrf.mxu0
  %v461 = vadd.f32 %v269, %v460
  %462 = vmatmul.bf16.gmra.mxu0 %v231
  %v463 = vpop.f32.mrf.mxu0
  %v464 = vadd.f32 %v269, %v463
  %v465 = vpop.f32.mrf.mxu0
  %v466 = vadd.f32 %v269, %v465
  %467 = vmatmul.bf16.gmra.mxu0 %v232
  %v468 = vpop.f32.mrf.mxu0
  %v469 = vadd.f32 %v269, %v468
  %v470 = vpop.f32.mrf.mxu0
  %v471 = vadd.f32 %v269, %v470
  %472 = vdwg.mxu0
  %v473 = vpack.c.bf16 %v413, %v411
  %v474 = vpack.c.bf16 %v418, %v416
  %v475 = vpack.c.bf16 %v423, %v421
  %v476 = vpack.c.bf16 %v437, %v435
  %v477 = vpack.c.bf16 %v442, %v440
  %v478 = vpack.c.bf16 %v447, %v445
  %vm479 = vcmask 523264
  %v481 = vsel %vm479, %v473, 0
  %v484 = vsel %vm479, %v474, 0
  %v487 = vsel %vm479, %v475, 0
  %v490 = vsel %vm479, %v476, 0
  %v493 = vsel %vm479, %v477, 0
  %v496 = vsel %vm479, %v478, 0
  %498 = vmatpush.bf16.xpose.msra.mxu0 0
  %499 = vmatpush.bf16.xpose.msra.mxu0 0
  %500 = vmatpush.bf16.xpose.msra.mxu0 0
  %501 = vmatpush.bf16.xpose.msra.mxu0 0
  %502 = vmatpush.bf16.xpose.msra.mxu0 0
  %503 = vmatpush.bf16.xpose.msra.mxu0 %v496
  %504 = vmatpush.bf16.xpose.msra.mxu0 %v493
  %505 = vmatpush.bf16.xpose.msra.mxu0 %v490
  %506 = vmatmul.bf16.gmra.mxu0 %v481
  %v507 = vpop.f32.mrf.mxu0
  %v508 = vadd.f32 %v97, %v507
  %v509 = vpop.f32.mrf.mxu0
  %v510 = vadd.f32 %v98, %v509
  %511 = vmatmul.bf16.gmra.mxu0 %v484
  %v512 = vpop.f32.mrf.mxu0
  %v513 = vadd.f32 %v99, %v512
  %v514 = vpop.f32.mrf.mxu0
  %v515 = vadd.f32 %v100, %v514
  %516 = vmatmul.bf16.gmra.mxu0 %v487
  %v517 = vpop.f32.mrf.mxu0
  %v518 = vadd.f32 %v101, %v517
  %v519 = vpop.f32.mrf.mxu0
  %v520 = vadd.f32 %v102, %v519
  %521 = vdwg.mxu0
  %vm522 = vcmask 392192
  %v523 = vsel %vm522, %v508, -inf
  %524 = vmax.xlane.f32.xlu0 %v523
  %v525 = vpop.xlane.xlu0 %524
  %v526 = vsel %vm522, %v510, -inf
  %527 = vmax.xlane.f32.xlu0 %v526
  %v528 = vpop.xlane.xlu0 %527
  %v529 = vsel %vm522, %v513, -inf
  %530 = vmax.xlane.f32.xlu0 %v529
  %v531 = vpop.xlane.xlu0 %530
  %v532 = vsel %vm522, %v515, -inf
  %533 = vmax.xlane.f32.xlu0 %v532
  %v534 = vpop.xlane.xlu0 %533
  %v535 = vsel %vm522, %v518, -inf
  %536 = vmax.xlane.f32.xlu0 %v535
  %v537 = vpop.xlane.xlu0 %536
  %v538 = vsel %vm522, %v520, -inf
  %539 = vmax.xlane.f32.xlu0 %v538
  %v540 = vpop.xlane.xlu0 %539
  %v541 = vsub.f32 %v508, %v525
  %v542 = vsub.f32 %v510, %v528
  %v543 = vsub.f32 %v513, %v531
  %v544 = vsub.f32 %v515, %v534
  %v545 = vsub.f32 %v518, %v537
  %v546 = vsub.f32 %v520, %v540
  %v547 = vmul.f32 %v541, 1.442695
  %v548 = vpow.pop %v547
  %v549 = vmul.f32 %v542, 1.442695
  %v550 = vpow.pop %v549
  %v551 = vmul.f32 %v543, 1.442695
  %v552 = vpow.pop %v551
  %v553 = vmul.f32 %v544, 1.442695
  %v554 = vpow.pop %v553
  %v555 = vmul.f32 %v545, 1.442695
  %v556 = vpow.pop %v555
  %v557 = vmul.f32 %v546, 1.442695
  %v558 = vpow.pop %v557
  %v559 = vsel %vm522, %v548, 0.0
  %560 = vadd.xlane.f32.xlu0 %v559
  %v561 = vpop.xlane.xlu0 %560
  %v562 = vsel %vm522, %v550, 0.0
  %563 = vadd.xlane.f32.xlu0 %v562
  %v564 = vpop.xlane.xlu0 %563
  %v565 = vsel %vm522, %v552, 0.0
  %566 = vadd.xlane.f32.xlu0 %v565
  %v567 = vpop.xlane.xlu0 %566
  %v568 = vsel %vm522, %v554, 0.0
  %569 = vadd.xlane.f32.xlu0 %v568
  %v570 = vpop.xlane.xlu0 %569
  %v571 = vsel %vm522, %v556, 0.0
  %572 = vadd.xlane.f32.xlu0 %v571
  %v573 = vpop.xlane.xlu0 %572
  %v574 = vsel %vm522, %v558, 0.0
  %575 = vadd.xlane.f32.xlu0 %v574
  %v576 = vpop.xlane.xlu0 %575
  %v577 = vrcp.pop %v561
  %v578 = vrcp.pop %v564
  %v579 = vrcp.pop %v567
  %v580 = vrcp.pop %v570
  %v581 = vrcp.pop %v573
  %v582 = vrcp.pop %v576
  %v583 = vmul.f32 %v548, %v577
  %v584 = vmul.f32 %v550, %v578
  %v585 = vmul.f32 %v552, %v579
  %v586 = vmul.f32 %v554, %v580
  %v587 = vmul.f32 %v556, %v581
  %v588 = vmul.f32 %v558, %v582
  %v589 = vpack.c.bf16 %v584, %v583
  %v590 = vpack.c.bf16 %v586, %v585
  %v591 = vpack.c.bf16 %v588, %v587
  %v592 = vpack.c.bf16 %v461, %v459
  %v593 = vpack.c.bf16 %v466, %v464
  %v594 = vpack.c.bf16 %v471, %v469
  %v596 = vsel %vm522, %v589, 0
  %v599 = vsel %vm522, %v590, 0
  %v602 = vsel %vm522, %v591, 0
  %604 = vmatpush.bf16.msra.mxu0 0
  %605 = vmatpush.bf16.msra.mxu0 0
  %606 = vmatpush.bf16.msra.mxu0 0
  %607 = vmatpush.bf16.msra.mxu0 0
  %608 = vmatpush.bf16.msra.mxu0 0
  %609 = vmatpush.bf16.msra.mxu0 %v594
  %610 = vmatpush.bf16.msra.mxu0 %v593
  %611 = vmatpush.bf16.msra.mxu0 %v592
  %612 = vmatmul.bf16.gmra.mxu0 %v596
  %v613 = vpop.f32.mrf.mxu0
  %v614 = vadd.f32 0.0, %v613
  %v615 = vpop.f32.mrf.mxu0
  %v616 = vadd.f32 0.0, %v615
  %617 = vmatmul.bf16.gmra.mxu0 %v599
  %v618 = vpop.f32.mrf.mxu0
  %v619 = vadd.f32 0.0, %v618
  %v620 = vpop.f32.mrf.mxu0
  %v621 = vadd.f32 0.0, %v620
  %622 = vmatmul.bf16.gmra.mxu0 %v602
  %v623 = vpop.f32.mrf.mxu0
  %v624 = vadd.f32 0.0, %v623
  %v625 = vpop.f32.mrf.mxu0
  %v626 = vadd.f32 0.0, %v625
  %627 = vdwg.mxu0
  %631 = vrot.lane.b32.xlu0 %v473, 64
  %v632 = vpop.permute.xlu0 %631
  %633 = vrot.lane.b32.xlu0 %v474, 64
  %v634 = vpop.permute.xlu0 %633
  %635 = vrot.lane.b32.xlu0 %v475, 64
  %v636 = vpop.permute.xlu0 %635
  %640 = vrot.lane.b32.xlu0 %v476, 64
  %v641 = vpop.permute.xlu0 %640
  %642 = vrot.lane.b32.xlu0 %v477, 64
  %v643 = vpop.permute.xlu0 %642
  %644 = vrot.lane.b32.xlu0 %v478, 64
  %v645 = vpop.permute.xlu0 %644
  %v647 = vsel %vm479, %v632, 0
  %v650 = vsel %vm479, %v634, 0
  %v653 = vsel %vm479, %v636, 0
  %v656 = vsel %vm479, %v641, 0
  %v659 = vsel %vm479, %v643, 0
  %v662 = vsel %vm479, %v645, 0
  %664 = vmatpush.bf16.xpose.msra.mxu0 0
  %665 = vmatpush.bf16.xpose.msra.mxu0 0
  %666 = vmatpush.bf16.xpose.msra.mxu0 0
  %667 = vmatpush.bf16.xpose.msra.mxu0 0
  %668 = vmatpush.bf16.xpose.msra.mxu0 0
  %669 = vmatpush.bf16.xpose.msra.mxu0 %v662
  %670 = vmatpush.bf16.xpose.msra.mxu0 %v659
  %671 = vmatpush.bf16.xpose.msra.mxu0 %v656
  %672 = vmatmul.bf16.gmra.mxu0 %v647
  %v673 = vpop.f32.mrf.mxu0
  %v674 = vadd.f32 %v97, %v673
  %v675 = vpop.f32.mrf.mxu0
  %v676 = vadd.f32 %v98, %v675
  %677 = vmatmul.bf16.gmra.mxu0 %v650
  %v678 = vpop.f32.mrf.mxu0
  %v679 = vadd.f32 %v99, %v678
  %v680 = vpop.f32.mrf.mxu0
  %v681 = vadd.f32 %v100, %v680
  %682 = vmatmul.bf16.gmra.mxu0 %v653
  %v683 = vpop.f32.mrf.mxu0
  %v684 = vadd.f32 %v101, %v683
  %v685 = vpop.f32.mrf.mxu0
  %v686 = vadd.f32 %v102, %v685
  %687 = vdwg.mxu0
  %v688 = vsel %vm522, %v674, -inf
  %689 = vmax.xlane.f32.xlu0 %v688
  %v690 = vpop.xlane.xlu0 %689
  %v691 = vsel %vm522, %v676, -inf
  %692 = vmax.xlane.f32.xlu0 %v691
  %v693 = vpop.xlane.xlu0 %692
  %v694 = vsel %vm522, %v679, -inf
  %695 = vmax.xlane.f32.xlu0 %v694
  %v696 = vpop.xlane.xlu0 %695
  %v697 = vsel %vm522, %v681, -inf
  %698 = vmax.xlane.f32.xlu0 %v697
  %v699 = vpop.xlane.xlu0 %698
  %v700 = vsel %vm522, %v684, -inf
  %701 = vmax.xlane.f32.xlu0 %v700
  %v702 = vpop.xlane.xlu0 %701
  %v703 = vsel %vm522, %v686, -inf
  %704 = vmax.xlane.f32.xlu0 %v703
  %v705 = vpop.xlane.xlu0 %704
  %v706 = vsub.f32 %v674, %v690
  %v707 = vsub.f32 %v676, %v693
  %v708 = vsub.f32 %v679, %v696
  %v709 = vsub.f32 %v681, %v699
  %v710 = vsub.f32 %v684, %v702
  %v711 = vsub.f32 %v686, %v705
  %v712 = vmul.f32 %v706, 1.442695
  %v713 = vpow.pop %v712
  %v714 = vmul.f32 %v707, 1.442695
  %v715 = vpow.pop %v714
  %v716 = vmul.f32 %v708, 1.442695
  %v717 = vpow.pop %v716
  %v718 = vmul.f32 %v709, 1.442695
  %v719 = vpow.pop %v718
  %v720 = vmul.f32 %v710, 1.442695
  %v721 = vpow.pop %v720
  %v722 = vmul.f32 %v711, 1.442695
  %v723 = vpow.pop %v722
  %v724 = vsel %vm522, %v713, 0.0
  %725 = vadd.xlane.f32.xlu0 %v724
  %v726 = vpop.xlane.xlu0 %725
  %v727 = vsel %vm522, %v715, 0.0
  %728 = vadd.xlane.f32.xlu0 %v727
  %v729 = vpop.xlane.xlu0 %728
  %v730 = vsel %vm522, %v717, 0.0
  %731 = vadd.xlane.f32.xlu0 %v730
  %v732 = vpop.xlane.xlu0 %731
  %v733 = vsel %vm522, %v719, 0.0
  %734 = vadd.xlane.f32.xlu0 %v733
  %v735 = vpop.xlane.xlu0 %734
  %v736 = vsel %vm522, %v721, 0.0
  %737 = vadd.xlane.f32.xlu0 %v736
  %v738 = vpop.xlane.xlu0 %737
  %v739 = vsel %vm522, %v723, 0.0
  %740 = vadd.xlane.f32.xlu0 %v739
  %v741 = vpop.xlane.xlu0 %740
  %v742 = vrcp.pop %v726
  %v743 = vrcp.pop %v729
  %v744 = vrcp.pop %v732
  %v745 = vrcp.pop %v735
  %v746 = vrcp.pop %v738
  %v747 = vrcp.pop %v741
  %v748 = vmul.f32 %v713, %v742
  %v749 = vmul.f32 %v715, %v743
  %v750 = vmul.f32 %v717, %v744
  %v751 = vmul.f32 %v719, %v745
  %v752 = vmul.f32 %v721, %v746
  %v753 = vmul.f32 %v723, %v747
  %v754 = vpack.c.bf16 %v749, %v748
  %v755 = vpack.c.bf16 %v751, %v750
  %v756 = vpack.c.bf16 %v753, %v752
  %760 = vrot.lane.b32.xlu0 %v592, 64
  %v761 = vpop.permute.xlu0 %760
  %762 = vrot.lane.b32.xlu0 %v593, 64
  %v763 = vpop.permute.xlu0 %762
  %764 = vrot.lane.b32.xlu0 %v594, 64
  %v765 = vpop.permute.xlu0 %764
  %v770 = vsel %vm522, %v754, 0
  %v773 = vsel %vm522, %v755, 0
  %v776 = vsel %vm522, %v756, 0
  %778 = vmatpush.bf16.msra.mxu0 0
  %779 = vmatpush.bf16.msra.mxu0 0
  %780 = vmatpush.bf16.msra.mxu0 0
  %781 = vmatpush.bf16.msra.mxu0 0
  %782 = vmatpush.bf16.msra.mxu0 0
  %783 = vmatpush.bf16.msra.mxu0 %v765
  %784 = vmatpush.bf16.msra.mxu0 %v763
  %785 = vmatpush.bf16.msra.mxu0 %v761
  %786 = vmatmul.bf16.gmra.mxu0 %v770
  %v787 = vpop.f32.mrf.mxu0
  %v788 = vadd.f32 0.0, %v787
  %v789 = vpop.f32.mrf.mxu0
  %v790 = vadd.f32 0.0, %v789
  %791 = vmatmul.bf16.gmra.mxu0 %v773
  %v792 = vpop.f32.mrf.mxu0
  %v793 = vadd.f32 0.0, %v792
  %v794 = vpop.f32.mrf.mxu0
  %v795 = vadd.f32 0.0, %v794
  %796 = vmatmul.bf16.gmra.mxu0 %v776
  %v797 = vpop.f32.mrf.mxu0
  %v798 = vadd.f32 0.0, %v797
  %v799 = vpop.f32.mrf.mxu0
  %v800 = vadd.f32 0.0, %v799
  %801 = vdwg.mxu0
  %808 = vrot.lane.b32.xlu0 %v788, 64
  %v809 = vpop.permute.xlu0 %808
  %810 = vrot.lane.b32.xlu0 %v790, 64
  %v811 = vpop.permute.xlu0 %810
  %812 = vrot.lane.b32.xlu0 %v793, 64
  %v813 = vpop.permute.xlu0 %812
  %814 = vrot.lane.b32.xlu0 %v795, 64
  %v815 = vpop.permute.xlu0 %814
  %816 = vrot.lane.b32.xlu0 %v798, 64
  %v817 = vpop.permute.xlu0 %816
  %818 = vrot.lane.b32.xlu0 %v800, 64
  %v819 = vpop.permute.xlu0 %818
  %v826 = vsel %vm479, %v614, %v809
  %v827 = vsel %vm479, %v616, %v811
  %v828 = vsel %vm479, %v619, %v813
  %v829 = vsel %vm479, %v621, %v815
  %v830 = vsel %vm479, %v624, %v817
  %v831 = vsel %vm479, %v626, %v819
  %v832 = vpack.c.bf16 %v827, %v826
  %v833 = vpack.c.bf16 %v829, %v828
  %v834 = vpack.c.bf16 %v831, %v830
  %v835 = vld [vmem:[%s4] sm:$0xf]
  %v836 = vld [vmem:[%s4 + $0x4] sm:$0xf]
  %v837 = vld [vmem:[%s4 + $0x8] sm:$0xf]
  %v838 = vld [vmem:[%s4 + $0xc] sm:$0xf]
  %v839 = vld [vmem:[%s4 + $0x10] sm:$0xf]
  %v840 = vld [vmem:[%s4 + $0x14] sm:$0xf]
  %v841 = vld [vmem:[%s4 + $0x18] sm:$0xf]
  %v842 = vld [vmem:[%s4 + $0x1c] sm:$0xf]
  %v843 = vld [vmem:[%s4 + $0x20] sm:$0xf]
  %v844 = vld [vmem:[%s4 + $0x24] sm:$0xf]
  %v845 = vld [vmem:[%s4 + $0x28] sm:$0xf]
  %v846 = vld [vmem:[%s4 + $0x2c] sm:$0xf]
  %v847 = vld [vmem:[%s4 + $0x30] sm:$0xf]
  %v848 = vld [vmem:[%s4 + $0x34] sm:$0xf]
  %v849 = vld [vmem:[%s4 + $0x38] sm:$0xf]
  %v850 = vld [vmem:[%s4 + $0x3c] sm:$0xf]
  %v867 = vunpack.c.l.b16 %v835
  %v868 = vunpack.c.l.b16 %v836
  %v869 = vunpack.c.l.b16 %v837
  %v870 = vunpack.c.l.b16 %v838
  %v871 = vunpack.c.l.b16 %v839
  %v872 = vunpack.c.l.b16 %v840
  %v873 = vunpack.c.l.b16 %v841
  %v874 = vunpack.c.l.b16 %v842
  %v875 = vunpack.c.l.b16 %v843
  %v876 = vunpack.c.l.b16 %v844
  %v877 = vunpack.c.l.b16 %v845
  %v878 = vunpack.c.l.b16 %v846
  %v879 = vunpack.c.l.b16 %v847
  %v880 = vunpack.c.l.b16 %v848
  %v881 = vunpack.c.l.b16 %v849
  %v882 = vunpack.c.l.b16 %v850
  %v883 = vpack.c.b16 %v868, %v867
  %v884 = vpack.c.b16 %v870, %v869
  %v885 = vpack.c.b16 %v872, %v871
  %v886 = vpack.c.b16 %v874, %v873
  %v887 = vpack.c.b16 %v876, %v875
  %v888 = vpack.c.b16 %v878, %v877
  %v889 = vpack.c.b16 %v880, %v879
  %v890 = vpack.c.b16 %v882, %v881
  %899 = vmatpush.bf16.msra.mxu0 %v890
  %900 = vmatpush.bf16.msra.mxu0 %v889
  %901 = vmatpush.bf16.msra.mxu0 %v888
  %902 = vmatpush.bf16.msra.mxu0 %v887
  %903 = vmatpush.bf16.msra.mxu0 %v886
  %904 = vmatpush.bf16.msra.mxu0 %v885
  %905 = vmatpush.bf16.msra.mxu0 %v884
  %906 = vmatpush.bf16.msra.mxu0 %v883
  %907 = vmatmul.bf16.gmra.mxu0 %v832
  %v908 = vpop.f32.mrf.mxu0
  %v909 = vadd.f32 0.0, %v908
  %v910 = vpop.f32.mrf.mxu0
  %v911 = vadd.f32 0.0, %v910
  %912 = vmatmul.bf16.gmra.mxu0 %v833
  %v913 = vpop.f32.mrf.mxu0
  %v914 = vadd.f32 0.0, %v913
  %v915 = vpop.f32.mrf.mxu0
  %v916 = vadd.f32 0.0, %v915
  %917 = vmatmul.bf16.gmra.mxu0 %v834
  %v918 = vpop.f32.mrf.mxu0
  %v919 = vadd.f32 0.0, %v918
  %v920 = vpop.f32.mrf.mxu0
  %v921 = vadd.f32 0.0, %v920
  %922 = vdwg.mxu0
  %v923 = vadd.f32 %v48, %v909
  %v924 = vadd.f32 %v49, %v911
  %v925 = vadd.f32 %v50, %v914
  %v926 = vadd.f32 %v51, %v916
  %v927 = vadd.f32 %v52, %v919
  %v928 = vadd.f32 %v53, %v921
  %v929 = vld [vmem:[%s5] sm:$0x1]
  %v931 = vperm.slane %v929, 0
  %v933 = vadd.f32 %v923, %v931
  %v934 = vadd.f32 %v924, %v931
  %v935 = vadd.f32 %v925, %v931
  %v936 = vadd.f32 %v926, %v931
  %v937 = vadd.f32 %v927, %v931
  %v938 = vadd.f32 %v928, %v931
  %939 = vadd.xlane.f32.xlu0 %v933
  %v940 = vpop.xlane.xlu0 %939
  %941 = vadd.xlane.f32.xlu0 %v934
  %v942 = vpop.xlane.xlu0 %941
  %943 = vadd.xlane.f32.xlu0 %v935
  %v944 = vpop.xlane.xlu0 %943
  %945 = vadd.xlane.f32.xlu0 %v936
  %v946 = vpop.xlane.xlu0 %945
  %947 = vadd.xlane.f32.xlu0 %v937
  %v948 = vpop.xlane.xlu0 %947
  %949 = vadd.xlane.f32.xlu0 %v938
  %v950 = vpop.xlane.xlu0 %949
  %v951 = vmul.f32 %v940, %v121
  %v952 = vmul.f32 %v942, %v121
  %v953 = vmul.f32 %v944, %v121
  %v954 = vmul.f32 %v946, %v121
  %v955 = vmul.f32 %v948, %v121
  %v956 = vmul.f32 %v950, %v121
  %v957 = vsub.f32 %v933, %v951
  %v958 = vsub.f32 %v934, %v952
  %v959 = vsub.f32 %v935, %v953
  %v960 = vsub.f32 %v936, %v954
  %v961 = vsub.f32 %v937, %v955
  %v962 = vsub.f32 %v938, %v956
  %v963 = vmul.f32 %v957, %v957
  %v964 = vmul.f32 %v958, %v958
  %v965 = vmul.f32 %v959, %v959
  %v966 = vmul.f32 %v960, %v960
  %v967 = vmul.f32 %v961, %v961
  %v968 = vmul.f32 %v962, %v962
  %969 = vadd.xlane.f32.xlu0 %v963
  %v970 = vpop.xlane.xlu0 %969
  %971 = vadd.xlane.f32.xlu0 %v964
  %v972 = vpop.xlane.xlu0 %971
  %973 = vadd.xlane.f32.xlu0 %v965
  %v974 = vpop.xlane.xlu0 %973
  %975 = vadd.xlane.f32.xlu0 %v966
  %v976 = vpop.xlane.xlu0 %975
  %977 = vadd.xlane.f32.xlu0 %v967
  %v978 = vpop.xlane.xlu0 %977
  %979 = vadd.xlane.f32.xlu0 %v968
  %v980 = vpop.xlane.xlu0 %979
  %v981 = vmul.f32 %v970, %v121
  %v982 = vmul.f32 %v972, %v121
  %v983 = vmul.f32 %v974, %v121
  %v984 = vmul.f32 %v976, %v121
  %v985 = vmul.f32 %v978, %v121
  %v986 = vmul.f32 %v980, %v121
  %v987 = vadd.f32 %v981, 1e-06
  %v988 = vadd.f32 %v982, 1e-06
  %v989 = vadd.f32 %v983, 1e-06
  %v990 = vadd.f32 %v984, 1e-06
  %v991 = vadd.f32 %v985, 1e-06
  %v992 = vadd.f32 %v986, 1e-06
  %v993 = vrsqrt.pop %v987
  %v994 = vmul.f32 %v993, %v987
  %v995 = vmul.f32 %v994, %v993
  %v996 = vmul.f32 0.5, %v995
  %v997 = vsub.f32 1.5, %v996
  %v998 = vmul.f32 %v993, %v997
  %vm999 = vweird.f32 %v987
  %vm1000 = vweird.f32 %v993
  %vm1001 = vmor %vm999, %vm1000
  %v1002 = vsel %vm1001, %v993, %v998
  %v1003 = vrsqrt.pop %v988
  %v1004 = vmul.f32 %v1003, %v988
  %v1005 = vmul.f32 %v1004, %v1003
  %v1006 = vmul.f32 0.5, %v1005
  %v1007 = vsub.f32 1.5, %v1006
  %v1008 = vmul.f32 %v1003, %v1007
  %vm1009 = vweird.f32 %v988
  %vm1010 = vweird.f32 %v1003
  %vm1011 = vmor %vm1009, %vm1010
  %v1012 = vsel %vm1011, %v1003, %v1008
  %v1013 = vrsqrt.pop %v989
  %v1014 = vmul.f32 %v1013, %v989
  %v1015 = vmul.f32 %v1014, %v1013
  %v1016 = vmul.f32 0.5, %v1015
  %v1017 = vsub.f32 1.5, %v1016
  %v1018 = vmul.f32 %v1013, %v1017
  %vm1019 = vweird.f32 %v989
  %vm1020 = vweird.f32 %v1013
  %vm1021 = vmor %vm1019, %vm1020
  %v1022 = vsel %vm1021, %v1013, %v1018
  %v1023 = vrsqrt.pop %v990
  %v1024 = vmul.f32 %v1023, %v990
  %v1025 = vmul.f32 %v1024, %v1023
  %v1026 = vmul.f32 0.5, %v1025
  %v1027 = vsub.f32 1.5, %v1026
  %v1028 = vmul.f32 %v1023, %v1027
  %vm1029 = vweird.f32 %v990
  %vm1030 = vweird.f32 %v1023
  %vm1031 = vmor %vm1029, %vm1030
  %v1032 = vsel %vm1031, %v1023, %v1028
  %v1033 = vrsqrt.pop %v991
  %v1034 = vmul.f32 %v1033, %v991
  %v1035 = vmul.f32 %v1034, %v1033
  %v1036 = vmul.f32 0.5, %v1035
  %v1037 = vsub.f32 1.5, %v1036
  %v1038 = vmul.f32 %v1033, %v1037
  %vm1039 = vweird.f32 %v991
  %vm1040 = vweird.f32 %v1033
  %vm1041 = vmor %vm1039, %vm1040
  %v1042 = vsel %vm1041, %v1033, %v1038
  %v1043 = vrsqrt.pop %v992
  %v1044 = vmul.f32 %v1043, %v992
  %v1045 = vmul.f32 %v1044, %v1043
  %v1046 = vmul.f32 0.5, %v1045
  %v1047 = vsub.f32 1.5, %v1046
  %v1048 = vmul.f32 %v1043, %v1047
  %vm1049 = vweird.f32 %v992
  %vm1050 = vweird.f32 %v1043
  %vm1051 = vmor %vm1049, %vm1050
  %v1052 = vsel %vm1051, %v1043, %v1048
  %v1053 = vmul.f32 %v957, %v1002
  %v1054 = vmul.f32 %v958, %v1012
  %v1055 = vmul.f32 %v959, %v1022
  %v1056 = vmul.f32 %v960, %v1032
  %v1057 = vmul.f32 %v961, %v1042
  %v1058 = vmul.f32 %v962, %v1052
  %v1059 = vpack.c.bf16 %v1054, %v1053
  %v1060 = vpack.c.bf16 %v1056, %v1055
  %v1061 = vpack.c.bf16 %v1058, %v1057
  %v1062 = vld [vmem:[%s6] sm:$0xff]
  %v1063 = vld [vmem:[%s6 + $0x8] sm:$0xff]
  %v1064 = vld [vmem:[%s6 + $0x10] sm:$0xff]
  %v1065 = vld [vmem:[%s6 + $0x18] sm:$0xff]
  %v1066 = vld [vmem:[%s6 + $0x20] sm:$0xff]
  %v1067 = vld [vmem:[%s6 + $0x28] sm:$0xff]
  %v1068 = vld [vmem:[%s6 + $0x30] sm:$0xff]
  %v1069 = vld [vmem:[%s6 + $0x38] sm:$0xff]
  %v1070 = vld [vmem:[%s6 + $0x40] sm:$0xff]
  %v1071 = vld [vmem:[%s6 + $0x48] sm:$0xff]
  %v1072 = vld [vmem:[%s6 + $0x50] sm:$0xff]
  %v1073 = vld [vmem:[%s6 + $0x58] sm:$0xff]
  %v1074 = vld [vmem:[%s6 + $0x60] sm:$0xff]
  %v1075 = vld [vmem:[%s6 + $0x68] sm:$0xff]
  %v1076 = vld [vmem:[%s6 + $0x70] sm:$0xff]
  %v1077 = vld [vmem:[%s6 + $0x78] sm:$0xff]
  %v1078 = vld [vmem:[%s6 + $0x80] sm:$0xff]
  %v1079 = vld [vmem:[%s6 + $0x88] sm:$0xff]
  %v1080 = vld [vmem:[%s6 + $0x90] sm:$0xff]
  %v1081 = vld [vmem:[%s6 + $0x98] sm:$0xff]
  %v1082 = vld [vmem:[%s6 + $0xa0] sm:$0xff]
  %v1083 = vld [vmem:[%s6 + $0xa8] sm:$0xff]
  %v1084 = vld [vmem:[%s6 + $0xb0] sm:$0xff]
  %v1085 = vld [vmem:[%s6 + $0xb8] sm:$0xff]
  %v1086 = vld [vmem:[%s6 + $0xc0] sm:$0xff]
  %v1087 = vld [vmem:[%s6 + $0xc8] sm:$0xff]
  %v1088 = vld [vmem:[%s6 + $0xd0] sm:$0xff]
  %v1089 = vld [vmem:[%s6 + $0xd8] sm:$0xff]
  %v1090 = vld [vmem:[%s6 + $0xe0] sm:$0xff]
  %v1091 = vld [vmem:[%s6 + $0xe8] sm:$0xff]
  %v1092 = vld [vmem:[%s6 + $0xf0] sm:$0xff]
  %v1093 = vld [vmem:[%s6 + $0xf8] sm:$0xff]
  %v1094 = vld [vmem:[%s7] sm:$0xf]
  %v1096 = vperm.slane %v1094, 0
  %v1097 = vperm.slane %v1094, 1
  %v1098 = vperm.slane %v1094, 2
  %v1099 = vperm.slane %v1094, 3
  %v1136 = vunpack.c.l.b16 %v1062
  %v1137 = vunpack.c.h.b16 %v1062
  %v1138 = vunpack.c.l.b16 %v1063
  %v1139 = vunpack.c.h.b16 %v1063
  %v1140 = vunpack.c.l.b16 %v1064
  %v1141 = vunpack.c.h.b16 %v1064
  %v1142 = vunpack.c.l.b16 %v1065
  %v1143 = vunpack.c.h.b16 %v1065
  %v1144 = vunpack.c.l.b16 %v1066
  %v1145 = vunpack.c.h.b16 %v1066
  %v1146 = vunpack.c.l.b16 %v1067
  %v1147 = vunpack.c.h.b16 %v1067
  %v1148 = vunpack.c.l.b16 %v1068
  %v1149 = vunpack.c.h.b16 %v1068
  %v1150 = vunpack.c.l.b16 %v1069
  %v1151 = vunpack.c.h.b16 %v1069
  %v1152 = vunpack.c.l.b16 %v1070
  %v1153 = vunpack.c.h.b16 %v1070
  %v1154 = vunpack.c.l.b16 %v1071
  %v1155 = vunpack.c.h.b16 %v1071
  %v1156 = vunpack.c.l.b16 %v1072
  %v1157 = vunpack.c.h.b16 %v1072
  %v1158 = vunpack.c.l.b16 %v1073
  %v1159 = vunpack.c.h.b16 %v1073
  %v1160 = vunpack.c.l.b16 %v1074
  %v1161 = vunpack.c.h.b16 %v1074
  %v1162 = vunpack.c.l.b16 %v1075
  %v1163 = vunpack.c.h.b16 %v1075
  %v1164 = vunpack.c.l.b16 %v1076
  %v1165 = vunpack.c.h.b16 %v1076
  %v1166 = vunpack.c.l.b16 %v1077
  %v1167 = vunpack.c.h.b16 %v1077
  %v1168 = vunpack.c.l.b16 %v1078
  %v1169 = vunpack.c.h.b16 %v1078
  %v1170 = vunpack.c.l.b16 %v1079
  %v1171 = vunpack.c.h.b16 %v1079
  %v1172 = vunpack.c.l.b16 %v1080
  %v1173 = vunpack.c.h.b16 %v1080
  %v1174 = vunpack.c.l.b16 %v1081
  %v1175 = vunpack.c.h.b16 %v1081
  %v1176 = vunpack.c.l.b16 %v1082
  %v1177 = vunpack.c.h.b16 %v1082
  %v1178 = vunpack.c.l.b16 %v1083
  %v1179 = vunpack.c.h.b16 %v1083
  %v1180 = vunpack.c.l.b16 %v1084
  %v1181 = vunpack.c.h.b16 %v1084
  %v1182 = vunpack.c.l.b16 %v1085
  %v1183 = vunpack.c.h.b16 %v1085
  %v1184 = vunpack.c.l.b16 %v1086
  %v1185 = vunpack.c.h.b16 %v1086
  %v1186 = vunpack.c.l.b16 %v1087
  %v1187 = vunpack.c.h.b16 %v1087
  %v1188 = vunpack.c.l.b16 %v1088
  %v1189 = vunpack.c.h.b16 %v1088
  %v1190 = vunpack.c.l.b16 %v1089
  %v1191 = vunpack.c.h.b16 %v1089
  %v1192 = vunpack.c.l.b16 %v1090
  %v1193 = vunpack.c.h.b16 %v1090
  %v1194 = vunpack.c.l.b16 %v1091
  %v1195 = vunpack.c.h.b16 %v1091
  %v1196 = vunpack.c.l.b16 %v1092
  %v1197 = vunpack.c.h.b16 %v1092
  %v1198 = vunpack.c.l.b16 %v1093
  %v1199 = vunpack.c.h.b16 %v1093
  %v1200 = vpack.c.b16 %v1140, %v1136
  %v1201 = vpack.c.b16 %v1141, %v1137
  %v1202 = vpack.c.b16 %v1142, %v1138
  %v1203 = vpack.c.b16 %v1143, %v1139
  %v1204 = vpack.c.b16 %v1148, %v1144
  %v1205 = vpack.c.b16 %v1149, %v1145
  %v1206 = vpack.c.b16 %v1150, %v1146
  %v1207 = vpack.c.b16 %v1151, %v1147
  %v1208 = vpack.c.b16 %v1156, %v1152
  %v1209 = vpack.c.b16 %v1157, %v1153
  %v1210 = vpack.c.b16 %v1158, %v1154
  %v1211 = vpack.c.b16 %v1159, %v1155
  %v1212 = vpack.c.b16 %v1164, %v1160
  %v1213 = vpack.c.b16 %v1165, %v1161
  %v1214 = vpack.c.b16 %v1166, %v1162
  %v1215 = vpack.c.b16 %v1167, %v1163
  %v1216 = vpack.c.b16 %v1172, %v1168
  %v1217 = vpack.c.b16 %v1173, %v1169
  %v1218 = vpack.c.b16 %v1174, %v1170
  %v1219 = vpack.c.b16 %v1175, %v1171
  %v1220 = vpack.c.b16 %v1180, %v1176
  %v1221 = vpack.c.b16 %v1181, %v1177
  %v1222 = vpack.c.b16 %v1182, %v1178
  %v1223 = vpack.c.b16 %v1183, %v1179
  %v1224 = vpack.c.b16 %v1188, %v1184
  %v1225 = vpack.c.b16 %v1189, %v1185
  %v1226 = vpack.c.b16 %v1190, %v1186
  %v1227 = vpack.c.b16 %v1191, %v1187
  %v1228 = vpack.c.b16 %v1196, %v1192
  %v1229 = vpack.c.b16 %v1197, %v1193
  %v1230 = vpack.c.b16 %v1198, %v1194
  %v1231 = vpack.c.b16 %v1199, %v1195
  %1264 = vmatpush.bf16.msra.mxu0 %v1228
  %1265 = vmatpush.bf16.msra.mxu0 %v1224
  %1266 = vmatpush.bf16.msra.mxu0 %v1220
  %1267 = vmatpush.bf16.msra.mxu0 %v1216
  %1268 = vmatpush.bf16.msra.mxu0 %v1212
  %1269 = vmatpush.bf16.msra.mxu0 %v1208
  %1270 = vmatpush.bf16.msra.mxu0 %v1204
  %1271 = vmatpush.bf16.msra.mxu0 %v1200
  %1272 = vmatmul.bf16.gmra.mxu0 %v1059
  %v1273 = vpop.f32.mrf.mxu0
  %v1274 = vadd.f32 %v1096, %v1273
  %v1275 = vpop.f32.mrf.mxu0
  %v1276 = vadd.f32 %v1096, %v1275
  %1277 = vmatmul.bf16.gmra.mxu0 %v1060
  %v1278 = vpop.f32.mrf.mxu0
  %v1279 = vadd.f32 %v1096, %v1278
  %v1280 = vpop.f32.mrf.mxu0
  %v1281 = vadd.f32 %v1096, %v1280
  %1282 = vmatmul.bf16.gmra.mxu0 %v1061
  %v1283 = vpop.f32.mrf.mxu0
  %v1284 = vadd.f32 %v1096, %v1283
  %v1285 = vpop.f32.mrf.mxu0
  %v1286 = vadd.f32 %v1096, %v1285
  %1287 = vdwg.mxu0
  %1288 = vmatpush.bf16.msra.mxu0 %v1229
  %1289 = vmatpush.bf16.msra.mxu0 %v1225
  %1290 = vmatpush.bf16.msra.mxu0 %v1221
  %1291 = vmatpush.bf16.msra.mxu0 %v1217
  %1292 = vmatpush.bf16.msra.mxu0 %v1213
  %1293 = vmatpush.bf16.msra.mxu0 %v1209
  %1294 = vmatpush.bf16.msra.mxu0 %v1205
  %1295 = vmatpush.bf16.msra.mxu0 %v1201
  %1296 = vmatmul.bf16.gmra.mxu0 %v1059
  %v1297 = vpop.f32.mrf.mxu0
  %v1298 = vadd.f32 %v1097, %v1297
  %v1299 = vpop.f32.mrf.mxu0
  %v1300 = vadd.f32 %v1097, %v1299
  %1301 = vmatmul.bf16.gmra.mxu0 %v1060
  %v1302 = vpop.f32.mrf.mxu0
  %v1303 = vadd.f32 %v1097, %v1302
  %v1304 = vpop.f32.mrf.mxu0
  %v1305 = vadd.f32 %v1097, %v1304
  %1306 = vmatmul.bf16.gmra.mxu0 %v1061
  %v1307 = vpop.f32.mrf.mxu0
  %v1308 = vadd.f32 %v1097, %v1307
  %v1309 = vpop.f32.mrf.mxu0
  %v1310 = vadd.f32 %v1097, %v1309
  %1311 = vdwg.mxu0
  %1312 = vmatpush.bf16.msra.mxu0 %v1230
  %1313 = vmatpush.bf16.msra.mxu0 %v1226
  %1314 = vmatpush.bf16.msra.mxu0 %v1222
  %1315 = vmatpush.bf16.msra.mxu0 %v1218
  %1316 = vmatpush.bf16.msra.mxu0 %v1214
  %1317 = vmatpush.bf16.msra.mxu0 %v1210
  %1318 = vmatpush.bf16.msra.mxu0 %v1206
  %1319 = vmatpush.bf16.msra.mxu0 %v1202
  %1320 = vmatmul.bf16.gmra.mxu0 %v1059
  %v1321 = vpop.f32.mrf.mxu0
  %v1322 = vadd.f32 %v1098, %v1321
  %v1323 = vpop.f32.mrf.mxu0
  %v1324 = vadd.f32 %v1098, %v1323
  %1325 = vmatmul.bf16.gmra.mxu0 %v1060
  %v1326 = vpop.f32.mrf.mxu0
  %v1327 = vadd.f32 %v1098, %v1326
  %v1328 = vpop.f32.mrf.mxu0
  %v1329 = vadd.f32 %v1098, %v1328
  %1330 = vmatmul.bf16.gmra.mxu0 %v1061
  %v1331 = vpop.f32.mrf.mxu0
  %v1332 = vadd.f32 %v1098, %v1331
  %v1333 = vpop.f32.mrf.mxu0
  %v1334 = vadd.f32 %v1098, %v1333
  %1335 = vdwg.mxu0
  %1336 = vmatpush.bf16.msra.mxu0 %v1231
  %1337 = vmatpush.bf16.msra.mxu0 %v1227
  %1338 = vmatpush.bf16.msra.mxu0 %v1223
  %1339 = vmatpush.bf16.msra.mxu0 %v1219
  %1340 = vmatpush.bf16.msra.mxu0 %v1215
  %1341 = vmatpush.bf16.msra.mxu0 %v1211
  %1342 = vmatpush.bf16.msra.mxu0 %v1207
  %1343 = vmatpush.bf16.msra.mxu0 %v1203
  %1344 = vmatmul.bf16.gmra.mxu0 %v1059
  %v1345 = vpop.f32.mrf.mxu0
  %v1346 = vadd.f32 %v1099, %v1345
  %v1347 = vpop.f32.mrf.mxu0
  %v1348 = vadd.f32 %v1099, %v1347
  %1349 = vmatmul.bf16.gmra.mxu0 %v1060
  %v1350 = vpop.f32.mrf.mxu0
  %v1351 = vadd.f32 %v1099, %v1350
  %v1352 = vpop.f32.mrf.mxu0
  %v1353 = vadd.f32 %v1099, %v1352
  %1354 = vmatmul.bf16.gmra.mxu0 %v1061
  %v1355 = vpop.f32.mrf.mxu0
  %v1356 = vadd.f32 %v1099, %v1355
  %v1357 = vpop.f32.mrf.mxu0
  %v1358 = vadd.f32 %v1099, %v1357
  %1359 = vdwg.mxu0
  %v1360 = vmul.f32 %v1274, %v1274
  %v1361 = vmul.f32 %v1298, %v1298
  %v1362 = vmul.f32 %v1322, %v1322
  %v1363 = vmul.f32 %v1346, %v1346
  %v1364 = vmul.f32 %v1276, %v1276
  %v1365 = vmul.f32 %v1300, %v1300
  %v1366 = vmul.f32 %v1324, %v1324
  %v1367 = vmul.f32 %v1348, %v1348
  %v1368 = vmul.f32 %v1279, %v1279
  %v1369 = vmul.f32 %v1303, %v1303
  %v1370 = vmul.f32 %v1327, %v1327
  %v1371 = vmul.f32 %v1351, %v1351
  %v1372 = vmul.f32 %v1281, %v1281
  %v1373 = vmul.f32 %v1305, %v1305
  %v1374 = vmul.f32 %v1329, %v1329
  %v1375 = vmul.f32 %v1353, %v1353
  %v1376 = vmul.f32 %v1284, %v1284
  %v1377 = vmul.f32 %v1308, %v1308
  %v1378 = vmul.f32 %v1332, %v1332
  %v1379 = vmul.f32 %v1356, %v1356
  %v1380 = vmul.f32 %v1286, %v1286
  %v1381 = vmul.f32 %v1310, %v1310
  %v1382 = vmul.f32 %v1334, %v1334
  %v1383 = vmul.f32 %v1358, %v1358
  %v1384 = vmul.f32 %v1274, %v1360
  %v1385 = vmul.f32 %v1298, %v1361
  %v1386 = vmul.f32 %v1322, %v1362
  %v1387 = vmul.f32 %v1346, %v1363
  %v1388 = vmul.f32 %v1276, %v1364
  %v1389 = vmul.f32 %v1300, %v1365
  %v1390 = vmul.f32 %v1324, %v1366
  %v1391 = vmul.f32 %v1348, %v1367
  %v1392 = vmul.f32 %v1279, %v1368
  %v1393 = vmul.f32 %v1303, %v1369
  %v1394 = vmul.f32 %v1327, %v1370
  %v1395 = vmul.f32 %v1351, %v1371
  %v1396 = vmul.f32 %v1281, %v1372
  %v1397 = vmul.f32 %v1305, %v1373
  %v1398 = vmul.f32 %v1329, %v1374
  %v1399 = vmul.f32 %v1353, %v1375
  %v1400 = vmul.f32 %v1284, %v1376
  %v1401 = vmul.f32 %v1308, %v1377
  %v1402 = vmul.f32 %v1332, %v1378
  %v1403 = vmul.f32 %v1356, %v1379
  %v1404 = vmul.f32 %v1286, %v1380
  %v1405 = vmul.f32 %v1310, %v1381
  %v1406 = vmul.f32 %v1334, %v1382
  %v1407 = vmul.f32 %v1358, %v1383
  %v1408 = vmul.f32 %v1384, 0.044715
  %v1409 = vmul.f32 %v1385, 0.044715
  %v1410 = vmul.f32 %v1386, 0.044715
  %v1411 = vmul.f32 %v1387, 0.044715
  %v1412 = vmul.f32 %v1388, 0.044715
  %v1413 = vmul.f32 %v1389, 0.044715
  %v1414 = vmul.f32 %v1390, 0.044715
  %v1415 = vmul.f32 %v1391, 0.044715
  %v1416 = vmul.f32 %v1392, 0.044715
  %v1417 = vmul.f32 %v1393, 0.044715
  %v1418 = vmul.f32 %v1394, 0.044715
  %v1419 = vmul.f32 %v1395, 0.044715
  %v1420 = vmul.f32 %v1396, 0.044715
  %v1421 = vmul.f32 %v1397, 0.044715
  %v1422 = vmul.f32 %v1398, 0.044715
  %v1423 = vmul.f32 %v1399, 0.044715
  %v1424 = vmul.f32 %v1400, 0.044715
  %v1425 = vmul.f32 %v1401, 0.044715
  %v1426 = vmul.f32 %v1402, 0.044715
  %v1427 = vmul.f32 %v1403, 0.044715
  %v1428 = vmul.f32 %v1404, 0.044715
  %v1429 = vmul.f32 %v1405, 0.044715
  %v1430 = vmul.f32 %v1406, 0.044715
  %v1431 = vmul.f32 %v1407, 0.044715
  %v1432 = vadd.f32 %v1274, %v1408
  %v1433 = vadd.f32 %v1298, %v1409
  %v1434 = vadd.f32 %v1322, %v1410
  %v1435 = vadd.f32 %v1346, %v1411
  %v1436 = vadd.f32 %v1276, %v1412
  %v1437 = vadd.f32 %v1300, %v1413
  %v1438 = vadd.f32 %v1324, %v1414
  %v1439 = vadd.f32 %v1348, %v1415
  %v1440 = vadd.f32 %v1279, %v1416
  %v1441 = vadd.f32 %v1303, %v1417
  %v1442 = vadd.f32 %v1327, %v1418
  %v1443 = vadd.f32 %v1351, %v1419
  %v1444 = vadd.f32 %v1281, %v1420
  %v1445 = vadd.f32 %v1305, %v1421
  %v1446 = vadd.f32 %v1329, %v1422
  %v1447 = vadd.f32 %v1353, %v1423
  %v1448 = vadd.f32 %v1284, %v1424
  %v1449 = vadd.f32 %v1308, %v1425
  %v1450 = vadd.f32 %v1332, %v1426
  %v1451 = vadd.f32 %v1356, %v1427
  %v1452 = vadd.f32 %v1286, %v1428
  %v1453 = vadd.f32 %v1310, %v1429
  %v1454 = vadd.f32 %v1334, %v1430
  %v1455 = vadd.f32 %v1358, %v1431
  %v1456 = vmul.f32 %v1432, 0.7978846
  %v1457 = vmul.f32 %v1433, 0.7978846
  %v1458 = vmul.f32 %v1434, 0.7978846
  %v1459 = vmul.f32 %v1435, 0.7978846
  %v1460 = vmul.f32 %v1436, 0.7978846
  %v1461 = vmul.f32 %v1437, 0.7978846
  %v1462 = vmul.f32 %v1438, 0.7978846
  %v1463 = vmul.f32 %v1439, 0.7978846
  %v1464 = vmul.f32 %v1440, 0.7978846
  %v1465 = vmul.f32 %v1441, 0.7978846
  %v1466 = vmul.f32 %v1442, 0.7978846
  %v1467 = vmul.f32 %v1443, 0.7978846
  %v1468 = vmul.f32 %v1444, 0.7978846
  %v1469 = vmul.f32 %v1445, 0.7978846
  %v1470 = vmul.f32 %v1446, 0.7978846
  %v1471 = vmul.f32 %v1447, 0.7978846
  %v1472 = vmul.f32 %v1448, 0.7978846
  %v1473 = vmul.f32 %v1449, 0.7978846
  %v1474 = vmul.f32 %v1450, 0.7978846
  %v1475 = vmul.f32 %v1451, 0.7978846
  %v1476 = vmul.f32 %v1452, 0.7978846
  %v1477 = vmul.f32 %v1453, 0.7978846
  %v1478 = vmul.f32 %v1454, 0.7978846
  %v1479 = vmul.f32 %v1455, 0.7978846
  %v1480 = vtanh.pop %v1456
  %v1481 = vtanh.pop %v1457
  %v1482 = vtanh.pop %v1458
  %v1483 = vtanh.pop %v1459
  %v1484 = vtanh.pop %v1460
  %v1485 = vtanh.pop %v1461
  %v1486 = vtanh.pop %v1462
  %v1487 = vtanh.pop %v1463
  %v1488 = vtanh.pop %v1464
  %v1489 = vtanh.pop %v1465
  %v1490 = vtanh.pop %v1466
  %v1491 = vtanh.pop %v1467
  %v1492 = vtanh.pop %v1468
  %v1493 = vtanh.pop %v1469
  %v1494 = vtanh.pop %v1470
  %v1495 = vtanh.pop %v1471
  %v1496 = vtanh.pop %v1472
  %v1497 = vtanh.pop %v1473
  %v1498 = vtanh.pop %v1474
  %v1499 = vtanh.pop %v1475
  %v1500 = vtanh.pop %v1476
  %v1501 = vtanh.pop %v1477
  %v1502 = vtanh.pop %v1478
  %v1503 = vtanh.pop %v1479
  %v1504 = vadd.f32 %v1480, 1.0
  %v1505 = vadd.f32 %v1481, 1.0
  %v1506 = vadd.f32 %v1482, 1.0
  %v1507 = vadd.f32 %v1483, 1.0
  %v1508 = vadd.f32 %v1484, 1.0
  %v1509 = vadd.f32 %v1485, 1.0
  %v1510 = vadd.f32 %v1486, 1.0
  %v1511 = vadd.f32 %v1487, 1.0
  %v1512 = vadd.f32 %v1488, 1.0
  %v1513 = vadd.f32 %v1489, 1.0
  %v1514 = vadd.f32 %v1490, 1.0
  %v1515 = vadd.f32 %v1491, 1.0
  %v1516 = vadd.f32 %v1492, 1.0
  %v1517 = vadd.f32 %v1493, 1.0
  %v1518 = vadd.f32 %v1494, 1.0
  %v1519 = vadd.f32 %v1495, 1.0
  %v1520 = vadd.f32 %v1496, 1.0
  %v1521 = vadd.f32 %v1497, 1.0
  %v1522 = vadd.f32 %v1498, 1.0
  %v1523 = vadd.f32 %v1499, 1.0
  %v1524 = vadd.f32 %v1500, 1.0
  %v1525 = vadd.f32 %v1501, 1.0
  %v1526 = vadd.f32 %v1502, 1.0
  %v1527 = vadd.f32 %v1503, 1.0
  %v1528 = vmul.f32 %v1504, 0.5
  %v1529 = vmul.f32 %v1505, 0.5
  %v1530 = vmul.f32 %v1506, 0.5
  %v1531 = vmul.f32 %v1507, 0.5
  %v1532 = vmul.f32 %v1508, 0.5
  %v1533 = vmul.f32 %v1509, 0.5
  %v1534 = vmul.f32 %v1510, 0.5
  %v1535 = vmul.f32 %v1511, 0.5
  %v1536 = vmul.f32 %v1512, 0.5
  %v1537 = vmul.f32 %v1513, 0.5
  %v1538 = vmul.f32 %v1514, 0.5
  %v1539 = vmul.f32 %v1515, 0.5
  %v1540 = vmul.f32 %v1516, 0.5
  %v1541 = vmul.f32 %v1517, 0.5
  %v1542 = vmul.f32 %v1518, 0.5
  %v1543 = vmul.f32 %v1519, 0.5
  %v1544 = vmul.f32 %v1520, 0.5
  %v1545 = vmul.f32 %v1521, 0.5
  %v1546 = vmul.f32 %v1522, 0.5
  %v1547 = vmul.f32 %v1523, 0.5
  %v1548 = vmul.f32 %v1524, 0.5
  %v1549 = vmul.f32 %v1525, 0.5
  %v1550 = vmul.f32 %v1526, 0.5
  %v1551 = vmul.f32 %v1527, 0.5
  %v1552 = vmul.f32 %v1274, %v1528
  %v1553 = vmul.f32 %v1298, %v1529
  %v1554 = vmul.f32 %v1322, %v1530
  %v1555 = vmul.f32 %v1346, %v1531
  %v1556 = vmul.f32 %v1276, %v1532
  %v1557 = vmul.f32 %v1300, %v1533
  %v1558 = vmul.f32 %v1324, %v1534
  %v1559 = vmul.f32 %v1348, %v1535
  %v1560 = vmul.f32 %v1279, %v1536
  %v1561 = vmul.f32 %v1303, %v1537
  %v1562 = vmul.f32 %v1327, %v1538
  %v1563 = vmul.f32 %v1351, %v1539
  %v1564 = vmul.f32 %v1281, %v1540
  %v1565 = vmul.f32 %v1305, %v1541
  %v1566 = vmul.f32 %v1329, %v1542
  %v1567 = vmul.f32 %v1353, %v1543
  %v1568 = vmul.f32 %v1284, %v1544
  %v1569 = vmul.f32 %v1308, %v1545
  %v1570 = vmul.f32 %v1332, %v1546
  %v1571 = vmul.f32 %v1356, %v1547
  %v1572 = vmul.f32 %v1286, %v1548
  %v1573 = vmul.f32 %v1310, %v1549
  %v1574 = vmul.f32 %v1334, %v1550
  %v1575 = vmul.f32 %v1358, %v1551
  %v1576 = vpack.c.bf16 %v1556, %v1552
  %v1577 = vpack.c.bf16 %v1557, %v1553
  %v1578 = vpack.c.bf16 %v1558, %v1554
  %v1579 = vpack.c.bf16 %v1559, %v1555
  %v1580 = vpack.c.bf16 %v1564, %v1560
  %v1581 = vpack.c.bf16 %v1565, %v1561
  %v1582 = vpack.c.bf16 %v1566, %v1562
  %v1583 = vpack.c.bf16 %v1567, %v1563
  %v1584 = vpack.c.bf16 %v1572, %v1568
  %v1585 = vpack.c.bf16 %v1573, %v1569
  %v1586 = vpack.c.bf16 %v1574, %v1570
  %v1587 = vpack.c.bf16 %v1575, %v1571
  %v1588 = vld [vmem:[%s8] sm:$0xf]
  %v1589 = vld [vmem:[%s8 + $0x4] sm:$0xf]
  %v1590 = vld [vmem:[%s8 + $0x8] sm:$0xf]
  %v1591 = vld [vmem:[%s8 + $0xc] sm:$0xf]
  %v1592 = vld [vmem:[%s8 + $0x10] sm:$0xf]
  %v1593 = vld [vmem:[%s8 + $0x14] sm:$0xf]
  %v1594 = vld [vmem:[%s8 + $0x18] sm:$0xf]
  %v1595 = vld [vmem:[%s8 + $0x1c] sm:$0xf]
  %v1596 = vld [vmem:[%s8 + $0x20] sm:$0xf]
  %v1597 = vld [vmem:[%s8 + $0x24] sm:$0xf]
  %v1598 = vld [vmem:[%s8 + $0x28] sm:$0xf]
  %v1599 = vld [vmem:[%s8 + $0x2c] sm:$0xf]
  %v1600 = vld [vmem:[%s8 + $0x30] sm:$0xf]
  %v1601 = vld [vmem:[%s8 + $0x34] sm:$0xf]
  %v1602 = vld [vmem:[%s8 + $0x38] sm:$0xf]
  %v1603 = vld [vmem:[%s8 + $0x3c] sm:$0xf]
  %v1604 = vld [vmem:[%s8 + $0x40] sm:$0xf]
  %v1605 = vld [vmem:[%s8 + $0x44] sm:$0xf]
  %v1606 = vld [vmem:[%s8 + $0x48] sm:$0xf]
  %v1607 = vld [vmem:[%s8 + $0x4c] sm:$0xf]
  %v1608 = vld [vmem:[%s8 + $0x50] sm:$0xf]
  %v1609 = vld [vmem:[%s8 + $0x54] sm:$0xf]
  %v1610 = vld [vmem:[%s8 + $0x58] sm:$0xf]
  %v1611 = vld [vmem:[%s8 + $0x5c] sm:$0xf]
  %v1612 = vld [vmem:[%s8 + $0x60] sm:$0xf]
  %v1613 = vld [vmem:[%s8 + $0x64] sm:$0xf]
  %v1614 = vld [vmem:[%s8 + $0x68] sm:$0xf]
  %v1615 = vld [vmem:[%s8 + $0x6c] sm:$0xf]
  %v1616 = vld [vmem:[%s8 + $0x70] sm:$0xf]
  %v1617 = vld [vmem:[%s8 + $0x74] sm:$0xf]
  %v1618 = vld [vmem:[%s8 + $0x78] sm:$0xf]
  %v1619 = vld [vmem:[%s8 + $0x7c] sm:$0xf]
  %v1620 = vld [vmem:[%s8 + $0x80] sm:$0xf]
  %v1621 = vld [vmem:[%s8 + $0x84] sm:$0xf]
  %v1622 = vld [vmem:[%s8 + $0x88] sm:$0xf]
  %v1623 = vld [vmem:[%s8 + $0x8c] sm:$0xf]
  %v1624 = vld [vmem:[%s8 + $0x90] sm:$0xf]
  %v1625 = vld [vmem:[%s8 + $0x94] sm:$0xf]
  %v1626 = vld [vmem:[%s8 + $0x98] sm:$0xf]
  %v1627 = vld [vmem:[%s8 + $0x9c] sm:$0xf]
  %v1628 = vld [vmem:[%s8 + $0xa0] sm:$0xf]
  %v1629 = vld [vmem:[%s8 + $0xa4] sm:$0xf]
  %v1630 = vld [vmem:[%s8 + $0xa8] sm:$0xf]
  %v1631 = vld [vmem:[%s8 + $0xac] sm:$0xf]
  %v1632 = vld [vmem:[%s8 + $0xb0] sm:$0xf]
  %v1633 = vld [vmem:[%s8 + $0xb4] sm:$0xf]
  %v1634 = vld [vmem:[%s8 + $0xb8] sm:$0xf]
  %v1635 = vld [vmem:[%s8 + $0xbc] sm:$0xf]
  %v1636 = vld [vmem:[%s8 + $0xc0] sm:$0xf]
  %v1637 = vld [vmem:[%s8 + $0xc4] sm:$0xf]
  %v1638 = vld [vmem:[%s8 + $0xc8] sm:$0xf]
  %v1639 = vld [vmem:[%s8 + $0xcc] sm:$0xf]
  %v1640 = vld [vmem:[%s8 + $0xd0] sm:$0xf]
  %v1641 = vld [vmem:[%s8 + $0xd4] sm:$0xf]
  %v1642 = vld [vmem:[%s8 + $0xd8] sm:$0xf]
  %v1643 = vld [vmem:[%s8 + $0xdc] sm:$0xf]
  %v1644 = vld [vmem:[%s8 + $0xe0] sm:$0xf]
  %v1645 = vld [vmem:[%s8 + $0xe4] sm:$0xf]
  %v1646 = vld [vmem:[%s8 + $0xe8] sm:$0xf]
  %v1647 = vld [vmem:[%s8 + $0xec] sm:$0xf]
  %v1648 = vld [vmem:[%s8 + $0xf0] sm:$0xf]
  %v1649 = vld [vmem:[%s8 + $0xf4] sm:$0xf]
  %v1650 = vld [vmem:[%s8 + $0xf8] sm:$0xf]
  %v1651 = vld [vmem:[%s8 + $0xfc] sm:$0xf]
  %v1716 = vunpack.c.l.b16 %v1588
  %v1717 = vunpack.c.l.b16 %v1589
  %v1718 = vunpack.c.l.b16 %v1590
  %v1719 = vunpack.c.l.b16 %v1591
  %v1720 = vunpack.c.l.b16 %v1592
  %v1721 = vunpack.c.l.b16 %v1593
  %v1722 = vunpack.c.l.b16 %v1594
  %v1723 = vunpack.c.l.b16 %v1595
  %v1724 = vunpack.c.l.b16 %v1596
  %v1725 = vunpack.c.l.b16 %v1597
  %v1726 = vunpack.c.l.b16 %v1598
  %v1727 = vunpack.c.l.b16 %v1599
  %v1728 = vunpack.c.l.b16 %v1600
  %v1729 = vunpack.c.l.b16 %v1601
  %v1730 = vunpack.c.l.b16 %v1602
  %v1731 = vunpack.c.l.b16 %v1603
  %v1732 = vunpack.c.l.b16 %v1604
  %v1733 = vunpack.c.l.b16 %v1605
  %v1734 = vunpack.c.l.b16 %v1606
  %v1735 = vunpack.c.l.b16 %v1607
  %v1736 = vunpack.c.l.b16 %v1608
  %v1737 = vunpack.c.l.b16 %v1609
  %v1738 = vunpack.c.l.b16 %v1610
  %v1739 = vunpack.c.l.b16 %v1611
  %v1740 = vunpack.c.l.b16 %v1612
  %v1741 = vunpack.c.l.b16 %v1613
  %v1742 = vunpack.c.l.b16 %v1614
  %v1743 = vunpack.c.l.b16 %v1615
  %v1744 = vunpack.c.l.b16 %v1616
  %v1745 = vunpack.c.l.b16 %v1617
  %v1746 = vunpack.c.l.b16 %v1618
  %v1747 = vunpack.c.l.b16 %v1619
  %v1748 = vunpack.c.l.b16 %v1620
  %v1749 = vunpack.c.l.b16 %v1621
  %v1750 = vunpack.c.l.b16 %v1622
  %v1751 = vunpack.c.l.b16 %v1623
  %v1752 = vunpack.c.l.b16 %v1624
  %v1753 = vunpack.c.l.b16 %v1625
  %v1754 = vunpack.c.l.b16 %v1626
  %v1755 = vunpack.c.l.b16 %v1627
  %v1756 = vunpack.c.l.b16 %v1628
  %v1757 = vunpack.c.l.b16 %v1629
  %v1758 = vunpack.c.l.b16 %v1630
  %v1759 = vunpack.c.l.b16 %v1631
  %v1760 = vunpack.c.l.b16 %v1632
  %v1761 = vunpack.c.l.b16 %v1633
  %v1762 = vunpack.c.l.b16 %v1634
  %v1763 = vunpack.c.l.b16 %v1635
  %v1764 = vunpack.c.l.b16 %v1636
  %v1765 = vunpack.c.l.b16 %v1637
  %v1766 = vunpack.c.l.b16 %v1638
  %v1767 = vunpack.c.l.b16 %v1639
  %v1768 = vunpack.c.l.b16 %v1640
  %v1769 = vunpack.c.l.b16 %v1641
  %v1770 = vunpack.c.l.b16 %v1642
  %v1771 = vunpack.c.l.b16 %v1643
  %v1772 = vunpack.c.l.b16 %v1644
  %v1773 = vunpack.c.l.b16 %v1645
  %v1774 = vunpack.c.l.b16 %v1646
  %v1775 = vunpack.c.l.b16 %v1647
  %v1776 = vunpack.c.l.b16 %v1648
  %v1777 = vunpack.c.l.b16 %v1649
  %v1778 = vunpack.c.l.b16 %v1650
  %v1779 = vunpack.c.l.b16 %v1651
  %v1780 = vpack.c.b16 %v1717, %v1716
  %v1781 = vpack.c.b16 %v1719, %v1718
  %v1782 = vpack.c.b16 %v1721, %v1720
  %v1783 = vpack.c.b16 %v1723, %v1722
  %v1784 = vpack.c.b16 %v1725, %v1724
  %v1785 = vpack.c.b16 %v1727, %v1726
  %v1786 = vpack.c.b16 %v1729, %v1728
  %v1787 = vpack.c.b16 %v1731, %v1730
  %v1788 = vpack.c.b16 %v1733, %v1732
  %v1789 = vpack.c.b16 %v1735, %v1734
  %v1790 = vpack.c.b16 %v1737, %v1736
  %v1791 = vpack.c.b16 %v1739, %v1738
  %v1792 = vpack.c.b16 %v1741, %v1740
  %v1793 = vpack.c.b16 %v1743, %v1742
  %v1794 = vpack.c.b16 %v1745, %v1744
  %v1795 = vpack.c.b16 %v1747, %v1746
  %v1796 = vpack.c.b16 %v1749, %v1748
  %v1797 = vpack.c.b16 %v1751, %v1750
  %v1798 = vpack.c.b16 %v1753, %v1752
  %v1799 = vpack.c.b16 %v1755, %v1754
  %v1800 = vpack.c.b16 %v1757, %v1756
  %v1801 = vpack.c.b16 %v1759, %v1758
  %v1802 = vpack.c.b16 %v1761, %v1760
  %v1803 = vpack.c.b16 %v1763, %v1762
  %v1804 = vpack.c.b16 %v1765, %v1764
  %v1805 = vpack.c.b16 %v1767, %v1766
  %v1806 = vpack.c.b16 %v1769, %v1768
  %v1807 = vpack.c.b16 %v1771, %v1770
  %v1808 = vpack.c.b16 %v1773, %v1772
  %v1809 = vpack.c.b16 %v1775, %v1774
  %v1810 = vpack.c.b16 %v1777, %v1776
  %v1811 = vpack.c.b16 %v1779, %v1778
  %1844 = vmatpush.bf16.msra.mxu0 %v1787
  %1845 = vmatpush.bf16.msra.mxu0 %v1786
  %1846 = vmatpush.bf16.msra.mxu0 %v1785
  %1847 = vmatpush.bf16.msra.mxu0 %v1784
  %1848 = vmatpush.bf16.msra.mxu0 %v1783
  %1849 = vmatpush.bf16.msra.mxu0 %v1782
  %1850 = vmatpush.bf16.msra.mxu0 %v1781
  %1851 = vmatpush.bf16.msra.mxu0 %v1780
  %1852 = vmatmul.bf16.gmra.mxu0 %v1576
  %v1853 = vpop.f32.mrf.mxu0
  %v1854 = vadd.f32 0.0, %v1853
  %v1855 = vpop.f32.mrf.mxu0
  %v1856 = vadd.f32 0.0, %v1855
  %1857 = vmatmul.bf16.gmra.mxu0 %v1580
  %v1858 = vpop.f32.mrf.mxu0
  %v1859 = vadd.f32 0.0, %v1858
  %v1860 = vpop.f32.mrf.mxu0
  %v1861 = vadd.f32 0.0, %v1860
  %1862 = vmatmul.bf16.gmra.mxu0 %v1584
  %v1863 = vpop.f32.mrf.mxu0
  %v1864 = vadd.f32 0.0, %v1863
  %v1865 = vpop.f32.mrf.mxu0
  %v1866 = vadd.f32 0.0, %v1865
  %1867 = vdwg.mxu0
  %1868 = vmatpush.bf16.msra.mxu0 %v1795
  %1869 = vmatpush.bf16.msra.mxu0 %v1794
  %1870 = vmatpush.bf16.msra.mxu0 %v1793
  %1871 = vmatpush.bf16.msra.mxu0 %v1792
  %1872 = vmatpush.bf16.msra.mxu0 %v1791
  %1873 = vmatpush.bf16.msra.mxu0 %v1790
  %1874 = vmatpush.bf16.msra.mxu0 %v1789
  %1875 = vmatpush.bf16.msra.mxu0 %v1788
  %1876 = vmatmul.bf16.gmra.mxu0 %v1577
  %v1877 = vpop.f32.mrf.mxu0
  %v1878 = vadd.f32 %v1854, %v1877
  %v1879 = vpop.f32.mrf.mxu0
  %v1880 = vadd.f32 %v1856, %v1879
  %1881 = vmatmul.bf16.gmra.mxu0 %v1581
  %v1882 = vpop.f32.mrf.mxu0
  %v1883 = vadd.f32 %v1859, %v1882
  %v1884 = vpop.f32.mrf.mxu0
  %v1885 = vadd.f32 %v1861, %v1884
  %1886 = vmatmul.bf16.gmra.mxu0 %v1585
  %v1887 = vpop.f32.mrf.mxu0
  %v1888 = vadd.f32 %v1864, %v1887
  %v1889 = vpop.f32.mrf.mxu0
  %v1890 = vadd.f32 %v1866, %v1889
  %1891 = vdwg.mxu0
  %1892 = vmatpush.bf16.msra.mxu0 %v1803
  %1893 = vmatpush.bf16.msra.mxu0 %v1802
  %1894 = vmatpush.bf16.msra.mxu0 %v1801
  %1895 = vmatpush.bf16.msra.mxu0 %v1800
  %1896 = vmatpush.bf16.msra.mxu0 %v1799
  %1897 = vmatpush.bf16.msra.mxu0 %v1798
  %1898 = vmatpush.bf16.msra.mxu0 %v1797
  %1899 = vmatpush.bf16.msra.mxu0 %v1796
  %1900 = vmatmul.bf16.gmra.mxu0 %v1578
  %v1901 = vpop.f32.mrf.mxu0
  %v1902 = vadd.f32 %v1878, %v1901
  %v1903 = vpop.f32.mrf.mxu0
  %v1904 = vadd.f32 %v1880, %v1903
  %1905 = vmatmul.bf16.gmra.mxu0 %v1582
  %v1906 = vpop.f32.mrf.mxu0
  %v1907 = vadd.f32 %v1883, %v1906
  %v1908 = vpop.f32.mrf.mxu0
  %v1909 = vadd.f32 %v1885, %v1908
  %1910 = vmatmul.bf16.gmra.mxu0 %v1586
  %v1911 = vpop.f32.mrf.mxu0
  %v1912 = vadd.f32 %v1888, %v1911
  %v1913 = vpop.f32.mrf.mxu0
  %v1914 = vadd.f32 %v1890, %v1913
  %1915 = vdwg.mxu0
  %1916 = vmatpush.bf16.msra.mxu0 %v1811
  %1917 = vmatpush.bf16.msra.mxu0 %v1810
  %1918 = vmatpush.bf16.msra.mxu0 %v1809
  %1919 = vmatpush.bf16.msra.mxu0 %v1808
  %1920 = vmatpush.bf16.msra.mxu0 %v1807
  %1921 = vmatpush.bf16.msra.mxu0 %v1806
  %1922 = vmatpush.bf16.msra.mxu0 %v1805
  %1923 = vmatpush.bf16.msra.mxu0 %v1804
  %1924 = vmatmul.bf16.gmra.mxu0 %v1579
  %v1925 = vpop.f32.mrf.mxu0
  %v1926 = vadd.f32 %v1902, %v1925
  %v1927 = vpop.f32.mrf.mxu0
  %v1928 = vadd.f32 %v1904, %v1927
  %1929 = vmatmul.bf16.gmra.mxu0 %v1583
  %v1930 = vpop.f32.mrf.mxu0
  %v1931 = vadd.f32 %v1907, %v1930
  %v1932 = vpop.f32.mrf.mxu0
  %v1933 = vadd.f32 %v1909, %v1932
  %1934 = vmatmul.bf16.gmra.mxu0 %v1587
  %v1935 = vpop.f32.mrf.mxu0
  %v1936 = vadd.f32 %v1912, %v1935
  %v1937 = vpop.f32.mrf.mxu0
  %v1938 = vadd.f32 %v1914, %v1937
  %1939 = vdwg.mxu0
  %v1940 = vadd.f32 %v933, %v1926
  %v1941 = vadd.f32 %v934, %v1928
  %v1942 = vadd.f32 %v935, %v1931
  %v1943 = vadd.f32 %v936, %v1933
  %v1944 = vadd.f32 %v937, %v1936
  %v1945 = vadd.f32 %v938, %v1938
  %v1946 = vld [vmem:[%s9] sm:$0x1]
  %v1948 = vperm.slane %v1946, 0
  %v1950 = vadd.f32 %v1940, %v1948
  %v1951 = vadd.f32 %v1941, %v1948
  %v1952 = vadd.f32 %v1942, %v1948
  %v1953 = vadd.f32 %v1943, %v1948
  %v1954 = vadd.f32 %v1944, %v1948
  %v1955 = vadd.f32 %v1945, %v1948
  %1956 = vadd.xlane.f32.xlu0 %v1950
  %v1957 = vpop.xlane.xlu0 %1956
  %1958 = vadd.xlane.f32.xlu0 %v1951
  %v1959 = vpop.xlane.xlu0 %1958
  %1960 = vadd.xlane.f32.xlu0 %v1952
  %v1961 = vpop.xlane.xlu0 %1960
  %1962 = vadd.xlane.f32.xlu0 %v1953
  %v1963 = vpop.xlane.xlu0 %1962
  %1964 = vadd.xlane.f32.xlu0 %v1954
  %v1965 = vpop.xlane.xlu0 %1964
  %1966 = vadd.xlane.f32.xlu0 %v1955
  %v1967 = vpop.xlane.xlu0 %1966
  %v1968 = vmul.f32 %v1957, %v121
  %v1969 = vmul.f32 %v1959, %v121
  %v1970 = vmul.f32 %v1961, %v121
  %v1971 = vmul.f32 %v1963, %v121
  %v1972 = vmul.f32 %v1965, %v121
  %v1973 = vmul.f32 %v1967, %v121
  %v1974 = vsub.f32 %v1950, %v1968
  %v1975 = vsub.f32 %v1951, %v1969
  %v1976 = vsub.f32 %v1952, %v1970
  %v1977 = vsub.f32 %v1953, %v1971
  %v1978 = vsub.f32 %v1954, %v1972
  %v1979 = vsub.f32 %v1955, %v1973
  %v1980 = vmul.f32 %v1974, %v1974
  %v1981 = vmul.f32 %v1975, %v1975
  %v1982 = vmul.f32 %v1976, %v1976
  %v1983 = vmul.f32 %v1977, %v1977
  %v1984 = vmul.f32 %v1978, %v1978
  %v1985 = vmul.f32 %v1979, %v1979
  %1986 = vadd.xlane.f32.xlu0 %v1980
  %v1987 = vpop.xlane.xlu0 %1986
  %1988 = vadd.xlane.f32.xlu0 %v1981
  %v1989 = vpop.xlane.xlu0 %1988
  %1990 = vadd.xlane.f32.xlu0 %v1982
  %v1991 = vpop.xlane.xlu0 %1990
  %1992 = vadd.xlane.f32.xlu0 %v1983
  %v1993 = vpop.xlane.xlu0 %1992
  %1994 = vadd.xlane.f32.xlu0 %v1984
  %v1995 = vpop.xlane.xlu0 %1994
  %1996 = vadd.xlane.f32.xlu0 %v1985
  %v1997 = vpop.xlane.xlu0 %1996
  %v1998 = vmul.f32 %v1987, %v121
  %v1999 = vmul.f32 %v1989, %v121
  %v2000 = vmul.f32 %v1991, %v121
  %v2001 = vmul.f32 %v1993, %v121
  %v2002 = vmul.f32 %v1995, %v121
  %v2003 = vmul.f32 %v1997, %v121
  %v2004 = vadd.f32 %v1998, 1e-06
  %v2005 = vadd.f32 %v1999, 1e-06
  %v2006 = vadd.f32 %v2000, 1e-06
  %v2007 = vadd.f32 %v2001, 1e-06
  %v2008 = vadd.f32 %v2002, 1e-06
  %v2009 = vadd.f32 %v2003, 1e-06
  %v2010 = vrsqrt.pop %v2004
  %v2011 = vmul.f32 %v2010, %v2004
  %v2012 = vmul.f32 %v2011, %v2010
  %v2013 = vmul.f32 0.5, %v2012
  %v2014 = vsub.f32 1.5, %v2013
  %v2015 = vmul.f32 %v2010, %v2014
  %vm2016 = vweird.f32 %v2004
  %vm2017 = vweird.f32 %v2010
  %vm2018 = vmor %vm2016, %vm2017
  %v2019 = vsel %vm2018, %v2010, %v2015
  %v2020 = vrsqrt.pop %v2005
  %v2021 = vmul.f32 %v2020, %v2005
  %v2022 = vmul.f32 %v2021, %v2020
  %v2023 = vmul.f32 0.5, %v2022
  %v2024 = vsub.f32 1.5, %v2023
  %v2025 = vmul.f32 %v2020, %v2024
  %vm2026 = vweird.f32 %v2005
  %vm2027 = vweird.f32 %v2020
  %vm2028 = vmor %vm2026, %vm2027
  %v2029 = vsel %vm2028, %v2020, %v2025
  %v2030 = vrsqrt.pop %v2006
  %v2031 = vmul.f32 %v2030, %v2006
  %v2032 = vmul.f32 %v2031, %v2030
  %v2033 = vmul.f32 0.5, %v2032
  %v2034 = vsub.f32 1.5, %v2033
  %v2035 = vmul.f32 %v2030, %v2034
  %vm2036 = vweird.f32 %v2006
  %vm2037 = vweird.f32 %v2030
  %vm2038 = vmor %vm2036, %vm2037
  %v2039 = vsel %vm2038, %v2030, %v2035
  %v2040 = vrsqrt.pop %v2007
  %v2041 = vmul.f32 %v2040, %v2007
  %v2042 = vmul.f32 %v2041, %v2040
  %v2043 = vmul.f32 0.5, %v2042
  %v2044 = vsub.f32 1.5, %v2043
  %v2045 = vmul.f32 %v2040, %v2044
  %vm2046 = vweird.f32 %v2007
  %vm2047 = vweird.f32 %v2040
  %vm2048 = vmor %vm2046, %vm2047
  %v2049 = vsel %vm2048, %v2040, %v2045
  %v2050 = vrsqrt.pop %v2008
  %v2051 = vmul.f32 %v2050, %v2008
  %v2052 = vmul.f32 %v2051, %v2050
  %v2053 = vmul.f32 0.5, %v2052
  %v2054 = vsub.f32 1.5, %v2053
  %v2055 = vmul.f32 %v2050, %v2054
  %vm2056 = vweird.f32 %v2008
  %vm2057 = vweird.f32 %v2050
  %vm2058 = vmor %vm2056, %vm2057
  %v2059 = vsel %vm2058, %v2050, %v2055
  %v2060 = vrsqrt.pop %v2009
  %v2061 = vmul.f32 %v2060, %v2009
  %v2062 = vmul.f32 %v2061, %v2060
  %v2063 = vmul.f32 0.5, %v2062
  %v2064 = vsub.f32 1.5, %v2063
  %v2065 = vmul.f32 %v2060, %v2064
  %vm2066 = vweird.f32 %v2009
  %vm2067 = vweird.f32 %v2060
  %vm2068 = vmor %vm2066, %vm2067
  %v2069 = vsel %vm2068, %v2060, %v2065
  %v2070 = vmul.f32 %v1974, %v2019
  %v2071 = vmul.f32 %v1975, %v2029
  %v2072 = vmul.f32 %v1976, %v2039
  %v2073 = vmul.f32 %v1977, %v2049
  %v2074 = vmul.f32 %v1978, %v2059
  %v2075 = vmul.f32 %v1979, %v2069
  %v2076 = vpack.c.bf16 %v2071, %v2070
  %v2077 = vpack.c.bf16 %v2073, %v2072
  %v2078 = vpack.c.bf16 %v2075, %v2074
  %s2079 = scalar_lea.vmem %s2, 192
  %v2080 = vld [vmem:[%s2079] sm:$0xff]
  %v2081 = vld [vmem:[%s2079 + $0x8] sm:$0xf]
  %v2082 = vld [vmem:[%s2079 + $0xc] sm:$0xff]
  %v2083 = vld [vmem:[%s2079 + $0x14] sm:$0xf]
  %v2084 = vld [vmem:[%s2079 + $0x18] sm:$0xff]
  %v2085 = vld [vmem:[%s2079 + $0x20] sm:$0xf]
  %v2086 = vld [vmem:[%s2079 + $0x24] sm:$0xff]
  %v2087 = vld [vmem:[%s2079 + $0x2c] sm:$0xf]
  %v2088 = vld [vmem:[%s2079 + $0x30] sm:$0xff]
  %v2089 = vld [vmem:[%s2079 + $0x38] sm:$0xf]
  %v2090 = vld [vmem:[%s2079 + $0x3c] sm:$0xff]
  %v2091 = vld [vmem:[%s2079 + $0x44] sm:$0xf]
  %v2092 = vld [vmem:[%s2079 + $0x48] sm:$0xff]
  %v2093 = vld [vmem:[%s2079 + $0x50] sm:$0xf]
  %v2094 = vld [vmem:[%s2079 + $0x54] sm:$0xff]
  %v2095 = vld [vmem:[%s2079 + $0x5c] sm:$0xf]
  %v2096 = vld [vmem:[%s2079 + $0x60] sm:$0xff]
  %v2097 = vld [vmem:[%s2079 + $0x68] sm:$0xf]
  %v2098 = vld [vmem:[%s2079 + $0x6c] sm:$0xff]
  %v2099 = vld [vmem:[%s2079 + $0x74] sm:$0xf]
  %v2100 = vld [vmem:[%s2079 + $0x78] sm:$0xff]
  %v2101 = vld [vmem:[%s2079 + $0x80] sm:$0xf]
  %v2102 = vld [vmem:[%s2079 + $0x84] sm:$0xff]
  %v2103 = vld [vmem:[%s2079 + $0x8c] sm:$0xf]
  %v2104 = vld [vmem:[%s2079 + $0x90] sm:$0xff]
  %v2105 = vld [vmem:[%s2079 + $0x98] sm:$0xf]
  %v2106 = vld [vmem:[%s2079 + $0x9c] sm:$0xff]
  %v2107 = vld [vmem:[%s2079 + $0xa4] sm:$0xf]
  %v2108 = vld [vmem:[%s2079 + $0xa8] sm:$0xff]
  %v2109 = vld [vmem:[%s2079 + $0xb0] sm:$0xf]
  %v2110 = vld [vmem:[%s2079 + $0xb4] sm:$0xff]
  %v2111 = vld [vmem:[%s2079 + $0xbc] sm:$0xf]
  %s2112 = scalar_lea.vmem %s3, 3
  %v2113 = vld [vmem:[%s2112] sm:$0x7]
  %v2115 = vperm.slane %v2113, 0
  %v2116 = vperm.slane %v2113, 1
  %v2117 = vperm.slane %v2113, 2
  %v2153 = vunpack.c.l.b16 %v2080
  %v2154 = vunpack.c.h.b16 %v2080
  %v2155 = vunpack.c.l.b16 %v2081
  %v2156 = vunpack.c.l.b16 %v2082
  %v2157 = vunpack.c.h.b16 %v2082
  %v2158 = vunpack.c.l.b16 %v2083
  %v2159 = vunpack.c.l.b16 %v2084
  %v2160 = vunpack.c.h.b16 %v2084
  %v2161 = vunpack.c.l.b16 %v2085
  %v2162 = vunpack.c.l.b16 %v2086
  %v2163 = vunpack.c.h.b16 %v2086
  %v2164 = vunpack.c.l.b16 %v2087
  %v2165 = vunpack.c.l.b16 %v2088
  %v2166 = vunpack.c.h.b16 %v2088
  %v2167 = vunpack.c.l.b16 %v2089
  %v2168 = vunpack.c.l.b16 %v2090
  %v2169 = vunpack.c.h.b16 %v2090
  %v2170 = vunpack.c.l.b16 %v2091
  %v2171 = vunpack.c.l.b16 %v2092
  %v2172 = vunpack.c.h.b16 %v2092
  %v2173 = vunpack.c.l.b16 %v2093
  %v2174 = vunpack.c.l.b16 %v2094
  %v2175 = vunpack.c.h.b16 %v2094
  %v2176 = vunpack.c.l.b16 %v2095
  %v2177 = vunpack.c.l.b16 %v2096
  %v2178 = vunpack.c.h.b16 %v2096
  %v2179 = vunpack.c.l.b16 %v2097
  %v2180 = vunpack.c.l.b16 %v2098
  %v2181 = vunpack.c.h.b16 %v2098
  %v2182 = vunpack.c.l.b16 %v2099
  %v2183 = vunpack.c.l.b16 %v2100
  %v2184 = vunpack.c.h.b16 %v2100
  %v2185 = vunpack.c.l.b16 %v2101
  %v2186 = vunpack.c.l.b16 %v2102
  %v2187 = vunpack.c.h.b16 %v2102
  %v2188 = vunpack.c.l.b16 %v2103
  %v2189 = vunpack.c.l.b16 %v2104
  %v2190 = vunpack.c.h.b16 %v2104
  %v2191 = vunpack.c.l.b16 %v2105
  %v2192 = vunpack.c.l.b16 %v2106
  %v2193 = vunpack.c.h.b16 %v2106
  %v2194 = vunpack.c.l.b16 %v2107
  %v2195 = vunpack.c.l.b16 %v2108
  %v2196 = vunpack.c.h.b16 %v2108
  %v2197 = vunpack.c.l.b16 %v2109
  %v2198 = vunpack.c.l.b16 %v2110
  %v2199 = vunpack.c.h.b16 %v2110
  %v2200 = vunpack.c.l.b16 %v2111
  %v2201 = vpack.c.b16 %v2156, %v2153
  %v2202 = vpack.c.b16 %v2157, %v2154
  %v2203 = vpack.c.b16 %v2158, %v2155
  %v2204 = vpack.c.b16 %v2162, %v2159
  %v2205 = vpack.c.b16 %v2163, %v2160
  %v2206 = vpack.c.b16 %v2164, %v2161
  %v2207 = vpack.c.b16 %v2168, %v2165
  %v2208 = vpack.c.b16 %v2169, %v2166
  %v2209 = vpack.c.b16 %v2170, %v2167
  %v2210 = vpack.c.b16 %v2174, %v2171
  %v2211 = vpack.c.b16 %v2175, %v2172
  %v2212 = vpack.c.b16 %v2176, %v2173
  %v2213 = vpack.c.b16 %v2180, %v2177
  %v2214 = vpack.c.b16 %v2181, %v2178
  %v2215 = vpack.c.b16 %v2182, %v2179
  %v2216 = vpack.c.b16 %v2186, %v2183
  %v2217 = vpack.c.b16 %v2187, %v2184
  %v2218 = vpack.c.b16 %v2188, %v2185
  %v2219 = vpack.c.b16 %v2192, %v2189
  %v2220 = vpack.c.b16 %v2193, %v2190
  %v2221 = vpack.c.b16 %v2194, %v2191
  %v2222 = vpack.c.b16 %v2198, %v2195
  %v2223 = vpack.c.b16 %v2199, %v2196
  %v2224 = vpack.c.b16 %v2200, %v2197
  %2249 = vmatpush.bf16.msra.mxu0 %v2222
  %2250 = vmatpush.bf16.msra.mxu0 %v2219
  %2251 = vmatpush.bf16.msra.mxu0 %v2216
  %2252 = vmatpush.bf16.msra.mxu0 %v2213
  %2253 = vmatpush.bf16.msra.mxu0 %v2210
  %2254 = vmatpush.bf16.msra.mxu0 %v2207
  %2255 = vmatpush.bf16.msra.mxu0 %v2204
  %2256 = vmatpush.bf16.msra.mxu0 %v2201
  %2257 = vmatmul.bf16.gmra.mxu0 %v2076
  %v2258 = vpop.f32.mrf.mxu0
  %v2259 = vadd.f32 %v2115, %v2258
  %v2260 = vpop.f32.mrf.mxu0
  %v2261 = vadd.f32 %v2115, %v2260
  %2262 = vmatmul.bf16.gmra.mxu0 %v2077
  %v2263 = vpop.f32.mrf.mxu0
  %v2264 = vadd.f32 %v2115, %v2263
  %v2265 = vpop.f32.mrf.mxu0
  %v2266 = vadd.f32 %v2115, %v2265
  %2267 = vmatmul.bf16.gmra.mxu0 %v2078
  %v2268 = vpop.f32.mrf.mxu0
  %v2269 = vadd.f32 %v2115, %v2268
  %v2270 = vpop.f32.mrf.mxu0
  %v2271 = vadd.f32 %v2115, %v2270
  %2272 = vdwg.mxu0
  %2273 = vmatpush.bf16.msra.mxu0 %v2223
  %2274 = vmatpush.bf16.msra.mxu0 %v2220
  %2275 = vmatpush.bf16.msra.mxu0 %v2217
  %2276 = vmatpush.bf16.msra.mxu0 %v2214
  %2277 = vmatpush.bf16.msra.mxu0 %v2211
  %2278 = vmatpush.bf16.msra.mxu0 %v2208
  %2279 = vmatpush.bf16.msra.mxu0 %v2205
  %2280 = vmatpush.bf16.msra.mxu0 %v2202
  %2281 = vmatmul.bf16.gmra.mxu0 %v2076
  %v2282 = vpop.f32.mrf.mxu0
  %v2283 = vadd.f32 %v2116, %v2282
  %v2284 = vpop.f32.mrf.mxu0
  %v2285 = vadd.f32 %v2116, %v2284
  %2286 = vmatmul.bf16.gmra.mxu0 %v2077
  %v2287 = vpop.f32.mrf.mxu0
  %v2288 = vadd.f32 %v2116, %v2287
  %v2289 = vpop.f32.mrf.mxu0
  %v2290 = vadd.f32 %v2116, %v2289
  %2291 = vmatmul.bf16.gmra.mxu0 %v2078
  %v2292 = vpop.f32.mrf.mxu0
  %v2293 = vadd.f32 %v2116, %v2292
  %v2294 = vpop.f32.mrf.mxu0
  %v2295 = vadd.f32 %v2116, %v2294
  %2296 = vdwg.mxu0
  %2297 = vmatpush.bf16.msra.mxu0 %v2224
  %2298 = vmatpush.bf16.msra.mxu0 %v2221
  %2299 = vmatpush.bf16.msra.mxu0 %v2218
  %2300 = vmatpush.bf16.msra.mxu0 %v2215
  %2301 = vmatpush.bf16.msra.mxu0 %v2212
  %2302 = vmatpush.bf16.msra.mxu0 %v2209
  %2303 = vmatpush.bf16.msra.mxu0 %v2206
  %2304 = vmatpush.bf16.msra.mxu0 %v2203
  %2305 = vmatmul.bf16.gmra.mxu0 %v2076
  %v2306 = vpop.f32.mrf.mxu0
  %v2307 = vadd.f32 %v2117, %v2306
  %v2308 = vpop.f32.mrf.mxu0
  %v2309 = vadd.f32 %v2117, %v2308
  %2310 = vmatmul.bf16.gmra.mxu0 %v2077
  %v2311 = vpop.f32.mrf.mxu0
  %v2312 = vadd.f32 %v2117, %v2311
  %v2313 = vpop.f32.mrf.mxu0
  %v2314 = vadd.f32 %v2117, %v2313
  %2315 = vmatmul.bf16.gmra.mxu0 %v2078
  %v2316 = vpop.f32.mrf.mxu0
  %v2317 = vadd.f32 %v2117, %v2316
  %v2318 = vpop.f32.mrf.mxu0
  %v2319 = vadd.f32 %v2117, %v2318
  %2320 = vdwg.mxu0
  %v2321 = vpack.c.bf16 %v2261, %v2259
  %v2322 = vpack.c.bf16 %v2266, %v2264
  %v2323 = vpack.c.bf16 %v2271, %v2269
  %v2324 = vpack.c.bf16 %v2285, %v2283
  %v2325 = vpack.c.bf16 %v2290, %v2288
  %v2326 = vpack.c.bf16 %v2295, %v2293
  %v2328 = vsel %vm479, %v2321, 0
  %v2331 = vsel %vm479, %v2322, 0
  %v2334 = vsel %vm479, %v2323, 0
  %v2337 = vsel %vm479, %v2324, 0
  %v2340 = vsel %vm479, %v2325, 0
  %v2343 = vsel %vm479, %v2326, 0
  %2345 = vmatpush.bf16.xpose.msra.mxu0 0
  %2346 = vmatpush.bf16.xpose.msra.mxu0 0
  %2347 = vmatpush.bf16.xpose.msra.mxu0 0
  %2348 = vmatpush.bf16.xpose.msra.mxu0 0
  %2349 = vmatpush.bf16.xpose.msra.mxu0 0
  %2350 = vmatpush.bf16.xpose.msra.mxu0 %v2343
  %2351 = vmatpush.bf16.xpose.msra.mxu0 %v2340
  %2352 = vmatpush.bf16.xpose.msra.mxu0 %v2337
  %2353 = vmatmul.bf16.gmra.mxu0 %v2328
  %v2354 = vpop.f32.mrf.mxu0
  %v2355 = vadd.f32 %v97, %v2354
  %v2356 = vpop.f32.mrf.mxu0
  %v2357 = vadd.f32 %v98, %v2356
  %2358 = vmatmul.bf16.gmra.mxu0 %v2331
  %v2359 = vpop.f32.mrf.mxu0
  %v2360 = vadd.f32 %v99, %v2359
  %v2361 = vpop.f32.mrf.mxu0
  %v2362 = vadd.f32 %v100, %v2361
  %2363 = vmatmul.bf16.gmra.mxu0 %v2334
  %v2364 = vpop.f32.mrf.mxu0
  %v2365 = vadd.f32 %v101, %v2364
  %v2366 = vpop.f32.mrf.mxu0
  %v2367 = vadd.f32 %v102, %v2366
  %2368 = vdwg.mxu0
  %v2369 = vsel %vm522, %v2355, -inf
  %2370 = vmax.xlane.f32.xlu0 %v2369
  %v2371 = vpop.xlane.xlu0 %2370
  %v2372 = vsel %vm522, %v2357, -inf
  %2373 = vmax.xlane.f32.xlu0 %v2372
  %v2374 = vpop.xlane.xlu0 %2373
  %v2375 = vsel %vm522, %v2360, -inf
  %2376 = vmax.xlane.f32.xlu0 %v2375
  %v2377 = vpop.xlane.xlu0 %2376
  %v2378 = vsel %vm522, %v2362, -inf
  %2379 = vmax.xlane.f32.xlu0 %v2378
  %v2380 = vpop.xlane.xlu0 %2379
  %v2381 = vsel %vm522, %v2365, -inf
  %2382 = vmax.xlane.f32.xlu0 %v2381
  %v2383 = vpop.xlane.xlu0 %2382
  %v2384 = vsel %vm522, %v2367, -inf
  %2385 = vmax.xlane.f32.xlu0 %v2384
  %v2386 = vpop.xlane.xlu0 %2385
  %v2387 = vsub.f32 %v2355, %v2371
  %v2388 = vsub.f32 %v2357, %v2374
  %v2389 = vsub.f32 %v2360, %v2377
  %v2390 = vsub.f32 %v2362, %v2380
  %v2391 = vsub.f32 %v2365, %v2383
  %v2392 = vsub.f32 %v2367, %v2386
  %v2393 = vmul.f32 %v2387, 1.442695
  %v2394 = vpow.pop %v2393
  %v2395 = vmul.f32 %v2388, 1.442695
  %v2396 = vpow.pop %v2395
  %v2397 = vmul.f32 %v2389, 1.442695
  %v2398 = vpow.pop %v2397
  %v2399 = vmul.f32 %v2390, 1.442695
  %v2400 = vpow.pop %v2399
  %v2401 = vmul.f32 %v2391, 1.442695
  %v2402 = vpow.pop %v2401
  %v2403 = vmul.f32 %v2392, 1.442695
  %v2404 = vpow.pop %v2403
  %v2405 = vsel %vm522, %v2394, 0.0
  %2406 = vadd.xlane.f32.xlu0 %v2405
  %v2407 = vpop.xlane.xlu0 %2406
  %v2408 = vsel %vm522, %v2396, 0.0
  %2409 = vadd.xlane.f32.xlu0 %v2408
  %v2410 = vpop.xlane.xlu0 %2409
  %v2411 = vsel %vm522, %v2398, 0.0
  %2412 = vadd.xlane.f32.xlu0 %v2411
  %v2413 = vpop.xlane.xlu0 %2412
  %v2414 = vsel %vm522, %v2400, 0.0
  %2415 = vadd.xlane.f32.xlu0 %v2414
  %v2416 = vpop.xlane.xlu0 %2415
  %v2417 = vsel %vm522, %v2402, 0.0
  %2418 = vadd.xlane.f32.xlu0 %v2417
  %v2419 = vpop.xlane.xlu0 %2418
  %v2420 = vsel %vm522, %v2404, 0.0
  %2421 = vadd.xlane.f32.xlu0 %v2420
  %v2422 = vpop.xlane.xlu0 %2421
  %v2423 = vrcp.pop %v2407
  %v2424 = vrcp.pop %v2410
  %v2425 = vrcp.pop %v2413
  %v2426 = vrcp.pop %v2416
  %v2427 = vrcp.pop %v2419
  %v2428 = vrcp.pop %v2422
  %v2429 = vmul.f32 %v2394, %v2423
  %v2430 = vmul.f32 %v2396, %v2424
  %v2431 = vmul.f32 %v2398, %v2425
  %v2432 = vmul.f32 %v2400, %v2426
  %v2433 = vmul.f32 %v2402, %v2427
  %v2434 = vmul.f32 %v2404, %v2428
  %v2435 = vpack.c.bf16 %v2430, %v2429
  %v2436 = vpack.c.bf16 %v2432, %v2431
  %v2437 = vpack.c.bf16 %v2434, %v2433
  %v2438 = vpack.c.bf16 %v2309, %v2307
  %v2439 = vpack.c.bf16 %v2314, %v2312
  %v2440 = vpack.c.bf16 %v2319, %v2317
  %v2442 = vsel %vm522, %v2435, 0
  %v2445 = vsel %vm522, %v2436, 0
  %v2448 = vsel %vm522, %v2437, 0
  %2450 = vmatpush.bf16.msra.mxu0 0
  %2451 = vmatpush.bf16.msra.mxu0 0
  %2452 = vmatpush.bf16.msra.mxu0 0
  %2453 = vmatpush.bf16.msra.mxu0 0
  %2454 = vmatpush.bf16.msra.mxu0 0
  %2455 = vmatpush.bf16.msra.mxu0 %v2440
  %2456 = vmatpush.bf16.msra.mxu0 %v2439
  %2457 = vmatpush.bf16.msra.mxu0 %v2438
  %2458 = vmatmul.bf16.gmra.mxu0 %v2442
  %v2459 = vpop.f32.mrf.mxu0
  %v2460 = vadd.f32 0.0, %v2459
  %v2461 = vpop.f32.mrf.mxu0
  %v2462 = vadd.f32 0.0, %v2461
  %2463 = vmatmul.bf16.gmra.mxu0 %v2445
  %v2464 = vpop.f32.mrf.mxu0
  %v2465 = vadd.f32 0.0, %v2464
  %v2466 = vpop.f32.mrf.mxu0
  %v2467 = vadd.f32 0.0, %v2466
  %2468 = vmatmul.bf16.gmra.mxu0 %v2448
  %v2469 = vpop.f32.mrf.mxu0
  %v2470 = vadd.f32 0.0, %v2469
  %v2471 = vpop.f32.mrf.mxu0
  %v2472 = vadd.f32 0.0, %v2471
  %2473 = vdwg.mxu0
  %2477 = vrot.lane.b32.xlu0 %v2321, 64
  %v2478 = vpop.permute.xlu0 %2477
  %2479 = vrot.lane.b32.xlu0 %v2322, 64
  %v2480 = vpop.permute.xlu0 %2479
  %2481 = vrot.lane.b32.xlu0 %v2323, 64
  %v2482 = vpop.permute.xlu0 %2481
  %2486 = vrot.lane.b32.xlu0 %v2324, 64
  %v2487 = vpop.permute.xlu0 %2486
  %2488 = vrot.lane.b32.xlu0 %v2325, 64
  %v2489 = vpop.permute.xlu0 %2488
  %2490 = vrot.lane.b32.xlu0 %v2326, 64
  %v2491 = vpop.permute.xlu0 %2490
  %v2493 = vsel %vm479, %v2478, 0
  %v2496 = vsel %vm479, %v2480, 0
  %v2499 = vsel %vm479, %v2482, 0
  %v2502 = vsel %vm479, %v2487, 0
  %v2505 = vsel %vm479, %v2489, 0
  %v2508 = vsel %vm479, %v2491, 0
  %2510 = vmatpush.bf16.xpose.msra.mxu0 0
  %2511 = vmatpush.bf16.xpose.msra.mxu0 0
  %2512 = vmatpush.bf16.xpose.msra.mxu0 0
  %2513 = vmatpush.bf16.xpose.msra.mxu0 0
  %2514 = vmatpush.bf16.xpose.msra.mxu0 0
  %2515 = vmatpush.bf16.xpose.msra.mxu0 %v2508
  %2516 = vmatpush.bf16.xpose.msra.mxu0 %v2505
  %2517 = vmatpush.bf16.xpose.msra.mxu0 %v2502
  %2518 = vmatmul.bf16.gmra.mxu0 %v2493
  %v2519 = vpop.f32.mrf.mxu0
  %v2520 = vadd.f32 %v97, %v2519
  %v2521 = vpop.f32.mrf.mxu0
  %v2522 = vadd.f32 %v98, %v2521
  %2523 = vmatmul.bf16.gmra.mxu0 %v2496
  %v2524 = vpop.f32.mrf.mxu0
  %v2525 = vadd.f32 %v99, %v2524
  %v2526 = vpop.f32.mrf.mxu0
  %v2527 = vadd.f32 %v100, %v2526
  %2528 = vmatmul.bf16.gmra.mxu0 %v2499
  %v2529 = vpop.f32.mrf.mxu0
  %v2530 = vadd.f32 %v101, %v2529
  %v2531 = vpop.f32.mrf.mxu0
  %v2532 = vadd.f32 %v102, %v2531
  %2533 = vdwg.mxu0
  %v2534 = vsel %vm522, %v2520, -inf
  %2535 = vmax.xlane.f32.xlu0 %v2534
  %v2536 = vpop.xlane.xlu0 %2535
  %v2537 = vsel %vm522, %v2522, -inf
  %2538 = vmax.xlane.f32.xlu0 %v2537
  %v2539 = vpop.xlane.xlu0 %2538
  %v2540 = vsel %vm522, %v2525, -inf
  %2541 = vmax.xlane.f32.xlu0 %v2540
  %v2542 = vpop.xlane.xlu0 %2541
  %v2543 = vsel %vm522, %v2527, -inf
  %2544 = vmax.xlane.f32.xlu0 %v2543
  %v2545 = vpop.xlane.xlu0 %2544
  %v2546 = vsel %vm522, %v2530, -inf
  %2547 = vmax.xlane.f32.xlu0 %v2546
  %v2548 = vpop.xlane.xlu0 %2547
  %v2549 = vsel %vm522, %v2532, -inf
  %2550 = vmax.xlane.f32.xlu0 %v2549
  %v2551 = vpop.xlane.xlu0 %2550
  %v2552 = vsub.f32 %v2520, %v2536
  %v2553 = vsub.f32 %v2522, %v2539
  %v2554 = vsub.f32 %v2525, %v2542
  %v2555 = vsub.f32 %v2527, %v2545
  %v2556 = vsub.f32 %v2530, %v2548
  %v2557 = vsub.f32 %v2532, %v2551
  %v2558 = vmul.f32 %v2552, 1.442695
  %v2559 = vpow.pop %v2558
  %v2560 = vmul.f32 %v2553, 1.442695
  %v2561 = vpow.pop %v2560
  %v2562 = vmul.f32 %v2554, 1.442695
  %v2563 = vpow.pop %v2562
  %v2564 = vmul.f32 %v2555, 1.442695
  %v2565 = vpow.pop %v2564
  %v2566 = vmul.f32 %v2556, 1.442695
  %v2567 = vpow.pop %v2566
  %v2568 = vmul.f32 %v2557, 1.442695
  %v2569 = vpow.pop %v2568
  %v2570 = vsel %vm522, %v2559, 0.0
  %2571 = vadd.xlane.f32.xlu0 %v2570
  %v2572 = vpop.xlane.xlu0 %2571
  %v2573 = vsel %vm522, %v2561, 0.0
  %2574 = vadd.xlane.f32.xlu0 %v2573
  %v2575 = vpop.xlane.xlu0 %2574
  %v2576 = vsel %vm522, %v2563, 0.0
  %2577 = vadd.xlane.f32.xlu0 %v2576
  %v2578 = vpop.xlane.xlu0 %2577
  %v2579 = vsel %vm522, %v2565, 0.0
  %2580 = vadd.xlane.f32.xlu0 %v2579
  %v2581 = vpop.xlane.xlu0 %2580
  %v2582 = vsel %vm522, %v2567, 0.0
  %2583 = vadd.xlane.f32.xlu0 %v2582
  %v2584 = vpop.xlane.xlu0 %2583
  %v2585 = vsel %vm522, %v2569, 0.0
  %2586 = vadd.xlane.f32.xlu0 %v2585
  %v2587 = vpop.xlane.xlu0 %2586
  %v2588 = vrcp.pop %v2572
  %v2589 = vrcp.pop %v2575
  %v2590 = vrcp.pop %v2578
  %v2591 = vrcp.pop %v2581
  %v2592 = vrcp.pop %v2584
  %v2593 = vrcp.pop %v2587
  %v2594 = vmul.f32 %v2559, %v2588
  %v2595 = vmul.f32 %v2561, %v2589
  %v2596 = vmul.f32 %v2563, %v2590
  %v2597 = vmul.f32 %v2565, %v2591
  %v2598 = vmul.f32 %v2567, %v2592
  %v2599 = vmul.f32 %v2569, %v2593
  %v2600 = vpack.c.bf16 %v2595, %v2594
  %v2601 = vpack.c.bf16 %v2597, %v2596
  %v2602 = vpack.c.bf16 %v2599, %v2598
  %2606 = vrot.lane.b32.xlu0 %v2438, 64
  %v2607 = vpop.permute.xlu0 %2606
  %2608 = vrot.lane.b32.xlu0 %v2439, 64
  %v2609 = vpop.permute.xlu0 %2608
  %2610 = vrot.lane.b32.xlu0 %v2440, 64
  %v2611 = vpop.permute.xlu0 %2610
  %v2616 = vsel %vm522, %v2600, 0
  %v2619 = vsel %vm522, %v2601, 0
  %v2622 = vsel %vm522, %v2602, 0
  %2624 = vmatpush.bf16.msra.mxu0 0
  %2625 = vmatpush.bf16.msra.mxu0 0
  %2626 = vmatpush.bf16.msra.mxu0 0
  %2627 = vmatpush.bf16.msra.mxu0 0
  %2628 = vmatpush.bf16.msra.mxu0 0
  %2629 = vmatpush.bf16.msra.mxu0 %v2611
  %2630 = vmatpush.bf16.msra.mxu0 %v2609
  %2631 = vmatpush.bf16.msra.mxu0 %v2607
  %2632 = vmatmul.bf16.gmra.mxu0 %v2616
  %v2633 = vpop.f32.mrf.mxu0
  %v2634 = vadd.f32 0.0, %v2633
  %v2635 = vpop.f32.mrf.mxu0
  %v2636 = vadd.f32 0.0, %v2635
  %2637 = vmatmul.bf16.gmra.mxu0 %v2619
  %v2638 = vpop.f32.mrf.mxu0
  %v2639 = vadd.f32 0.0, %v2638
  %v2640 = vpop.f32.mrf.mxu0
  %v2641 = vadd.f32 0.0, %v2640
  %2642 = vmatmul.bf16.gmra.mxu0 %v2622
  %v2643 = vpop.f32.mrf.mxu0
  %v2644 = vadd.f32 0.0, %v2643
  %v2645 = vpop.f32.mrf.mxu0
  %v2646 = vadd.f32 0.0, %v2645
  %2647 = vdwg.mxu0
  %2654 = vrot.lane.b32.xlu0 %v2634, 64
  %v2655 = vpop.permute.xlu0 %2654
  %2656 = vrot.lane.b32.xlu0 %v2636, 64
  %v2657 = vpop.permute.xlu0 %2656
  %2658 = vrot.lane.b32.xlu0 %v2639, 64
  %v2659 = vpop.permute.xlu0 %2658
  %2660 = vrot.lane.b32.xlu0 %v2641, 64
  %v2661 = vpop.permute.xlu0 %2660
  %2662 = vrot.lane.b32.xlu0 %v2644, 64
  %v2663 = vpop.permute.xlu0 %2662
  %2664 = vrot.lane.b32.xlu0 %v2646, 64
  %v2665 = vpop.permute.xlu0 %2664
  %v2672 = vsel %vm479, %v2460, %v2655
  %v2673 = vsel %vm479, %v2462, %v2657
  %v2674 = vsel %vm479, %v2465, %v2659
  %v2675 = vsel %vm479, %v2467, %v2661
  %v2676 = vsel %vm479, %v2470, %v2663
  %v2677 = vsel %vm479, %v2472, %v2665
  %v2678 = vpack.c.bf16 %v2673, %v2672
  %v2679 = vpack.c.bf16 %v2675, %v2674
  %v2680 = vpack.c.bf16 %v2677, %v2676
  %s2681 = scalar_lea.vmem %s4, 64
  %v2682 = vld [vmem:[%s2681] sm:$0xf]
  %v2683 = vld [vmem:[%s2681 + $0x4] sm:$0xf]
  %v2684 = vld [vmem:[%s2681 + $0x8] sm:$0xf]
  %v2685 = vld [vmem:[%s2681 + $0xc] sm:$0xf]
  %v2686 = vld [vmem:[%s2681 + $0x10] sm:$0xf]
  %v2687 = vld [vmem:[%s2681 + $0x14] sm:$0xf]
  %v2688 = vld [vmem:[%s2681 + $0x18] sm:$0xf]
  %v2689 = vld [vmem:[%s2681 + $0x1c] sm:$0xf]
  %v2690 = vld [vmem:[%s2681 + $0x20] sm:$0xf]
  %v2691 = vld [vmem:[%s2681 + $0x24] sm:$0xf]
  %v2692 = vld [vmem:[%s2681 + $0x28] sm:$0xf]
  %v2693 = vld [vmem:[%s2681 + $0x2c] sm:$0xf]
  %v2694 = vld [vmem:[%s2681 + $0x30] sm:$0xf]
  %v2695 = vld [vmem:[%s2681 + $0x34] sm:$0xf]
  %v2696 = vld [vmem:[%s2681 + $0x38] sm:$0xf]
  %v2697 = vld [vmem:[%s2681 + $0x3c] sm:$0xf]
  %v2714 = vunpack.c.l.b16 %v2682
  %v2715 = vunpack.c.l.b16 %v2683
  %v2716 = vunpack.c.l.b16 %v2684
  %v2717 = vunpack.c.l.b16 %v2685
  %v2718 = vunpack.c.l.b16 %v2686
  %v2719 = vunpack.c.l.b16 %v2687
  %v2720 = vunpack.c.l.b16 %v2688
  %v2721 = vunpack.c.l.b16 %v2689
  %v2722 = vunpack.c.l.b16 %v2690
  %v2723 = vunpack.c.l.b16 %v2691
  %v2724 = vunpack.c.l.b16 %v2692
  %v2725 = vunpack.c.l.b16 %v2693
  %v2726 = vunpack.c.l.b16 %v2694
  %v2727 = vunpack.c.l.b16 %v2695
  %v2728 = vunpack.c.l.b16 %v2696
  %v2729 = vunpack.c.l.b16 %v2697
  %v2730 = vpack.c.b16 %v2715, %v2714
  %v2731 = vpack.c.b16 %v2717, %v2716
  %v2732 = vpack.c.b16 %v2719, %v2718
  %v2733 = vpack.c.b16 %v2721, %v2720
  %v2734 = vpack.c.b16 %v2723, %v2722
  %v2735 = vpack.c.b16 %v2725, %v2724
  %v2736 = vpack.c.b16 %v2727, %v2726
  %v2737 = vpack.c.b16 %v2729, %v2728
  %2746 = vmatpush.bf16.msra.mxu0 %v2737
  %2747 = vmatpush.bf16.msra.mxu0 %v2736
  %2748 = vmatpush.bf16.msra.mxu0 %v2735
  %2749 = vmatpush.bf16.msra.mxu0 %v2734
  %2750 = vmatpush.bf16.msra.mxu0 %v2733
  %2751 = vmatpush.bf16.msra.mxu0 %v2732
  %2752 = vmatpush.bf16.msra.mxu0 %v2731
  %2753 = vmatpush.bf16.msra.mxu0 %v2730
  %2754 = vmatmul.bf16.gmra.mxu0 %v2678
  %v2755 = vpop.f32.mrf.mxu0
  %v2756 = vadd.f32 0.0, %v2755
  %v2757 = vpop.f32.mrf.mxu0
  %v2758 = vadd.f32 0.0, %v2757
  %2759 = vmatmul.bf16.gmra.mxu0 %v2679
  %v2760 = vpop.f32.mrf.mxu0
  %v2761 = vadd.f32 0.0, %v2760
  %v2762 = vpop.f32.mrf.mxu0
  %v2763 = vadd.f32 0.0, %v2762
  %2764 = vmatmul.bf16.gmra.mxu0 %v2680
  %v2765 = vpop.f32.mrf.mxu0
  %v2766 = vadd.f32 0.0, %v2765
  %v2767 = vpop.f32.mrf.mxu0
  %v2768 = vadd.f32 0.0, %v2767
  %2769 = vdwg.mxu0
  %v2770 = vadd.f32 %v1950, %v2756
  %v2771 = vadd.f32 %v1951, %v2758
  %v2772 = vadd.f32 %v1952, %v2761
  %v2773 = vadd.f32 %v1953, %v2763
  %v2774 = vadd.f32 %v1954, %v2766
  %v2775 = vadd.f32 %v1955, %v2768
  %s2776 = scalar_lea.vmem %s5, 1
  %v2777 = vld [vmem:[%s2776] sm:$0x1]
  %v2779 = vperm.slane %v2777, 0
  %v2781 = vadd.f32 %v2770, %v2779
  %v2782 = vadd.f32 %v2771, %v2779
  %v2783 = vadd.f32 %v2772, %v2779
  %v2784 = vadd.f32 %v2773, %v2779
  %v2785 = vadd.f32 %v2774, %v2779
  %v2786 = vadd.f32 %v2775, %v2779
  %2787 = vadd.xlane.f32.xlu0 %v2781
  %v2788 = vpop.xlane.xlu0 %2787
  %2789 = vadd.xlane.f32.xlu0 %v2782
  %v2790 = vpop.xlane.xlu0 %2789
  %2791 = vadd.xlane.f32.xlu0 %v2783
  %v2792 = vpop.xlane.xlu0 %2791
  %2793 = vadd.xlane.f32.xlu0 %v2784
  %v2794 = vpop.xlane.xlu0 %2793
  %2795 = vadd.xlane.f32.xlu0 %v2785
  %v2796 = vpop.xlane.xlu0 %2795
  %2797 = vadd.xlane.f32.xlu0 %v2786
  %v2798 = vpop.xlane.xlu0 %2797
  %v2799 = vmul.f32 %v2788, %v121
  %v2800 = vmul.f32 %v2790, %v121
  %v2801 = vmul.f32 %v2792, %v121
  %v2802 = vmul.f32 %v2794, %v121
  %v2803 = vmul.f32 %v2796, %v121
  %v2804 = vmul.f32 %v2798, %v121
  %v2805 = vsub.f32 %v2781, %v2799
  %v2806 = vsub.f32 %v2782, %v2800
  %v2807 = vsub.f32 %v2783, %v2801
  %v2808 = vsub.f32 %v2784, %v2802
  %v2809 = vsub.f32 %v2785, %v2803
  %v2810 = vsub.f32 %v2786, %v2804
  %v2811 = vmul.f32 %v2805, %v2805
  %v2812 = vmul.f32 %v2806, %v2806
  %v2813 = vmul.f32 %v2807, %v2807
  %v2814 = vmul.f32 %v2808, %v2808
  %v2815 = vmul.f32 %v2809, %v2809
  %v2816 = vmul.f32 %v2810, %v2810
  %2817 = vadd.xlane.f32.xlu0 %v2811
  %v2818 = vpop.xlane.xlu0 %2817
  %2819 = vadd.xlane.f32.xlu0 %v2812
  %v2820 = vpop.xlane.xlu0 %2819
  %2821 = vadd.xlane.f32.xlu0 %v2813
  %v2822 = vpop.xlane.xlu0 %2821
  %2823 = vadd.xlane.f32.xlu0 %v2814
  %v2824 = vpop.xlane.xlu0 %2823
  %2825 = vadd.xlane.f32.xlu0 %v2815
  %v2826 = vpop.xlane.xlu0 %2825
  %2827 = vadd.xlane.f32.xlu0 %v2816
  %v2828 = vpop.xlane.xlu0 %2827
  %v2829 = vmul.f32 %v2818, %v121
  %v2830 = vmul.f32 %v2820, %v121
  %v2831 = vmul.f32 %v2822, %v121
  %v2832 = vmul.f32 %v2824, %v121
  %v2833 = vmul.f32 %v2826, %v121
  %v2834 = vmul.f32 %v2828, %v121
  %v2835 = vadd.f32 %v2829, 1e-06
  %v2836 = vadd.f32 %v2830, 1e-06
  %v2837 = vadd.f32 %v2831, 1e-06
  %v2838 = vadd.f32 %v2832, 1e-06
  %v2839 = vadd.f32 %v2833, 1e-06
  %v2840 = vadd.f32 %v2834, 1e-06
  %v2841 = vrsqrt.pop %v2835
  %v2842 = vmul.f32 %v2841, %v2835
  %v2843 = vmul.f32 %v2842, %v2841
  %v2844 = vmul.f32 0.5, %v2843
  %v2845 = vsub.f32 1.5, %v2844
  %v2846 = vmul.f32 %v2841, %v2845
  %vm2847 = vweird.f32 %v2835
  %vm2848 = vweird.f32 %v2841
  %vm2849 = vmor %vm2847, %vm2848
  %v2850 = vsel %vm2849, %v2841, %v2846
  %v2851 = vrsqrt.pop %v2836
  %v2852 = vmul.f32 %v2851, %v2836
  %v2853 = vmul.f32 %v2852, %v2851
  %v2854 = vmul.f32 0.5, %v2853
  %v2855 = vsub.f32 1.5, %v2854
  %v2856 = vmul.f32 %v2851, %v2855
  %vm2857 = vweird.f32 %v2836
  %vm2858 = vweird.f32 %v2851
  %vm2859 = vmor %vm2857, %vm2858
  %v2860 = vsel %vm2859, %v2851, %v2856
  %v2861 = vrsqrt.pop %v2837
  %v2862 = vmul.f32 %v2861, %v2837
  %v2863 = vmul.f32 %v2862, %v2861
  %v2864 = vmul.f32 0.5, %v2863
  %v2865 = vsub.f32 1.5, %v2864
  %v2866 = vmul.f32 %v2861, %v2865
  %vm2867 = vweird.f32 %v2837
  %vm2868 = vweird.f32 %v2861
  %vm2869 = vmor %vm2867, %vm2868
  %v2870 = vsel %vm2869, %v2861, %v2866
  %v2871 = vrsqrt.pop %v2838
  %v2872 = vmul.f32 %v2871, %v2838
  %v2873 = vmul.f32 %v2872, %v2871
  %v2874 = vmul.f32 0.5, %v2873
  %v2875 = vsub.f32 1.5, %v2874
  %v2876 = vmul.f32 %v2871, %v2875
  %vm2877 = vweird.f32 %v2838
  %vm2878 = vweird.f32 %v2871
  %vm2879 = vmor %vm2877, %vm2878
  %v2880 = vsel %vm2879, %v2871, %v2876
  %v2881 = vrsqrt.pop %v2839
  %v2882 = vmul.f32 %v2881, %v2839
  %v2883 = vmul.f32 %v2882, %v2881
  %v2884 = vmul.f32 0.5, %v2883
  %v2885 = vsub.f32 1.5, %v2884
  %v2886 = vmul.f32 %v2881, %v2885
  %vm2887 = vweird.f32 %v2839
  %vm2888 = vweird.f32 %v2881
  %vm2889 = vmor %vm2887, %vm2888
  %v2890 = vsel %vm2889, %v2881, %v2886
  %v2891 = vrsqrt.pop %v2840
  %v2892 = vmul.f32 %v2891, %v2840
  %v2893 = vmul.f32 %v2892, %v2891
  %v2894 = vmul.f32 0.5, %v2893
  %v2895 = vsub.f32 1.5, %v2894
  %v2896 = vmul.f32 %v2891, %v2895
  %vm2897 = vweird.f32 %v2840
  %vm2898 = vweird.f32 %v2891
  %vm2899 = vmor %vm2897, %vm2898
  %v2900 = vsel %vm2899, %v2891, %v2896
  %v2901 = vmul.f32 %v2805, %v2850
  %v2902 = vmul.f32 %v2806, %v2860
  %v2903 = vmul.f32 %v2807, %v2870
  %v2904 = vmul.f32 %v2808, %v2880
  %v2905 = vmul.f32 %v2809, %v2890
  %v2906 = vmul.f32 %v2810, %v2900
  %v2907 = vpack.c.bf16 %v2902, %v2901
  %v2908 = vpack.c.bf16 %v2904, %v2903
  %v2909 = vpack.c.bf16 %v2906, %v2905
  %s2910 = scalar_lea.vmem %s6, 256
  %v2911 = vld [vmem:[%s2910] sm:$0xff]
  %v2912 = vld [vmem:[%s2910 + $0x8] sm:$0xff]
  %v2913 = vld [vmem:[%s2910 + $0x10] sm:$0xff]
  %v2914 = vld [vmem:[%s2910 + $0x18] sm:$0xff]
  %v2915 = vld [vmem:[%s2910 + $0x20] sm:$0xff]
  %v2916 = vld [vmem:[%s2910 + $0x28] sm:$0xff]
  %v2917 = vld [vmem:[%s2910 + $0x30] sm:$0xff]
  %v2918 = vld [vmem:[%s2910 + $0x38] sm:$0xff]
  %v2919 = vld [vmem:[%s2910 + $0x40] sm:$0xff]
  %v2920 = vld [vmem:[%s2910 + $0x48] sm:$0xff]
  %v2921 = vld [vmem:[%s2910 + $0x50] sm:$0xff]
  %v2922 = vld [vmem:[%s2910 + $0x58] sm:$0xff]
  %v2923 = vld [vmem:[%s2910 + $0x60] sm:$0xff]
  %v2924 = vld [vmem:[%s2910 + $0x68] sm:$0xff]
  %v2925 = vld [vmem:[%s2910 + $0x70] sm:$0xff]
  %v2926 = vld [vmem:[%s2910 + $0x78] sm:$0xff]
  %v2927 = vld [vmem:[%s2910 + $0x80] sm:$0xff]
  %v2928 = vld [vmem:[%s2910 + $0x88] sm:$0xff]
  %v2929 = vld [vmem:[%s2910 + $0x90] sm:$0xff]
  %v2930 = vld [vmem:[%s2910 + $0x98] sm:$0xff]
  %v2931 = vld [vmem:[%s2910 + $0xa0] sm:$0xff]
  %v2932 = vld [vmem:[%s2910 + $0xa8] sm:$0xff]
  %v2933 = vld [vmem:[%s2910 + $0xb0] sm:$0xff]
  %v2934 = vld [vmem:[%s2910 + $0xb8] sm:$0xff]
  %v2935 = vld [vmem:[%s2910 + $0xc0] sm:$0xff]
  %v2936 = vld [vmem:[%s2910 + $0xc8] sm:$0xff]
  %v2937 = vld [vmem:[%s2910 + $0xd0] sm:$0xff]
  %v2938 = vld [vmem:[%s2910 + $0xd8] sm:$0xff]
  %v2939 = vld [vmem:[%s2910 + $0xe0] sm:$0xff]
  %v2940 = vld [vmem:[%s2910 + $0xe8] sm:$0xff]
  %v2941 = vld [vmem:[%s2910 + $0xf0] sm:$0xff]
  %v2942 = vld [vmem:[%s2910 + $0xf8] sm:$0xff]
  %s2943 = scalar_lea.vmem %s7, 4
  %v2944 = vld [vmem:[%s2943] sm:$0xf]
  %v2946 = vperm.slane %v2944, 0
  %v2947 = vperm.slane %v2944, 1
  %v2948 = vperm.slane %v2944, 2
  %v2949 = vperm.slane %v2944, 3
  %v2986 = vunpack.c.l.b16 %v2911
  %v2987 = vunpack.c.h.b16 %v2911
  %v2988 = vunpack.c.l.b16 %v2912
  %v2989 = vunpack.c.h.b16 %v2912
  %v2990 = vunpack.c.l.b16 %v2913
  %v2991 = vunpack.c.h.b16 %v2913
  %v2992 = vunpack.c.l.b16 %v2914
  %v2993 = vunpack.c.h.b16 %v2914
  %v2994 = vunpack.c.l.b16 %v2915
  %v2995 = vunpack.c.h.b16 %v2915
  %v2996 = vunpack.c.l.b16 %v2916
  %v2997 = vunpack.c.h.b16 %v2916
  %v2998 = vunpack.c.l.b16 %v2917
  %v2999 = vunpack.c.h.b16 %v2917
  %v3000 = vunpack.c.l.b16 %v2918
  %v3001 = vunpack.c.h.b16 %v2918
  %v3002 = vunpack.c.l.b16 %v2919
  %v3003 = vunpack.c.h.b16 %v2919
  %v3004 = vunpack.c.l.b16 %v2920
  %v3005 = vunpack.c.h.b16 %v2920
  %v3006 = vunpack.c.l.b16 %v2921
  %v3007 = vunpack.c.h.b16 %v2921
  %v3008 = vunpack.c.l.b16 %v2922
  %v3009 = vunpack.c.h.b16 %v2922
  %v3010 = vunpack.c.l.b16 %v2923
  %v3011 = vunpack.c.h.b16 %v2923
  %v3012 = vunpack.c.l.b16 %v2924
  %v3013 = vunpack.c.h.b16 %v2924
  %v3014 = vunpack.c.l.b16 %v2925
  %v3015 = vunpack.c.h.b16 %v2925
  %v3016 = vunpack.c.l.b16 %v2926
  %v3017 = vunpack.c.h.b16 %v2926
  %v3018 = vunpack.c.l.b16 %v2927
  %v3019 = vunpack.c.h.b16 %v2927
  %v3020 = vunpack.c.l.b16 %v2928
  %v3021 = vunpack.c.h.b16 %v2928
  %v3022 = vunpack.c.l.b16 %v2929
  %v3023 = vunpack.c.h.b16 %v2929
  %v3024 = vunpack.c.l.b16 %v2930
  %v3025 = vunpack.c.h.b16 %v2930
  %v3026 = vunpack.c.l.b16 %v2931
  %v3027 = vunpack.c.h.b16 %v2931
  %v3028 = vunpack.c.l.b16 %v2932
  %v3029 = vunpack.c.h.b16 %v2932
  %v3030 = vunpack.c.l.b16 %v2933
  %v3031 = vunpack.c.h.b16 %v2933
  %v3032 = vunpack.c.l.b16 %v2934
  %v3033 = vunpack.c.h.b16 %v2934
  %v3034 = vunpack.c.l.b16 %v2935
  %v3035 = vunpack.c.h.b16 %v2935
  %v3036 = vunpack.c.l.b16 %v2936
  %v3037 = vunpack.c.h.b16 %v2936
  %v3038 = vunpack.c.l.b16 %v2937
  %v3039 = vunpack.c.h.b16 %v2937
  %v3040 = vunpack.c.l.b16 %v2938
  %v3041 = vunpack.c.h.b16 %v2938
  %v3042 = vunpack.c.l.b16 %v2939
  %v3043 = vunpack.c.h.b16 %v2939
  %v3044 = vunpack.c.l.b16 %v2940
  %v3045 = vunpack.c.h.b16 %v2940
  %v3046 = vunpack.c.l.b16 %v2941
  %v3047 = vunpack.c.h.b16 %v2941
  %v3048 = vunpack.c.l.b16 %v2942
  %v3049 = vunpack.c.h.b16 %v2942
  %v3050 = vpack.c.b16 %v2990, %v2986
  %v3051 = vpack.c.b16 %v2991, %v2987
  %v3052 = vpack.c.b16 %v2992, %v2988
  %v3053 = vpack.c.b16 %v2993, %v2989
  %v3054 = vpack.c.b16 %v2998, %v2994
  %v3055 = vpack.c.b16 %v2999, %v2995
  %v3056 = vpack.c.b16 %v3000, %v2996
  %v3057 = vpack.c.b16 %v3001, %v2997
  %v3058 = vpack.c.b16 %v3006, %v3002
  %v3059 = vpack.c.b16 %v3007, %v3003
  %v3060 = vpack.c.b16 %v3008, %v3004
  %v3061 = vpack.c.b16 %v3009, %v3005
  %v3062 = vpack.c.b16 %v3014, %v3010
  %v3063 = vpack.c.b16 %v3015, %v3011
  %v3064 = vpack.c.b16 %v3016, %v3012
  %v3065 = vpack.c.b16 %v3017, %v3013
  %v3066 = vpack.c.b16 %v3022, %v3018
  %v3067 = vpack.c.b16 %v3023, %v3019
  %v3068 = vpack.c.b16 %v3024, %v3020
  %v3069 = vpack.c.b16 %v3025, %v3021
  %v3070 = vpack.c.b16 %v3030, %v3026
  %v3071 = vpack.c.b16 %v3031, %v3027
  %v3072 = vpack.c.b16 %v3032, %v3028
  %v3073 = vpack.c.b16 %v3033, %v3029
  %v3074 = vpack.c.b16 %v3038, %v3034
  %v3075 = vpack.c.b16 %v3039, %v3035
  %v3076 = vpack.c.b16 %v3040, %v3036
  %v3077 = vpack.c.b16 %v3041, %v3037
  %v3078 = vpack.c.b16 %v3046, %v3042
  %v3079 = vpack.c.b16 %v3047, %v3043
  %v3080 = vpack.c.b16 %v3048, %v3044
  %v3081 = vpack.c.b16 %v3049, %v3045
  %3114 = vmatpush.bf16.msra.mxu0 %v3078
  %3115 = vmatpush.bf16.msra.mxu0 %v3074
  %3116 = vmatpush.bf16.msra.mxu0 %v3070
  %3117 = vmatpush.bf16.msra.mxu0 %v3066
  %3118 = vmatpush.bf16.msra.mxu0 %v3062
  %3119 = vmatpush.bf16.msra.mxu0 %v3058
  %3120 = vmatpush.bf16.msra.mxu0 %v3054
  %3121 = vmatpush.bf16.msra.mxu0 %v3050
  %3122 = vmatmul.bf16.gmra.mxu0 %v2907
  %v3123 = vpop.f32.mrf.mxu0
  %v3124 = vadd.f32 %v2946, %v3123
  %v3125 = vpop.f32.mrf.mxu0
  %v3126 = vadd.f32 %v2946, %v3125
  %3127 = vmatmul.bf16.gmra.mxu0 %v2908
  %v3128 = vpop.f32.mrf.mxu0
  %v3129 = vadd.f32 %v2946, %v3128
  %v3130 = vpop.f32.mrf.mxu0
  %v3131 = vadd.f32 %v2946, %v3130
  %3132 = vmatmul.bf16.gmra.mxu0 %v2909
  %v3133 = vpop.f32.mrf.mxu0
  %v3134 = vadd.f32 %v2946, %v3133
  %v3135 = vpop.f32.mrf.mxu0
  %v3136 = vadd.f32 %v2946, %v3135
  %3137 = vdwg.mxu0
  %3138 = vmatpush.bf16.msra.mxu0 %v3079
  %3139 = vmatpush.bf16.msra.mxu0 %v3075
  %3140 = vmatpush.bf16.msra.mxu0 %v3071
  %3141 = vmatpush.bf16.msra.mxu0 %v3067
  %3142 = vmatpush.bf16.msra.mxu0 %v3063
  %3143 = vmatpush.bf16.msra.mxu0 %v3059
  %3144 = vmatpush.bf16.msra.mxu0 %v3055
  %3145 = vmatpush.bf16.msra.mxu0 %v3051
  %3146 = vmatmul.bf16.gmra.mxu0 %v2907
  %v3147 = vpop.f32.mrf.mxu0
  %v3148 = vadd.f32 %v2947, %v3147
  %v3149 = vpop.f32.mrf.mxu0
  %v3150 = vadd.f32 %v2947, %v3149
  %3151 = vmatmul.bf16.gmra.mxu0 %v2908
  %v3152 = vpop.f32.mrf.mxu0
  %v3153 = vadd.f32 %v2947, %v3152
  %v3154 = vpop.f32.mrf.mxu0
  %v3155 = vadd.f32 %v2947, %v3154
  %3156 = vmatmul.bf16.gmra.mxu0 %v2909
  %v3157 = vpop.f32.mrf.mxu0
  %v3158 = vadd.f32 %v2947, %v3157
  %v3159 = vpop.f32.mrf.mxu0
  %v3160 = vadd.f32 %v2947, %v3159
  %3161 = vdwg.mxu0
  %3162 = vmatpush.bf16.msra.mxu0 %v3080
  %3163 = vmatpush.bf16.msra.mxu0 %v3076
  %3164 = vmatpush.bf16.msra.mxu0 %v3072
  %3165 = vmatpush.bf16.msra.mxu0 %v3068
  %3166 = vmatpush.bf16.msra.mxu0 %v3064
  %3167 = vmatpush.bf16.msra.mxu0 %v3060
  %3168 = vmatpush.bf16.msra.mxu0 %v3056
  %3169 = vmatpush.bf16.msra.mxu0 %v3052
  %3170 = vmatmul.bf16.gmra.mxu0 %v2907
  %v3171 = vpop.f32.mrf.mxu0
  %v3172 = vadd.f32 %v2948, %v3171
  %v3173 = vpop.f32.mrf.mxu0
  %v3174 = vadd.f32 %v2948, %v3173
  %3175 = vmatmul.bf16.gmra.mxu0 %v2908
  %v3176 = vpop.f32.mrf.mxu0
  %v3177 = vadd.f32 %v2948, %v3176
  %v3178 = vpop.f32.mrf.mxu0
  %v3179 = vadd.f32 %v2948, %v3178
  %3180 = vmatmul.bf16.gmra.mxu0 %v2909
  %v3181 = vpop.f32.mrf.mxu0
  %v3182 = vadd.f32 %v2948, %v3181
  %v3183 = vpop.f32.mrf.mxu0
  %v3184 = vadd.f32 %v2948, %v3183
  %3185 = vdwg.mxu0
  %3186 = vmatpush.bf16.msra.mxu0 %v3081
  %3187 = vmatpush.bf16.msra.mxu0 %v3077
  %3188 = vmatpush.bf16.msra.mxu0 %v3073
  %3189 = vmatpush.bf16.msra.mxu0 %v3069
  %3190 = vmatpush.bf16.msra.mxu0 %v3065
  %3191 = vmatpush.bf16.msra.mxu0 %v3061
  %3192 = vmatpush.bf16.msra.mxu0 %v3057
  %3193 = vmatpush.bf16.msra.mxu0 %v3053
  %3194 = vmatmul.bf16.gmra.mxu0 %v2907
  %v3195 = vpop.f32.mrf.mxu0
  %v3196 = vadd.f32 %v2949, %v3195
  %v3197 = vpop.f32.mrf.mxu0
  %v3198 = vadd.f32 %v2949, %v3197
  %3199 = vmatmul.bf16.gmra.mxu0 %v2908
  %v3200 = vpop.f32.mrf.mxu0
  %v3201 = vadd.f32 %v2949, %v3200
  %v3202 = vpop.f32.mrf.mxu0
  %v3203 = vadd.f32 %v2949, %v3202
  %3204 = vmatmul.bf16.gmra.mxu0 %v2909
  %v3205 = vpop.f32.mrf.mxu0
  %v3206 = vadd.f32 %v2949, %v3205
  %v3207 = vpop.f32.mrf.mxu0
  %v3208 = vadd.f32 %v2949, %v3207
  %3209 = vdwg.mxu0
  %v3210 = vmul.f32 %v3124, %v3124
  %v3211 = vmul.f32 %v3148, %v3148
  %v3212 = vmul.f32 %v3172, %v3172
  %v3213 = vmul.f32 %v3196, %v3196
  %v3214 = vmul.f32 %v3126, %v3126
  %v3215 = vmul.f32 %v3150, %v3150
  %v3216 = vmul.f32 %v3174, %v3174
  %v3217 = vmul.f32 %v3198, %v3198
  %v3218 = vmul.f32 %v3129, %v3129
  %v3219 = vmul.f32 %v3153, %v3153
  %v3220 = vmul.f32 %v3177, %v3177
  %v3221 = vmul.f32 %v3201, %v3201
  %v3222 = vmul.f32 %v3131, %v3131
  %v3223 = vmul.f32 %v3155, %v3155
  %v3224 = vmul.f32 %v3179, %v3179
  %v3225 = vmul.f32 %v3203, %v3203
  %v3226 = vmul.f32 %v3134, %v3134
  %v3227 = vmul.f32 %v3158, %v3158
  %v3228 = vmul.f32 %v3182, %v3182
  %v3229 = vmul.f32 %v3206, %v3206
  %v3230 = vmul.f32 %v3136, %v3136
  %v3231 = vmul.f32 %v3160, %v3160
  %v3232 = vmul.f32 %v3184, %v3184
  %v3233 = vmul.f32 %v3208, %v3208
  %v3234 = vmul.f32 %v3124, %v3210
  %v3235 = vmul.f32 %v3148, %v3211
  %v3236 = vmul.f32 %v3172, %v3212
  %v3237 = vmul.f32 %v3196, %v3213
  %v3238 = vmul.f32 %v3126, %v3214
  %v3239 = vmul.f32 %v3150, %v3215
  %v3240 = vmul.f32 %v3174, %v3216
  %v3241 = vmul.f32 %v3198, %v3217
  %v3242 = vmul.f32 %v3129, %v3218
  %v3243 = vmul.f32 %v3153, %v3219
  %v3244 = vmul.f32 %v3177, %v3220
  %v3245 = vmul.f32 %v3201, %v3221
  %v3246 = vmul.f32 %v3131, %v3222
  %v3247 = vmul.f32 %v3155, %v3223
  %v3248 = vmul.f32 %v3179, %v3224
  %v3249 = vmul.f32 %v3203, %v3225
  %v3250 = vmul.f32 %v3134, %v3226
  %v3251 = vmul.f32 %v3158, %v3227
  %v3252 = vmul.f32 %v3182, %v3228
  %v3253 = vmul.f32 %v3206, %v3229
  %v3254 = vmul.f32 %v3136, %v3230
  %v3255 = vmul.f32 %v3160, %v3231
  %v3256 = vmul.f32 %v3184, %v3232
  %v3257 = vmul.f32 %v3208, %v3233
  %v3258 = vmul.f32 %v3234, 0.044715
  %v3259 = vmul.f32 %v3235, 0.044715
  %v3260 = vmul.f32 %v3236, 0.044715
  %v3261 = vmul.f32 %v3237, 0.044715
  %v3262 = vmul.f32 %v3238, 0.044715
  %v3263 = vmul.f32 %v3239, 0.044715
  %v3264 = vmul.f32 %v3240, 0.044715
  %v3265 = vmul.f32 %v3241, 0.044715
  %v3266 = vmul.f32 %v3242, 0.044715
  %v3267 = vmul.f32 %v3243, 0.044715
  %v3268 = vmul.f32 %v3244, 0.044715
  %v3269 = vmul.f32 %v3245, 0.044715
  %v3270 = vmul.f32 %v3246, 0.044715
  %v3271 = vmul.f32 %v3247, 0.044715
  %v3272 = vmul.f32 %v3248, 0.044715
  %v3273 = vmul.f32 %v3249, 0.044715
  %v3274 = vmul.f32 %v3250, 0.044715
  %v3275 = vmul.f32 %v3251, 0.044715
  %v3276 = vmul.f32 %v3252, 0.044715
  %v3277 = vmul.f32 %v3253, 0.044715
  %v3278 = vmul.f32 %v3254, 0.044715
  %v3279 = vmul.f32 %v3255, 0.044715
  %v3280 = vmul.f32 %v3256, 0.044715
  %v3281 = vmul.f32 %v3257, 0.044715
  %v3282 = vadd.f32 %v3124, %v3258
  %v3283 = vadd.f32 %v3148, %v3259
  %v3284 = vadd.f32 %v3172, %v3260
  %v3285 = vadd.f32 %v3196, %v3261
  %v3286 = vadd.f32 %v3126, %v3262
  %v3287 = vadd.f32 %v3150, %v3263
  %v3288 = vadd.f32 %v3174, %v3264
  %v3289 = vadd.f32 %v3198, %v3265
  %v3290 = vadd.f32 %v3129, %v3266
  %v3291 = vadd.f32 %v3153, %v3267
  %v3292 = vadd.f32 %v3177, %v3268
  %v3293 = vadd.f32 %v3201, %v3269
  %v3294 = vadd.f32 %v3131, %v3270
  %v3295 = vadd.f32 %v3155, %v3271
  %v3296 = vadd.f32 %v3179, %v3272
  %v3297 = vadd.f32 %v3203, %v3273
  %v3298 = vadd.f32 %v3134, %v3274
  %v3299 = vadd.f32 %v3158, %v3275
  %v3300 = vadd.f32 %v3182, %v3276
  %v3301 = vadd.f32 %v3206, %v3277
  %v3302 = vadd.f32 %v3136, %v3278
  %v3303 = vadd.f32 %v3160, %v3279
  %v3304 = vadd.f32 %v3184, %v3280
  %v3305 = vadd.f32 %v3208, %v3281
  %v3306 = vmul.f32 %v3282, 0.7978846
  %v3307 = vmul.f32 %v3283, 0.7978846
  %v3308 = vmul.f32 %v3284, 0.7978846
  %v3309 = vmul.f32 %v3285, 0.7978846
  %v3310 = vmul.f32 %v3286, 0.7978846
  %v3311 = vmul.f32 %v3287, 0.7978846
  %v3312 = vmul.f32 %v3288, 0.7978846
  %v3313 = vmul.f32 %v3289, 0.7978846
  %v3314 = vmul.f32 %v3290, 0.7978846
  %v3315 = vmul.f32 %v3291, 0.7978846
  %v3316 = vmul.f32 %v3292, 0.7978846
  %v3317 = vmul.f32 %v3293, 0.7978846
  %v3318 = vmul.f32 %v3294, 0.7978846
  %v3319 = vmul.f32 %v3295, 0.7978846
  %v3320 = vmul.f32 %v3296, 0.7978846
  %v3321 = vmul.f32 %v3297, 0.7978846
  %v3322 = vmul.f32 %v3298, 0.7978846
  %v3323 = vmul.f32 %v3299, 0.7978846
  %v3324 = vmul.f32 %v3300, 0.7978846
  %v3325 = vmul.f32 %v3301, 0.7978846
  %v3326 = vmul.f32 %v3302, 0.7978846
  %v3327 = vmul.f32 %v3303, 0.7978846
  %v3328 = vmul.f32 %v3304, 0.7978846
  %v3329 = vmul.f32 %v3305, 0.7978846
  %v3330 = vtanh.pop %v3306
  %v3331 = vtanh.pop %v3307
  %v3332 = vtanh.pop %v3308
  %v3333 = vtanh.pop %v3309
  %v3334 = vtanh.pop %v3310
  %v3335 = vtanh.pop %v3311
  %v3336 = vtanh.pop %v3312
  %v3337 = vtanh.pop %v3313
  %v3338 = vtanh.pop %v3314
  %v3339 = vtanh.pop %v3315
  %v3340 = vtanh.pop %v3316
  %v3341 = vtanh.pop %v3317
  %v3342 = vtanh.pop %v3318
  %v3343 = vtanh.pop %v3319
  %v3344 = vtanh.pop %v3320
  %v3345 = vtanh.pop %v3321
  %v3346 = vtanh.pop %v3322
  %v3347 = vtanh.pop %v3323
  %v3348 = vtanh.pop %v3324
  %v3349 = vtanh.pop %v3325
  %v3350 = vtanh.pop %v3326
  %v3351 = vtanh.pop %v3327
  %v3352 = vtanh.pop %v3328
  %v3353 = vtanh.pop %v3329
  %v3354 = vadd.f32 %v3330, 1.0
  %v3355 = vadd.f32 %v3331, 1.0
  %v3356 = vadd.f32 %v3332, 1.0
  %v3357 = vadd.f32 %v3333, 1.0
  %v3358 = vadd.f32 %v3334, 1.0
  %v3359 = vadd.f32 %v3335, 1.0
  %v3360 = vadd.f32 %v3336, 1.0
  %v3361 = vadd.f32 %v3337, 1.0
  %v3362 = vadd.f32 %v3338, 1.0
  %v3363 = vadd.f32 %v3339, 1.0
  %v3364 = vadd.f32 %v3340, 1.0
  %v3365 = vadd.f32 %v3341, 1.0
  %v3366 = vadd.f32 %v3342, 1.0
  %v3367 = vadd.f32 %v3343, 1.0
  %v3368 = vadd.f32 %v3344, 1.0
  %v3369 = vadd.f32 %v3345, 1.0
  %v3370 = vadd.f32 %v3346, 1.0
  %v3371 = vadd.f32 %v3347, 1.0
  %v3372 = vadd.f32 %v3348, 1.0
  %v3373 = vadd.f32 %v3349, 1.0
  %v3374 = vadd.f32 %v3350, 1.0
  %v3375 = vadd.f32 %v3351, 1.0
  %v3376 = vadd.f32 %v3352, 1.0
  %v3377 = vadd.f32 %v3353, 1.0
  %v3378 = vmul.f32 %v3354, 0.5
  %v3379 = vmul.f32 %v3355, 0.5
  %v3380 = vmul.f32 %v3356, 0.5
  %v3381 = vmul.f32 %v3357, 0.5
  %v3382 = vmul.f32 %v3358, 0.5
  %v3383 = vmul.f32 %v3359, 0.5
  %v3384 = vmul.f32 %v3360, 0.5
  %v3385 = vmul.f32 %v3361, 0.5
  %v3386 = vmul.f32 %v3362, 0.5
  %v3387 = vmul.f32 %v3363, 0.5
  %v3388 = vmul.f32 %v3364, 0.5
  %v3389 = vmul.f32 %v3365, 0.5
  %v3390 = vmul.f32 %v3366, 0.5
  %v3391 = vmul.f32 %v3367, 0.5
  %v3392 = vmul.f32 %v3368, 0.5
  %v3393 = vmul.f32 %v3369, 0.5
  %v3394 = vmul.f32 %v3370, 0.5
  %v3395 = vmul.f32 %v3371, 0.5
  %v3396 = vmul.f32 %v3372, 0.5
  %v3397 = vmul.f32 %v3373, 0.5
  %v3398 = vmul.f32 %v3374, 0.5
  %v3399 = vmul.f32 %v3375, 0.5
  %v3400 = vmul.f32 %v3376, 0.5
  %v3401 = vmul.f32 %v3377, 0.5
  %v3402 = vmul.f32 %v3124, %v3378
  %v3403 = vmul.f32 %v3148, %v3379
  %v3404 = vmul.f32 %v3172, %v3380
  %v3405 = vmul.f32 %v3196, %v3381
  %v3406 = vmul.f32 %v3126, %v3382
  %v3407 = vmul.f32 %v3150, %v3383
  %v3408 = vmul.f32 %v3174, %v3384
  %v3409 = vmul.f32 %v3198, %v3385
  %v3410 = vmul.f32 %v3129, %v3386
  %v3411 = vmul.f32 %v3153, %v3387
  %v3412 = vmul.f32 %v3177, %v3388
  %v3413 = vmul.f32 %v3201, %v3389
  %v3414 = vmul.f32 %v3131, %v3390
  %v3415 = vmul.f32 %v3155, %v3391
  %v3416 = vmul.f32 %v3179, %v3392
  %v3417 = vmul.f32 %v3203, %v3393
  %v3418 = vmul.f32 %v3134, %v3394
  %v3419 = vmul.f32 %v3158, %v3395
  %v3420 = vmul.f32 %v3182, %v3396
  %v3421 = vmul.f32 %v3206, %v3397
  %v3422 = vmul.f32 %v3136, %v3398
  %v3423 = vmul.f32 %v3160, %v3399
  %v3424 = vmul.f32 %v3184, %v3400
  %v3425 = vmul.f32 %v3208, %v3401
  %v3426 = vpack.c.bf16 %v3406, %v3402
  %v3427 = vpack.c.bf16 %v3407, %v3403
  %v3428 = vpack.c.bf16 %v3408, %v3404
  %v3429 = vpack.c.bf16 %v3409, %v3405
  %v3430 = vpack.c.bf16 %v3414, %v3410
  %v3431 = vpack.c.bf16 %v3415, %v3411
  %v3432 = vpack.c.bf16 %v3416, %v3412
  %v3433 = vpack.c.bf16 %v3417, %v3413
  %v3434 = vpack.c.bf16 %v3422, %v3418
  %v3435 = vpack.c.bf16 %v3423, %v3419
  %v3436 = vpack.c.bf16 %v3424, %v3420
  %v3437 = vpack.c.bf16 %v3425, %v3421
  %s3438 = scalar_lea.vmem %s8, 256
  %v3439 = vld [vmem:[%s3438] sm:$0xf]
  %v3440 = vld [vmem:[%s3438 + $0x4] sm:$0xf]
  %v3441 = vld [vmem:[%s3438 + $0x8] sm:$0xf]
  %v3442 = vld [vmem:[%s3438 + $0xc] sm:$0xf]
  %v3443 = vld [vmem:[%s3438 + $0x10] sm:$0xf]
  %v3444 = vld [vmem:[%s3438 + $0x14] sm:$0xf]
  %v3445 = vld [vmem:[%s3438 + $0x18] sm:$0xf]
  %v3446 = vld [vmem:[%s3438 + $0x1c] sm:$0xf]
  %v3447 = vld [vmem:[%s3438 + $0x20] sm:$0xf]
  %v3448 = vld [vmem:[%s3438 + $0x24] sm:$0xf]
  %v3449 = vld [vmem:[%s3438 + $0x28] sm:$0xf]
  %v3450 = vld [vmem:[%s3438 + $0x2c] sm:$0xf]
  %v3451 = vld [vmem:[%s3438 + $0x30] sm:$0xf]
  %v3452 = vld [vmem:[%s3438 + $0x34] sm:$0xf]
  %v3453 = vld [vmem:[%s3438 + $0x38] sm:$0xf]
  %v3454 = vld [vmem:[%s3438 + $0x3c] sm:$0xf]
  %v3455 = vld [vmem:[%s3438 + $0x40] sm:$0xf]
  %v3456 = vld [vmem:[%s3438 + $0x44] sm:$0xf]
  %v3457 = vld [vmem:[%s3438 + $0x48] sm:$0xf]
  %v3458 = vld [vmem:[%s3438 + $0x4c] sm:$0xf]
  %v3459 = vld [vmem:[%s3438 + $0x50] sm:$0xf]
  %v3460 = vld [vmem:[%s3438 + $0x54] sm:$0xf]
  %v3461 = vld [vmem:[%s3438 + $0x58] sm:$0xf]
  %v3462 = vld [vmem:[%s3438 + $0x5c] sm:$0xf]
  %v3463 = vld [vmem:[%s3438 + $0x60] sm:$0xf]
  %v3464 = vld [vmem:[%s3438 + $0x64] sm:$0xf]
  %v3465 = vld [vmem:[%s3438 + $0x68] sm:$0xf]
  %v3466 = vld [vmem:[%s3438 + $0x6c] sm:$0xf]
  %v3467 = vld [vmem:[%s3438 + $0x70] sm:$0xf]
  %v3468 = vld [vmem:[%s3438 + $0x74] sm:$0xf]
  %v3469 = vld [vmem:[%s3438 + $0x78] sm:$0xf]
  %v3470 = vld [vmem:[%s3438 + $0x7c] sm:$0xf]
  %v3471 = vld [vmem:[%s3438 + $0x80] sm:$0xf]
  %v3472 = vld [vmem:[%s3438 + $0x84] sm:$0xf]
  %v3473 = vld [vmem:[%s3438 + $0x88] sm:$0xf]
  %v3474 = vld [vmem:[%s3438 + $0x8c] sm:$0xf]
  %v3475 = vld [vmem:[%s3438 + $0x90] sm:$0xf]
  %v3476 = vld [vmem:[%s3438 + $0x94] sm:$0xf]
  %v3477 = vld [vmem:[%s3438 + $0x98] sm:$0xf]
  %v3478 = vld [vmem:[%s3438 + $0x9c] sm:$0xf]
  %v3479 = vld [vmem:[%s3438 + $0xa0] sm:$0xf]
  %v3480 = vld [vmem:[%s3438 + $0xa4] sm:$0xf]
  %v3481 = vld [vmem:[%s3438 + $0xa8] sm:$0xf]
  %v3482 = vld [vmem:[%s3438 + $0xac] sm:$0xf]
  %v3483 = vld [vmem:[%s3438 + $0xb0] sm:$0xf]
  %v3484 = vld [vmem:[%s3438 + $0xb4] sm:$0xf]
  %v3485 = vld [vmem:[%s3438 + $0xb8] sm:$0xf]
  %v3486 = vld [vmem:[%s3438 + $0xbc] sm:$0xf]
  %v3487 = vld [vmem:[%s3438 + $0xc0] sm:$0xf]
  %v3488 = vld [vmem:[%s3438 + $0xc4] sm:$0xf]
  %v3489 = vld [vmem:[%s3438 + $0xc8] sm:$0xf]
  %v3490 = vld [vmem:[%s3438 + $0xcc] sm:$0xf]
  %v3491 = vld [vmem:[%s3438 + $0xd0] sm:$0xf]
  %v3492 = vld [vmem:[%s3438 + $0xd4] sm:$0xf]
  %v3493 = vld [vmem:[%s3438 + $0xd8] sm:$0xf]
  %v3494 = vld [vmem:[%s3438 + $0xdc] sm:$0xf]
  %v3495 = vld [vmem:[%s3438 + $0xe0] sm:$0xf]
  %v3496 = vld [vmem:[%s3438 + $0xe4] sm:$0xf]
  %v3497 = vld [vmem:[%s3438 + $0xe8] sm:$0xf]
  %v3498 = vld [vmem:[%s3438 + $0xec] sm:$0xf]
  %v3499 = vld [vmem:[%s3438 + $0xf0] sm:$0xf]
  %v3500 = vld [vmem:[%s3438 + $0xf4] sm:$0xf]
  %v3501 = vld [vmem:[%s3438 + $0xf8] sm:$0xf]
  %v3502 = vld [vmem:[%s3438 + $0xfc] sm:$0xf]
  %v3567 = vunpack.c.l.b16 %v3439
  %v3568 = vunpack.c.l.b16 %v3440
  %v3569 = vunpack.c.l.b16 %v3441
  %v3570 = vunpack.c.l.b16 %v3442
  %v3571 = vunpack.c.l.b16 %v3443
  %v3572 = vunpack.c.l.b16 %v3444
  %v3573 = vunpack.c.l.b16 %v3445
  %v3574 = vunpack.c.l.b16 %v3446
  %v3575 = vunpack.c.l.b16 %v3447
  %v3576 = vunpack.c.l.b16 %v3448
  %v3577 = vunpack.c.l.b16 %v3449
  %v3578 = vunpack.c.l.b16 %v3450
  %v3579 = vunpack.c.l.b16 %v3451
  %v3580 = vunpack.c.l.b16 %v3452
  %v3581 = vunpack.c.l.b16 %v3453
  %v3582 = vunpack.c.l.b16 %v3454
  %v3583 = vunpack.c.l.b16 %v3455
  %v3584 = vunpack.c.l.b16 %v3456
  %v3585 = vunpack.c.l.b16 %v3457
  %v3586 = vunpack.c.l.b16 %v3458
  %v3587 = vunpack.c.l.b16 %v3459
  %v3588 = vunpack.c.l.b16 %v3460
  %v3589 = vunpack.c.l.b16 %v3461
  %v3590 = vunpack.c.l.b16 %v3462
  %v3591 = vunpack.c.l.b16 %v3463
  %v3592 = vunpack.c.l.b16 %v3464
  %v3593 = vunpack.c.l.b16 %v3465
  %v3594 = vunpack.c.l.b16 %v3466
  %v3595 = vunpack.c.l.b16 %v3467
  %v3596 = vunpack.c.l.b16 %v3468
  %v3597 = vunpack.c.l.b16 %v3469
  %v3598 = vunpack.c.l.b16 %v3470
  %v3599 = vunpack.c.l.b16 %v3471
  %v3600 = vunpack.c.l.b16 %v3472
  %v3601 = vunpack.c.l.b16 %v3473
  %v3602 = vunpack.c.l.b16 %v3474
  %v3603 = vunpack.c.l.b16 %v3475
  %v3604 = vunpack.c.l.b16 %v3476
  %v3605 = vunpack.c.l.b16 %v3477
  %v3606 = vunpack.c.l.b16 %v3478
  %v3607 = vunpack.c.l.b16 %v3479
  %v3608 = vunpack.c.l.b16 %v3480
  %v3609 = vunpack.c.l.b16 %v3481
  %v3610 = vunpack.c.l.b16 %v3482
  %v3611 = vunpack.c.l.b16 %v3483
  %v3612 = vunpack.c.l.b16 %v3484
  %v3613 = vunpack.c.l.b16 %v3485
  %v3614 = vunpack.c.l.b16 %v3486
  %v3615 = vunpack.c.l.b16 %v3487
  %v3616 = vunpack.c.l.b16 %v3488
  %v3617 = vunpack.c.l.b16 %v3489
  %v3618 = vunpack.c.l.b16 %v3490
  %v3619 = vunpack.c.l.b16 %v3491
  %v3620 = vunpack.c.l.b16 %v3492
  %v3621 = vunpack.c.l.b16 %v3493
  %v3622 = vunpack.c.l.b16 %v3494
  %v3623 = vunpack.c.l.b16 %v3495
  %v3624 = vunpack.c.l.b16 %v3496
  %v3625 = vunpack.c.l.b16 %v3497
  %v3626 = vunpack.c.l.b16 %v3498
  %v3627 = vunpack.c.l.b16 %v3499
  %v3628 = vunpack.c.l.b16 %v3500
  %v3629 = vunpack.c.l.b16 %v3501
  %v3630 = vunpack.c.l.b16 %v3502
  %v3631 = vpack.c.b16 %v3568, %v3567
  %v3632 = vpack.c.b16 %v3570, %v3569
  %v3633 = vpack.c.b16 %v3572, %v3571
  %v3634 = vpack.c.b16 %v3574, %v3573
  %v3635 = vpack.c.b16 %v3576, %v3575
  %v3636 = vpack.c.b16 %v3578, %v3577
  %v3637 = vpack.c.b16 %v3580, %v3579
  %v3638 = vpack.c.b16 %v3582, %v3581
  %v3639 = vpack.c.b16 %v3584, %v3583
  %v3640 = vpack.c.b16 %v3586, %v3585
  %v3641 = vpack.c.b16 %v3588, %v3587
  %v3642 = vpack.c.b16 %v3590, %v3589
  %v3643 = vpack.c.b16 %v3592, %v3591
  %v3644 = vpack.c.b16 %v3594, %v3593
  %v3645 = vpack.c.b16 %v3596, %v3595
  %v3646 = vpack.c.b16 %v3598, %v3597
  %v3647 = vpack.c.b16 %v3600, %v3599
  %v3648 = vpack.c.b16 %v3602, %v3601
  %v3649 = vpack.c.b16 %v3604, %v3603
  %v3650 = vpack.c.b16 %v3606, %v3605
  %v3651 = vpack.c.b16 %v3608, %v3607
  %v3652 = vpack.c.b16 %v3610, %v3609
  %v3653 = vpack.c.b16 %v3612, %v3611
  %v3654 = vpack.c.b16 %v3614, %v3613
  %v3655 = vpack.c.b16 %v3616, %v3615
  %v3656 = vpack.c.b16 %v3618, %v3617
  %v3657 = vpack.c.b16 %v3620, %v3619
  %v3658 = vpack.c.b16 %v3622, %v3621
  %v3659 = vpack.c.b16 %v3624, %v3623
  %v3660 = vpack.c.b16 %v3626, %v3625
  %v3661 = vpack.c.b16 %v3628, %v3627
  %v3662 = vpack.c.b16 %v3630, %v3629
  %3695 = vmatpush.bf16.msra.mxu0 %v3638
  %3696 = vmatpush.bf16.msra.mxu0 %v3637
  %3697 = vmatpush.bf16.msra.mxu0 %v3636
  %3698 = vmatpush.bf16.msra.mxu0 %v3635
  %3699 = vmatpush.bf16.msra.mxu0 %v3634
  %3700 = vmatpush.bf16.msra.mxu0 %v3633
  %3701 = vmatpush.bf16.msra.mxu0 %v3632
  %3702 = vmatpush.bf16.msra.mxu0 %v3631
  %3703 = vmatmul.bf16.gmra.mxu0 %v3426
  %v3704 = vpop.f32.mrf.mxu0
  %v3705 = vadd.f32 0.0, %v3704
  %v3706 = vpop.f32.mrf.mxu0
  %3707 = vmatmul.bf16.gmra.mxu0 %v3430
  %v3708 = vpop.f32.mrf.mxu0
  %v3709 = vpop.f32.mrf.mxu0
  %v3710 = vadd.f32 0.0, %v3709
  %3711 = vmatmul.bf16.gmra.mxu0 %v3434
  %v3712 = vpop.f32.mrf.mxu0
  %v3713 = vpop.f32.mrf.mxu0
  %3714 = vdwg.mxu0
  %3715 = vmatpush.bf16.msra.mxu0 %v3646
  %3716 = vmatpush.bf16.msra.mxu0 %v3645
  %3717 = vmatpush.bf16.msra.mxu0 %v3644
  %3718 = vmatpush.bf16.msra.mxu0 %v3643
  %3719 = vmatpush.bf16.msra.mxu0 %v3642
  %3720 = vmatpush.bf16.msra.mxu0 %v3641
  %3721 = vmatpush.bf16.msra.mxu0 %v3640
  %3722 = vmatpush.bf16.msra.mxu0 %v3639
  %3723 = vmatmul.bf16.gmra.mxu0 %v3427
  %v3724 = vpop.f32.mrf.mxu0
  %v3725 = vadd.f32 %v3705, %v3724
  %v3726 = vpop.f32.mrf.mxu0
  %3727 = vmatmul.bf16.gmra.mxu0 %v3431
  %v3728 = vpop.f32.mrf.mxu0
  %v3729 = vpop.f32.mrf.mxu0
  %v3730 = vadd.f32 %v3710, %v3729
  %3731 = vmatmul.bf16.gmra.mxu0 %v3435
  %v3732 = vpop.f32.mrf.mxu0
  %v3733 = vpop.f32.mrf.mxu0
  %3734 = vdwg.mxu0
  %3735 = vmatpush.bf16.msra.mxu0 %v3654
  %3736 = vmatpush.bf16.msra.mxu0 %v3653
  %3737 = vmatpush.bf16.msra.mxu0 %v3652
  %3738 = vmatpush.bf16.msra.mxu0 %v3651
  %3739 = vmatpush.bf16.msra.mxu0 %v3650
  %3740 = vmatpush.bf16.msra.mxu0 %v3649
  %3741 = vmatpush.bf16.msra.mxu0 %v3648
  %3742 = vmatpush.bf16.msra.mxu0 %v3647
  %3743 = vmatmul.bf16.gmra.mxu0 %v3428
  %v3744 = vpop.f32.mrf.mxu0
  %v3745 = vadd.f32 %v3725, %v3744
  %v3746 = vpop.f32.mrf.mxu0
  %3747 = vmatmul.bf16.gmra.mxu0 %v3432
  %v3748 = vpop.f32.mrf.mxu0
  %v3749 = vpop.f32.mrf.mxu0
  %v3750 = vadd.f32 %v3730, %v3749
  %3751 = vmatmul.bf16.gmra.mxu0 %v3436
  %v3752 = vpop.f32.mrf.mxu0
  %v3753 = vpop.f32.mrf.mxu0
  %3754 = vdwg.mxu0
  %3755 = vmatpush.bf16.msra.mxu0 %v3662
  %3756 = vmatpush.bf16.msra.mxu0 %v3661
  %3757 = vmatpush.bf16.msra.mxu0 %v3660
  %3758 = vmatpush.bf16.msra.mxu0 %v3659
  %3759 = vmatpush.bf16.msra.mxu0 %v3658
  %3760 = vmatpush.bf16.msra.mxu0 %v3657
  %3761 = vmatpush.bf16.msra.mxu0 %v3656
  %3762 = vmatpush.bf16.msra.mxu0 %v3655
  %3763 = vmatmul.bf16.gmra.mxu0 %v3429
  %v3764 = vpop.f32.mrf.mxu0
  %v3765 = vadd.f32 %v3745, %v3764
  %v3766 = vpop.f32.mrf.mxu0
  %3767 = vmatmul.bf16.gmra.mxu0 %v3433
  %v3768 = vpop.f32.mrf.mxu0
  %v3769 = vpop.f32.mrf.mxu0
  %v3770 = vadd.f32 %v3750, %v3769
  %3771 = vmatmul.bf16.gmra.mxu0 %v3437
  %v3772 = vpop.f32.mrf.mxu0
  %v3773 = vpop.f32.mrf.mxu0
  %3774 = vdwg.mxu0
  %v3775 = vadd.f32 %v2781, %v3765
  %v3776 = vadd.f32 %v2784, %v3770
  %s3777 = scalar_lea.vmem %s9, 1
  %v3778 = vld [vmem:[%s3777] sm:$0x1]
  %v3780 = vperm.slane %v3778, 0
  %v3782 = vadd.f32 %v3775, %v3780
  %v3783 = vadd.f32 %v3776, %v3780
  %v3785 = vrot.slane %v3783, 7
  %vm3787 = vcmask 1040384
  %v3788 = vsel %vm3787, %v3782, %v3785
  %3789 = vst [vmem:[%s10] sm:$0x3] %v3788
  // Predicated region
  $region42: #{dino_loss.1} parent=0 // pred_check
    _
  $region43: #{dino_loss.1} parent=0 // pred_check_branch
    %3791 = sbr.rel (0) target = $region45
  $region44: #{dino_loss.1} parent=0 // pred_region
    _
  $region45: #{dino_loss.1} parent=0 // pred_fallthru
    _
  // Predicated region
  $region46: #{dino_loss.1} parent=0 // pred_check
    _
  $region47: #{dino_loss.1} parent=0 // pred_check_branch
    %3793 = sbr.rel (0) target = $region49
  $region48: #{dino_loss.1} parent=0 // pred_region
    _
  $region49: #{dino_loss.1} parent=0 // pred_fallthru
    _

</llo_original>
